<compile_context>
chip_gen: v7x
topology: tpu7x:2x2x1
jax: 0.10.0
libtpu: 0.0.40
codegen_flags: <defaults>
</compile_context>

<pallas_src>
import jax
import jax.numpy as jnp
from jax import lax
from jax.experimental import pallas as pl
from jax.experimental.pallas import tpu as pltpu

# --------------- configuration (mirrors MatchPyramid.__init__ params) --------
MAX_LEN_F = 16          # params.max_word_len_f
MAX_LEN_T = 16          # params.max_word_len_t
CONV1 = (3, 3, 8)       # params.conv1_size = "3_3_8"  -> kernel (3,3), 8 out ch
POOL1 = (8, 8)          # params.pool1_size = "8_8"
CONV2 = (3, 3, 16)      # params.conv2_size = "3_3_16" -> kernel (3,3), 16 out
POOL2 = (4, 4)          # params.pool2_size = "4_4"
MP_HIDDEN = 32          # params.mp_hidden
MP_DIM_OUT = 2          # params.mp_dim_out
DIM_XLM = 32            # embedding dim of x1 / x2

K1H, K1W, C1 = CONV1
K2H, K2W, C2 = CONV2
P1H, P1W = POOL1
P2H, P2W = POOL2
H1, W1 = MAX_LEN_F - K1H + 1, MAX_LEN_T - K1W + 1     # conv1 output spatial (14,14)
H2, W2 = P1H - K2H + 1, P1W - K2W + 1                 # conv2 output spatial (6,6)
FLAT = C2 * P2H * P2W                                 # linear1 input features (256)

TILE_B_MAX = 128        # batch examples per grid step (fills the 128-lane axis)


def _round_up(x, m):
    return ((x + m - 1) // m) * m


def _adaptive_bounds(in_size, out_size):
    """Static PyTorch AdaptiveMaxPool2d window boundaries."""
    return [((i * in_size) // out_size,
             ((i + 1) * in_size + out_size - 1) // out_size)
            for i in range(out_size)]


# --------------------- in-kernel pooling helpers (VPU only) -------------------
def _pool_rows(x, out_size):
    """Adaptive max pool along axis 1 via pairwise jnp.maximum of row slices."""
    in_size = x.shape[1]
    pieces = []
    for s, e in _adaptive_bounds(in_size, out_size):
        w = x[:, s:s + 1, :]
        for j in range(s + 1, e):
            w = jnp.maximum(w, x[:, j:j + 1, :])
        pieces.append(w)
    return jnp.concatenate(pieces, axis=1)


def _pool_cols(x, in_cols, out_cols, ch):
    """Adaptive max pool over the column index of the fused (col, channel)
    minor axis, via pairwise jnp.maximum of channel-group lane slices."""
    pieces = []
    for s, e in _adaptive_bounds(in_cols, out_cols):
        w = x[:, :, s * ch:(s + 1) * ch]
        for j in range(s + 1, e):
            w = jnp.maximum(w, x[:, :, j * ch:(j + 1) * ch])
        pieces.append(w)
    return jnp.concatenate(pieces, axis=2)


# ------------------------------- the kernel ----------------------------------
def matchpyramid_kernel(x1_ref, x2_ref, g1_ref, bc1_ref, g2_ref, bc2_ref,
                        wl1_ref, bl1_ref, wl2_ref, bl2_ref, o_ref):
    b = x1_ref.shape[0]                      # static batch tile size
    x1 = x1_ref[...]                         # (B, MAX_LEN_F, DIM_XLM)
    x2 = x2_ref[...]                         # (B, MAX_LEN_T, DIM_XLM)

    # ---- cosine-similarity image (batched MXU matmul) + threshold -----------
    n1 = jnp.sqrt(jnp.sum(x1 * x1, axis=-1, keepdims=True)) + 1e-8
    n2 = jnp.sqrt(jnp.sum(x2 * x2, axis=-1, keepdims=True)) + 1e-8
    simi = lax.dot_general(x1 / n1, x2 / n2,
                           (((2,), (2,)), ((0,), (0,))),
                           preferred_element_type=jnp.float32)   # (B, F, T)
    simi = jnp.where(simi > 0.3, simi, 0.0)

    # ---- conv1 + relu: ONE MXU dot against a Toeplitz-expanded weight -------
    # y1[b, f, kh*W1*C1 + j*C1 + co] = sum_kw simi[b, f, j+kw] * wc1[co,0,kh,kw]
    nc1 = W1 * C1
    y1 = jnp.dot(simi.reshape(b * MAX_LEN_F, MAX_LEN_T), g1_ref[...],
                 preferred_element_type=jnp.float32)             # (B*F, 3*nc1)
    y1 = y1.reshape(b, MAX_LEN_F, K1H * nc1)
    a1 = y1[:, 0:H1, 0:nc1]
    for kh in range(1, K1H):
        a1 = a1 + y1[:, kh:kh + H1, kh * nc1:(kh + 1) * nc1]
    a1 = jnp.maximum(a1 + bc1_ref[...], 0.0)                     # (B, H1, W1*C1)

    # ---- adaptive max pool 1 (VPU maxima over static slices) ----------------
    p1 = _pool_cols(_pool_rows(a1, P1H), W1, P1W, C1)            # (B, P1H, P1W*C1)

    # ---- conv2 + relu: ONE MXU dot against a Toeplitz-expanded weight -------
    nc2 = W2 * C2
    y2 = jnp.dot(p1.reshape(b * P1H, P1W * C1), g2_ref[...],
                 preferred_element_type=jnp.float32)             # (B*P1H, 3*nc2)
    y2 = y2.reshape(b, P1H, K2H * nc2)
    a2 = y2[:, 0:H2, 0:nc2]
    for kh in range(1, K2H):
        a2 = a2 + y2[:, kh:kh + H2, kh * nc2:(kh + 1) * nc2]
    a2 = jnp.maximum(a2 + bc2_ref[...], 0.0)                     # (B, H2, W2*C2)

    # ---- adaptive max pool 2 + flatten ((h, w, c) order; wl1 pre-permuted) --
    p2 = _pool_cols(_pool_rows(a2, P2H), W2, P2W, C2)            # (B, P2H, P2W*C2)
    feat = p2.reshape(b, FLAT)                                   # (B, 256)

    # ---- MLP head; final matmul produces a lane-dense (2, B) output slab ----
    h = jnp.maximum(
        jnp.dot(feat, wl1_ref[...], preferred_element_type=jnp.float32)
        + bl1_ref[...], 0.0)                                     # (B, MP_HIDDEN)
    out_t = lax.dot_general(wl2_ref[...], h, (((1,), (1,)), ((), ())),
                            preferred_element_type=jnp.float32) \
        + bl2_ref[...]                                           # (MP_DIM_OUT, B)
    o_ref[...] = out_t


# ----------------- wrapper-side weight re-layout (pure glue) ------------------
def _conv1_toeplitz(wc1):
    """(C1,1,K1H,K1W) -> G1 (MAX_LEN_T, K1H*W1*C1) with
    G1[t, kh*W1*C1 + j*C1 + co] = wc1[co, 0, kh, t - j] for 0 <= t-j < K1W."""
    w = wc1[:, 0]                                    # (C1, K1H, K1W)
    blocks = []
    for kh in range(K1H):
        g = jnp.zeros((MAX_LEN_T, W1, C1), wc1.dtype)
        for kw in range(K1W):
            diag = jnp.eye(MAX_LEN_T, W1, k=-kw, dtype=wc1.dtype)
            g = g + diag[:, :, None] * w[:, kh, kw][None, None, :]
        blocks.append(g.reshape(MAX_LEN_T, W1 * C1))
    return jnp.concatenate(blocks, axis=1)           # (16, 336)


def _conv2_toeplitz(wc2):
    """(C2,C1,K2H,K2W) -> G2 (P1W*C1, K2H*W2*C2) with
    G2[j*C1 + ci, kh*W2*C2 + jw*C2 + co] = wc2[co, ci, kh, j - jw]."""
    blocks = []
    for kh in range(K2H):
        g = jnp.zeros((P1W, C1, W2, C2), wc2.dtype)
        for kw in range(K2W):
            diag = jnp.eye(P1W, W2, k=-kw, dtype=wc2.dtype)
            g = g + (diag[:, None, :, None]
                     * jnp.transpose(wc2[:, :, kh, kw])[None, :, None, :])
        blocks.append(g.reshape(P1W * C1, W2 * C2))
    return jnp.concatenate(blocks, axis=1)           # (64, 288)


# ------------------------------- wrapper --------------------------------------
@jax.jit
def matchpyramid_forward(x1, x2, wc1, bc1, wc2, bc2, wl1, bl1, wl2, bl2):
    bs, seq_f, _ = x1.shape
    _, seq_t, _ = x2.shape

    # batch tile: as big as possible (amortizes per-step overhead, fills the
    # 128-lane axis / MXU) while letting large batches keep >=2 parallel grid
    # steps for megacore sharding on v7x.
    tile_b = min(TILE_B_MAX, _round_up(bs, 8))
    bs_pad = _round_up(bs, tile_b)

    # pad sequences to max_len with zero rows (== F.pad of the simi image) and
    # pad the batch to a multiple of tile_b (padded rows are dropped below).
    x1p = jnp.pad(x1, ((0, bs_pad - bs), (0, MAX_LEN_F - seq_f), (0, 0)))
    x2p = jnp.pad(x2, ((0, bs_pad - bs), (0, MAX_LEN_T - seq_t), (0, 0)))

    # kernel-friendly weight layouts (no activation compute here):
    g1 = _conv1_toeplitz(wc1)                        # (16, 336)
    bc1_row = jnp.tile(bc1, W1).reshape(1, W1 * C1)  # (1, 112)
    g2 = _conv2_toeplitz(wc2)                        # (64, 288)
    bc2_row = jnp.tile(bc2, W2).reshape(1, W2 * C2)  # (1, 96)
    # linear1 columns: torch flatten order (c, h, w) -> kernel order (h, w, c)
    wl1_k = jnp.transpose(wl1.reshape(MP_HIDDEN, C2, P2H, P2W),
                          (2, 3, 1, 0)).reshape(FLAT, MP_HIDDEN)
    bl1_k = bl1.reshape(1, MP_HIDDEN)
    wl2_k = wl2                                      # (MP_DIM_OUT, MP_HIDDEN)
    bl2_k = bl2.reshape(MP_DIM_OUT, 1)

    def full_spec(arr):
        nd = arr.ndim
        return pl.BlockSpec(arr.shape, lambda i, nd=nd: (0,) * nd)

    out_t = pl.pallas_call(
        matchpyramid_kernel,
        out_shape=jax.ShapeDtypeStruct((MP_DIM_OUT, bs_pad), jnp.float32),
        grid_spec=pltpu.PrefetchScalarGridSpec(
            num_scalar_prefetch=0,
            grid=(bs_pad // tile_b,),
            in_specs=[
                pl.BlockSpec((tile_b, MAX_LEN_F, DIM_XLM), lambda i: (i, 0, 0)),
                pl.BlockSpec((tile_b, MAX_LEN_T, DIM_XLM), lambda i: (i, 0, 0)),
                full_spec(g1), full_spec(bc1_row),
                full_spec(g2), full_spec(bc2_row),
                full_spec(wl1_k), full_spec(bl1_k),
                full_spec(wl2_k), full_spec(bl2_k),
            ],
            # lane-dense output slab: batch lives on the 128-lane minor axis
            out_specs=pl.BlockSpec((MP_DIM_OUT, tile_b), lambda i: (0, i)),
        ),
        compiler_params=pltpu.CompilerParams(
            dimension_semantics=("parallel",),
            vmem_limit_bytes=40 * 1024 * 1024),
    )(x1p, x2p, g1, bc1_row, g2, bc2_row, wl1_k, bl1_k, wl2_k, bl2_k)

    return out_t.T[:bs]                              # (bs, MP_DIM_OUT)


# ----------------------- pure-JAX reference (for checking) -------------------
def reference_forward(x1, x2, wc1, bc1, wc2, bc2, wl1, bl1, wl2, bl2):
    with jax.default_matmul_precision("float32"):
        bs, seq_f, _ = x1.shape
        _, seq_t, _ = x2.shape
        n1 = jnp.sqrt(jnp.sum(x1 * x1, axis=-1, keepdims=True)) + 1e-8
        n2 = jnp.sqrt(jnp.sum(x2 * x2, axis=-1, keepdims=True)) + 1e-8
        simi = jnp.einsum('bfd,btd->bft', x1 / n1, x2 / n2)
        simi = jnp.pad(simi, ((0, 0), (0, MAX_LEN_F - seq_f),
                              (0, MAX_LEN_T - seq_t)))
        simi = jnp.where(simi > 0.3, simi, 0.0)
        img = simi[:, None, :, :]

        def pool(x, oh, ow):
            _, _, ih, iw = x.shape
            rows = jnp.stack([jnp.max(x[:, :, s:e, :], axis=2)
                              for s, e in _adaptive_bounds(ih, oh)], axis=2)
            return jnp.stack([jnp.max(rows[:, :, :, s:e], axis=3)
                              for s, e in _adaptive_bounds(iw, ow)], axis=3)

        c1 = jax.nn.relu(lax.conv_general_dilated(
            img, wc1, (1, 1), 'VALID',
            dimension_numbers=('NCHW', 'OIHW', 'NCHW'))
            + bc1.reshape(1, -1, 1, 1))
        p1 = pool(c1, P1H, P1W)
        c2 = jax.nn.relu(lax.conv_general_dilated(
            p1, wc2, (1, 1), 'VALID',
            dimension_numbers=('NCHW', 'OIHW', 'NCHW'))
            + bc2.reshape(1, -1, 1, 1))
        p2 = pool(c2, P2H, P2W)
        feat = p2.reshape(bs, -1)
        h = jax.nn.relu(feat @ wl1.T + bl1)
        return h @ wl2.T + bl2


# ----------------------------------- main -------------------------------------
if __name__ == "__main__":
    key = jax.random.PRNGKey(0)
    ks = jax.random.split(key, 12)

    # deterministic synthetic parameters (shapes per the module __init__)
    wc1 = 0.3 * jax.random.normal(ks[2], (C1, 1, K1H, K1W), jnp.float32)
    bc1 = 0.1 * jax.random.normal(ks[3], (C1,), jnp.float32)
    wc2 = 0.2 * jax.random.normal(ks[4], (C2, C1, K2H, K2W), jnp.float32)
    bc2 = 0.1 * jax.random.normal(ks[5], (C2,), jnp.float32)
    wl1 = 0.1 * jax.random.normal(ks[6], (MP_HIDDEN, FLAT), jnp.float32)
    bl1 = 0.1 * jax.random.normal(ks[7], (MP_HIDDEN,), jnp.float32)
    wl2 = 0.1 * jax.random.normal(ks[8], (MP_DIM_OUT, MP_HIDDEN), jnp.float32)
    bl2 = 0.1 * jax.random.normal(ks[9], (MP_DIM_OUT,), jnp.float32)
    params = (wc1, bc1, wc2, bc2, wl1, bl1, wl2, bl2)

    # small case: bs=2, ragged sequence lengths (exercises seq + batch padding)
    x1 = jax.random.normal(ks[0], (2, 12, DIM_XLM), jnp.float32)
    x2 = jax.random.normal(ks[1], (2, 10, DIM_XLM), jnp.float32)
    out = matchpyramid_forward(x1, x2, *params)
    jax.block_until_ready(out)
    ref = reference_forward(x1, x2, *params)
    assert out.shape == (2, MP_DIM_OUT), out.shape
    assert jnp.allclose(out, ref, atol=1e-3, rtol=1e-3), (out, ref)

    # larger batch: exercises the full TILE_B=128 tile, batch padding and a
    # multi-step "parallel" grid (megacore sharding on v7x).  Inputs are
    # mean-shifted so no cosine similarity sits near the 0.3 threshold.
    x1b = 2.0 + 0.5 * jax.random.normal(ks[10], (130, MAX_LEN_F, DIM_XLM),
                                        jnp.float32)
    x2b = 2.0 + 0.5 * jax.random.normal(ks[11], (130, MAX_LEN_T, DIM_XLM),
                                        jnp.float32)
    outb = matchpyramid_forward(x1b, x2b, *params)
    jax.block_until_ready(outb)
    refb = reference_forward(x1b, x2b, *params)
    assert outb.shape == (130, MP_DIM_OUT), outb.shape
    assert jnp.allclose(outb, refb, atol=1e-2, rtol=1e-2), (
        float(jnp.max(jnp.abs(outb - refb))))

    # TODO(synk): the module's host-side debug prints (np.any(...),
    # output.size()) and .cuda() placement have no kernel equivalent; omitted.
    print("KERNEL_OK")
</pallas_src>

<mosaic_0001>
module attributes {stable_mosaic.version = 11 : i64} {
  func.func @matchpyramid_kernel(%arg0: i32, %arg1: memref<8x16x32xf32, #tpu.memory_space<vmem>>, %arg2: memref<8x16x32xf32, #tpu.memory_space<vmem>>, %arg3: memref<16x336xf32, #tpu.memory_space<vmem>>, %arg4: memref<1x112xf32, #tpu.memory_space<vmem>>, %arg5: memref<64x288xf32, #tpu.memory_space<vmem>>, %arg6: memref<1x96xf32, #tpu.memory_space<vmem>>, %arg7: memref<256x32xf32, #tpu.memory_space<vmem>>, %arg8: memref<1x32xf32, #tpu.memory_space<vmem>>, %arg9: memref<2x32xf32, #tpu.memory_space<vmem>>, %arg10: memref<2x1xf32, #tpu.memory_space<vmem>>, %arg11: memref<2x8xf32, #tpu.memory_space<vmem>>) attributes {dimension_semantics = [#tpu.dimension_semantics<parallel>], iteration_bounds = array<i64: 1>, scalar_prefetch = 0 : i64, scratch_operands = 0 : i64, tpu.core_type = #tpu.core_type<tc>, window_params = [{transform_indices = @transform_0, window_bounds = array<i64: 8, 16, 32>}, {transform_indices = @transform_1, window_bounds = array<i64: 8, 16, 32>}, {pipeline_mode = #tpu.pipeline_mode<synchronous>, transform_indices = @transform_2, window_bounds = array<i64: 16, 336>}, {pipeline_mode = #tpu.pipeline_mode<synchronous>, transform_indices = @transform_3, window_bounds = array<i64: 1, 112>}, {pipeline_mode = #tpu.pipeline_mode<synchronous>, transform_indices = @transform_4, window_bounds = array<i64: 64, 288>}, {pipeline_mode = #tpu.pipeline_mode<synchronous>, transform_indices = @transform_5, window_bounds = array<i64: 1, 96>}, {pipeline_mode = #tpu.pipeline_mode<synchronous>, transform_indices = @transform_6, window_bounds = array<i64: 256, 32>}, {pipeline_mode = #tpu.pipeline_mode<synchronous>, transform_indices = @transform_7, window_bounds = array<i64: 1, 32>}, {pipeline_mode = #tpu.pipeline_mode<synchronous>, transform_indices = @transform_8, window_bounds = array<i64: 2, 32>}, {pipeline_mode = #tpu.pipeline_mode<synchronous>, transform_indices = @transform_9, window_bounds = array<i64: 2, 1>}, {transform_indices = @transform_10, window_bounds = array<i64: 2, 8>}]} {
    %c0 = arith.constant 0 : index
    %c0_0 = arith.constant 0 : index
    %c0_1 = arith.constant 0 : index
    %0 = vector.load %arg1[%c0, %c0_0, %c0_1] : memref<8x16x32xf32, #tpu.memory_space<vmem>>, vector<8x16x32xf32>
    %c0_2 = arith.constant 0 : index
    %c0_3 = arith.constant 0 : index
    %c0_4 = arith.constant 0 : index
    %1 = vector.load %arg2[%c0_2, %c0_3, %c0_4] : memref<8x16x32xf32, #tpu.memory_space<vmem>>, vector<8x16x32xf32>
    %2 = arith.mulf %0, %0 : vector<8x16x32xf32>
    %cst = arith.constant dense<0.000000e+00> : vector<8x16xf32>
    %3 = vector.multi_reduction <add>, %2, %cst [2] : vector<8x16x32xf32> to vector<8x16xf32>
    %4 = vector.shape_cast %3 : vector<8x16xf32> to vector<8x16x1xf32>
    %5 = math.sqrt %4 : vector<8x16x1xf32>
    %cst_5 = arith.constant 9.99999993E-9 : f32
    %6 = vector.broadcast %cst_5 : f32 to vector<8x16x1xf32>
    %7 = arith.addf %5, %6 : vector<8x16x1xf32>
    %8 = arith.mulf %1, %1 : vector<8x16x32xf32>
    %cst_6 = arith.constant dense<0.000000e+00> : vector<8x16xf32>
    %9 = vector.multi_reduction <add>, %8, %cst_6 [2] : vector<8x16x32xf32> to vector<8x16xf32>
    %10 = vector.shape_cast %9 : vector<8x16xf32> to vector<8x16x1xf32>
    %11 = math.sqrt %10 : vector<8x16x1xf32>
    %cst_7 = arith.constant 9.99999993E-9 : f32
    %12 = vector.broadcast %cst_7 : f32 to vector<8x16x1xf32>
    %13 = arith.addf %11, %12 : vector<8x16x1xf32>
    %14 = vector.broadcast %7 : vector<8x16x1xf32> to vector<8x16x32xf32>
    %15 = arith.divf %0, %14 : vector<8x16x32xf32>
    %16 = vector.broadcast %13 : vector<8x16x1xf32> to vector<8x16x32xf32>
    %17 = arith.divf %1, %16 : vector<8x16x32xf32>
    %cst_8 = arith.constant dense<0.000000e+00> : vector<8x16x16xf32>
    %18 = tpu.matmul %15, %17, %cst_8 {dimension_numbers = #tpu.dot_dimension_numbers<[2], [2], [1], [1], [0, 0, 0, 1, 1, 1], [0], [0]>} : vector<8x16x32xf32>, vector<8x16x32xf32>, vector<8x16x16xf32> -> vector<8x16x16xf32>
    %cst_9 = arith.constant 3.000000e-01 : f32
    %19 = vector.broadcast %cst_9 : f32 to vector<8x16x16xf32>
    %20 = arith.cmpf ogt, %18, %19 : vector<8x16x16xf32>
    %cst_10 = arith.constant 0.000000e+00 : f32
    %21 = vector.broadcast %cst_10 : f32 to vector<8x16x16xf32>
    %22 = arith.select %20, %18, %21 : vector<8x16x16xi1>, vector<8x16x16xf32>
    %23 = vector.shape_cast %22 : vector<8x16x16xf32> to vector<128x16xf32>
    %c0_11 = arith.constant 0 : index
    %c0_12 = arith.constant 0 : index
    %24 = vector.load %arg3[%c0_11, %c0_12] : memref<16x336xf32, #tpu.memory_space<vmem>>, vector<16x336xf32>
    %cst_13 = arith.constant dense<0.000000e+00> : vector<128x336xf32>
    %25 = tpu.matmul %23, %24, %cst_13 {dimension_numbers = #tpu.dot_dimension_numbers<[1], [0], [0], [1], [0, 0, 1, 1], [], []>} : vector<128x16xf32>, vector<16x336xf32>, vector<128x336xf32> -> vector<128x336xf32>
    %26 = vector.shape_cast %25 : vector<128x336xf32> to vector<8x16x336xf32>
    %27 = vector.extract_strided_slice %26 {offsets = [0, 0, 0], sizes = [8, 14, 112], strides = [1, 1, 1]} : vector<8x16x336xf32> to vector<8x14x112xf32>
    %28 = vector.extract_strided_slice %26 {offsets = [0, 1, 112], sizes = [8, 14, 112], strides = [1, 1, 1]} : vector<8x16x336xf32> to vector<8x14x112xf32>
    %29 = arith.addf %27, %28 : vector<8x14x112xf32>
    %30 = vector.extract_strided_slice %26 {offsets = [0, 2, 224], sizes = [8, 14, 112], strides = [1, 1, 1]} : vector<8x16x336xf32> to vector<8x14x112xf32>
    %31 = arith.addf %29, %30 : vector<8x14x112xf32>
    %c0_14 = arith.constant 0 : index
    %c0_15 = arith.constant 0 : index
    %32 = vector.load %arg4[%c0_14, %c0_15] : memref<1x112xf32, #tpu.memory_space<vmem>>, vector<1x112xf32>
    %33 = vector.shape_cast %32 : vector<1x112xf32> to vector<1x1x112xf32>
    %34 = vector.broadcast %33 : vector<1x1x112xf32> to vector<8x14x112xf32>
    %35 = arith.addf %31, %34 : vector<8x14x112xf32>
    %cst_16 = arith.constant 0.000000e+00 : f32
    %36 = vector.broadcast %cst_16 : f32 to vector<8x14x112xf32>
    %37 = arith.maximumf %35, %36 : vector<8x14x112xf32>
    %38 = vector.extract_strided_slice %37 {offsets = [0, 0, 0], sizes = [8, 1, 112], strides = [1, 1, 1]} : vector<8x14x112xf32> to vector<8x1x112xf32>
    %39 = vector.extract_strided_slice %37 {offsets = [0, 1, 0], sizes = [8, 1, 112], strides = [1, 1, 1]} : vector<8x14x112xf32> to vector<8x1x112xf32>
    %40 = arith.maximumf %38, %39 : vector<8x1x112xf32>
    %41 = vector.extract_strided_slice %37 {offsets = [0, 1, 0], sizes = [8, 1, 112], strides = [1, 1, 1]} : vector<8x14x112xf32> to vector<8x1x112xf32>
    %42 = vector.extract_strided_slice %37 {offsets = [0, 2, 0], sizes = [8, 1, 112], strides = [1, 1, 1]} : vector<8x14x112xf32> to vector<8x1x112xf32>
    %43 = arith.maximumf %41, %42 : vector<8x1x112xf32>
    %44 = vector.extract_strided_slice %37 {offsets = [0, 3, 0], sizes = [8, 1, 112], strides = [1, 1, 1]} : vector<8x14x112xf32> to vector<8x1x112xf32>
    %45 = arith.maximumf %43, %44 : vector<8x1x112xf32>
    %46 = vector.extract_strided_slice %37 {offsets = [0, 3, 0], sizes = [8, 1, 112], strides = [1, 1, 1]} : vector<8x14x112xf32> to vector<8x1x112xf32>
    %47 = vector.extract_strided_slice %37 {offsets = [0, 4, 0], sizes = [8, 1, 112], strides = [1, 1, 1]} : vector<8x14x112xf32> to vector<8x1x112xf32>
    %48 = arith.maximumf %46, %47 : vector<8x1x112xf32>
    %49 = vector.extract_strided_slice %37 {offsets = [0, 5, 0], sizes = [8, 1, 112], strides = [1, 1, 1]} : vector<8x14x112xf32> to vector<8x1x112xf32>
    %50 = arith.maximumf %48, %49 : vector<8x1x112xf32>
    %51 = vector.extract_strided_slice %37 {offsets = [0, 5, 0], sizes = [8, 1, 112], strides = [1, 1, 1]} : vector<8x14x112xf32> to vector<8x1x112xf32>
    %52 = vector.extract_strided_slice %37 {offsets = [0, 6, 0], sizes = [8, 1, 112], strides = [1, 1, 1]} : vector<8x14x112xf32> to vector<8x1x112xf32>
    %53 = arith.maximumf %51, %52 : vector<8x1x112xf32>
    %54 = vector.extract_strided_slice %37 {offsets = [0, 7, 0], sizes = [8, 1, 112], strides = [1, 1, 1]} : vector<8x14x112xf32> to vector<8x1x112xf32>
    %55 = vector.extract_strided_slice %37 {offsets = [0, 8, 0], sizes = [8, 1, 112], strides = [1, 1, 1]} : vector<8x14x112xf32> to vector<8x1x112xf32>
    %56 = arith.maximumf %54, %55 : vector<8x1x112xf32>
    %57 = vector.extract_strided_slice %37 {offsets = [0, 8, 0], sizes = [8, 1, 112], strides = [1, 1, 1]} : vector<8x14x112xf32> to vector<8x1x112xf32>
    %58 = vector.extract_strided_slice %37 {offsets = [0, 9, 0], sizes = [8, 1, 112], strides = [1, 1, 1]} : vector<8x14x112xf32> to vector<8x1x112xf32>
    %59 = arith.maximumf %57, %58 : vector<8x1x112xf32>
    %60 = vector.extract_strided_slice %37 {offsets = [0, 10, 0], sizes = [8, 1, 112], strides = [1, 1, 1]} : vector<8x14x112xf32> to vector<8x1x112xf32>
    %61 = arith.maximumf %59, %60 : vector<8x1x112xf32>
    %62 = vector.extract_strided_slice %37 {offsets = [0, 10, 0], sizes = [8, 1, 112], strides = [1, 1, 1]} : vector<8x14x112xf32> to vector<8x1x112xf32>
    %63 = vector.extract_strided_slice %37 {offsets = [0, 11, 0], sizes = [8, 1, 112], strides = [1, 1, 1]} : vector<8x14x112xf32> to vector<8x1x112xf32>
    %64 = arith.maximumf %62, %63 : vector<8x1x112xf32>
    %65 = vector.extract_strided_slice %37 {offsets = [0, 12, 0], sizes = [8, 1, 112], strides = [1, 1, 1]} : vector<8x14x112xf32> to vector<8x1x112xf32>
    %66 = arith.maximumf %64, %65 : vector<8x1x112xf32>
    %67 = vector.extract_strided_slice %37 {offsets = [0, 12, 0], sizes = [8, 1, 112], strides = [1, 1, 1]} : vector<8x14x112xf32> to vector<8x1x112xf32>
    %68 = vector.extract_strided_slice %37 {offsets = [0, 13, 0], sizes = [8, 1, 112], strides = [1, 1, 1]} : vector<8x14x112xf32> to vector<8x1x112xf32>
    %69 = arith.maximumf %67, %68 : vector<8x1x112xf32>
    %70 = tpu.concatenate %40, %45, %50, %53, %56, %61, %66, %69 in 1 : vector<8x1x112xf32>, vector<8x1x112xf32>, vector<8x1x112xf32>, vector<8x1x112xf32>, vector<8x1x112xf32>, vector<8x1x112xf32>, vector<8x1x112xf32>, vector<8x1x112xf32> -> vector<8x8x112xf32>
    %71 = vector.extract_strided_slice %70 {offsets = [0, 0, 0], sizes = [8, 8, 8], strides = [1, 1, 1]} : vector<8x8x112xf32> to vector<8x8x8xf32>
    %72 = vector.extract_strided_slice %70 {offsets = [0, 0, 8], sizes = [8, 8, 8], strides = [1, 1, 1]} : vector<8x8x112xf32> to vector<8x8x8xf32>
    %73 = arith.maximumf %71, %72 : vector<8x8x8xf32>
    %74 = vector.extract_strided_slice %70 {offsets = [0, 0, 8], sizes = [8, 8, 8], strides = [1, 1, 1]} : vector<8x8x112xf32> to vector<8x8x8xf32>
    %75 = vector.extract_strided_slice %70 {offsets = [0, 0, 16], sizes = [8, 8, 8], strides = [1, 1, 1]} : vector<8x8x112xf32> to vector<8x8x8xf32>
    %76 = arith.maximumf %74, %75 : vector<8x8x8xf32>
    %77 = vector.extract_strided_slice %70 {offsets = [0, 0, 24], sizes = [8, 8, 8], strides = [1, 1, 1]} : vector<8x8x112xf32> to vector<8x8x8xf32>
    %78 = arith.maximumf %76, %77 : vector<8x8x8xf32>
    %79 = vector.extract_strided_slice %70 {offsets = [0, 0, 24], sizes = [8, 8, 8], strides = [1, 1, 1]} : vector<8x8x112xf32> to vector<8x8x8xf32>
    %80 = vector.extract_strided_slice %70 {offsets = [0, 0, 32], sizes = [8, 8, 8], strides = [1, 1, 1]} : vector<8x8x112xf32> to vector<8x8x8xf32>
    %81 = arith.maximumf %79, %80 : vector<8x8x8xf32>
    %82 = vector.extract_strided_slice %70 {offsets = [0, 0, 40], sizes = [8, 8, 8], strides = [1, 1, 1]} : vector<8x8x112xf32> to vector<8x8x8xf32>
    %83 = arith.maximumf %81, %82 : vector<8x8x8xf32>
    %84 = vector.extract_strided_slice %70 {offsets = [0, 0, 40], sizes = [8, 8, 8], strides = [1, 1, 1]} : vector<8x8x112xf32> to vector<8x8x8xf32>
    %85 = vector.extract_strided_slice %70 {offsets = [0, 0, 48], sizes = [8, 8, 8], strides = [1, 1, 1]} : vector<8x8x112xf32> to vector<8x8x8xf32>
    %86 = arith.maximumf %84, %85 : vector<8x8x8xf32>
    %87 = vector.extract_strided_slice %70 {offsets = [0, 0, 56], sizes = [8, 8, 8], strides = [1, 1, 1]} : vector<8x8x112xf32> to vector<8x8x8xf32>
    %88 = vector.extract_strided_slice %70 {offsets = [0, 0, 64], sizes = [8, 8, 8], strides = [1, 1, 1]} : vector<8x8x112xf32> to vector<8x8x8xf32>
    %89 = arith.maximumf %87, %88 : vector<8x8x8xf32>
    %90 = vector.extract_strided_slice %70 {offsets = [0, 0, 64], sizes = [8, 8, 8], strides = [1, 1, 1]} : vector<8x8x112xf32> to vector<8x8x8xf32>
    %91 = vector.extract_strided_slice %70 {offsets = [0, 0, 72], sizes = [8, 8, 8], strides = [1, 1, 1]} : vector<8x8x112xf32> to vector<8x8x8xf32>
    %92 = arith.maximumf %90, %91 : vector<8x8x8xf32>
    %93 = vector.extract_strided_slice %70 {offsets = [0, 0, 80], sizes = [8, 8, 8], strides = [1, 1, 1]} : vector<8x8x112xf32> to vector<8x8x8xf32>
    %94 = arith.maximumf %92, %93 : vector<8x8x8xf32>
    %95 = vector.extract_strided_slice %70 {offsets = [0, 0, 80], sizes = [8, 8, 8], strides = [1, 1, 1]} : vector<8x8x112xf32> to vector<8x8x8xf32>
    %96 = vector.extract_strided_slice %70 {offsets = [0, 0, 88], sizes = [8, 8, 8], strides = [1, 1, 1]} : vector<8x8x112xf32> to vector<8x8x8xf32>
    %97 = arith.maximumf %95, %96 : vector<8x8x8xf32>
    %98 = vector.extract_strided_slice %70 {offsets = [0, 0, 96], sizes = [8, 8, 8], strides = [1, 1, 1]} : vector<8x8x112xf32> to vector<8x8x8xf32>
    %99 = arith.maximumf %97, %98 : vector<8x8x8xf32>
    %100 = vector.extract_strided_slice %70 {offsets = [0, 0, 96], sizes = [8, 8, 8], strides = [1, 1, 1]} : vector<8x8x112xf32> to vector<8x8x8xf32>
    %101 = vector.extract_strided_slice %70 {offsets = [0, 0, 104], sizes = [8, 8, 8], strides = [1, 1, 1]} : vector<8x8x112xf32> to vector<8x8x8xf32>
    %102 = arith.maximumf %100, %101 : vector<8x8x8xf32>
    %103 = tpu.concatenate %73, %78, %83, %86, %89, %94, %99, %102 in 2 : vector<8x8x8xf32>, vector<8x8x8xf32>, vector<8x8x8xf32>, vector<8x8x8xf32>, vector<8x8x8xf32>, vector<8x8x8xf32>, vector<8x8x8xf32>, vector<8x8x8xf32> -> vector<8x8x64xf32>
    %104 = vector.shape_cast %103 : vector<8x8x64xf32> to vector<64x64xf32>
    %c0_17 = arith.constant 0 : index
    %c0_18 = arith.constant 0 : index
    %105 = vector.load %arg5[%c0_17, %c0_18] : memref<64x288xf32, #tpu.memory_space<vmem>>, vector<64x288xf32>
    %cst_19 = arith.constant dense<0.000000e+00> : vector<64x288xf32>
    %106 = tpu.matmul %104, %105, %cst_19 {dimension_numbers = #tpu.dot_dimension_numbers<[1], [0], [0], [1], [0, 0, 1, 1], [], []>} : vector<64x64xf32>, vector<64x288xf32>, vector<64x288xf32> -> vector<64x288xf32>
    %107 = vector.shape_cast %106 : vector<64x288xf32> to vector<8x8x288xf32>
    %108 = vector.extract_strided_slice %107 {offsets = [0, 0, 0], sizes = [8, 6, 96], strides = [1, 1, 1]} : vector<8x8x288xf32> to vector<8x6x96xf32>
    %109 = vector.extract_strided_slice %107 {offsets = [0, 1, 96], sizes = [8, 6, 96], strides = [1, 1, 1]} : vector<8x8x288xf32> to vector<8x6x96xf32>
    %110 = arith.addf %108, %109 : vector<8x6x96xf32>
    %111 = vector.extract_strided_slice %107 {offsets = [0, 2, 192], sizes = [8, 6, 96], strides = [1, 1, 1]} : vector<8x8x288xf32> to vector<8x6x96xf32>
    %112 = arith.addf %110, %111 : vector<8x6x96xf32>
    %c0_20 = arith.constant 0 : index
    %c0_21 = arith.constant 0 : index
    %113 = vector.load %arg6[%c0_20, %c0_21] : memref<1x96xf32, #tpu.memory_space<vmem>>, vector<1x96xf32>
    %114 = vector.shape_cast %113 : vector<1x96xf32> to vector<1x1x96xf32>
    %115 = vector.broadcast %114 : vector<1x1x96xf32> to vector<8x6x96xf32>
    %116 = arith.addf %112, %115 : vector<8x6x96xf32>
    %cst_22 = arith.constant 0.000000e+00 : f32
    %117 = vector.broadcast %cst_22 : f32 to vector<8x6x96xf32>
    %118 = arith.maximumf %116, %117 : vector<8x6x96xf32>
    %119 = vector.extract_strided_slice %118 {offsets = [0, 0, 0], sizes = [8, 1, 96], strides = [1, 1, 1]} : vector<8x6x96xf32> to vector<8x1x96xf32>
    %120 = vector.extract_strided_slice %118 {offsets = [0, 1, 0], sizes = [8, 1, 96], strides = [1, 1, 1]} : vector<8x6x96xf32> to vector<8x1x96xf32>
    %121 = arith.maximumf %119, %120 : vector<8x1x96xf32>
    %122 = vector.extract_strided_slice %118 {offsets = [0, 1, 0], sizes = [8, 1, 96], strides = [1, 1, 1]} : vector<8x6x96xf32> to vector<8x1x96xf32>
    %123 = vector.extract_strided_slice %118 {offsets = [0, 2, 0], sizes = [8, 1, 96], strides = [1, 1, 1]} : vector<8x6x96xf32> to vector<8x1x96xf32>
    %124 = arith.maximumf %122, %123 : vector<8x1x96xf32>
    %125 = vector.extract_strided_slice %118 {offsets = [0, 3, 0], sizes = [8, 1, 96], strides = [1, 1, 1]} : vector<8x6x96xf32> to vector<8x1x96xf32>
    %126 = vector.extract_strided_slice %118 {offsets = [0, 4, 0], sizes = [8, 1, 96], strides = [1, 1, 1]} : vector<8x6x96xf32> to vector<8x1x96xf32>
    %127 = arith.maximumf %125, %126 : vector<8x1x96xf32>
    %128 = vector.extract_strided_slice %118 {offsets = [0, 4, 0], sizes = [8, 1, 96], strides = [1, 1, 1]} : vector<8x6x96xf32> to vector<8x1x96xf32>
    %129 = vector.extract_strided_slice %118 {offsets = [0, 5, 0], sizes = [8, 1, 96], strides = [1, 1, 1]} : vector<8x6x96xf32> to vector<8x1x96xf32>
    %130 = arith.maximumf %128, %129 : vector<8x1x96xf32>
    %131 = tpu.concatenate %121, %124, %127, %130 in 1 : vector<8x1x96xf32>, vector<8x1x96xf32>, vector<8x1x96xf32>, vector<8x1x96xf32> -> vector<8x4x96xf32>
    %132 = vector.extract_strided_slice %131 {offsets = [0, 0, 0], sizes = [8, 4, 16], strides = [1, 1, 1]} : vector<8x4x96xf32> to vector<8x4x16xf32>
    %133 = vector.extract_strided_slice %131 {offsets = [0, 0, 16], sizes = [8, 4, 16], strides = [1, 1, 1]} : vector<8x4x96xf32> to vector<8x4x16xf32>
    %134 = arith.maximumf %132, %133 : vector<8x4x16xf32>
    %135 = vector.extract_strided_slice %131 {offsets = [0, 0, 16], sizes = [8, 4, 16], strides = [1, 1, 1]} : vector<8x4x96xf32> to vector<8x4x16xf32>
    %136 = vector.extract_strided_slice %131 {offsets = [0, 0, 32], sizes = [8, 4, 16], strides = [1, 1, 1]} : vector<8x4x96xf32> to vector<8x4x16xf32>
    %137 = arith.maximumf %135, %136 : vector<8x4x16xf32>
    %138 = vector.extract_strided_slice %131 {offsets = [0, 0, 48], sizes = [8, 4, 16], strides = [1, 1, 1]} : vector<8x4x96xf32> to vector<8x4x16xf32>
    %139 = vector.extract_strided_slice %131 {offsets = [0, 0, 64], sizes = [8, 4, 16], strides = [1, 1, 1]} : vector<8x4x96xf32> to vector<8x4x16xf32>
    %140 = arith.maximumf %138, %139 : vector<8x4x16xf32>
    %141 = vector.extract_strided_slice %131 {offsets = [0, 0, 64], sizes = [8, 4, 16], strides = [1, 1, 1]} : vector<8x4x96xf32> to vector<8x4x16xf32>
    %142 = vector.extract_strided_slice %131 {offsets = [0, 0, 80], sizes = [8, 4, 16], strides = [1, 1, 1]} : vector<8x4x96xf32> to vector<8x4x16xf32>
    %143 = arith.maximumf %141, %142 : vector<8x4x16xf32>
    %144 = tpu.concatenate %134, %137, %140, %143 in 2 : vector<8x4x16xf32>, vector<8x4x16xf32>, vector<8x4x16xf32>, vector<8x4x16xf32> -> vector<8x4x64xf32>
    %145 = vector.shape_cast %144 : vector<8x4x64xf32> to vector<8x256xf32>
    %c0_23 = arith.constant 0 : index
    %c0_24 = arith.constant 0 : index
    %146 = vector.load %arg7[%c0_23, %c0_24] : memref<256x32xf32, #tpu.memory_space<vmem>>, vector<256x32xf32>
    %cst_25 = arith.constant dense<0.000000e+00> : vector<8x32xf32>
    %147 = tpu.matmul %145, %146, %cst_25 {dimension_numbers = #tpu.dot_dimension_numbers<[1], [0], [0], [1], [0, 0, 1, 1], [], []>} : vector<8x256xf32>, vector<256x32xf32>, vector<8x32xf32> -> vector<8x32xf32>
    %c0_26 = arith.constant 0 : index
    %c0_27 = arith.constant 0 : index
    %148 = vector.load %arg8[%c0_26, %c0_27] : memref<1x32xf32, #tpu.memory_space<vmem>>, vector<1x32xf32>
    %149 = vector.broadcast %148 : vector<1x32xf32> to vector<8x32xf32>
    %150 = arith.addf %147, %149 : vector<8x32xf32>
    %cst_28 = arith.constant 0.000000e+00 : f32
    %151 = vector.broadcast %cst_28 : f32 to vector<8x32xf32>
    %152 = arith.maximumf %150, %151 : vector<8x32xf32>
    %c0_29 = arith.constant 0 : index
    %c0_30 = arith.constant 0 : index
    %153 = vector.load %arg9[%c0_29, %c0_30] : memref<2x32xf32, #tpu.memory_space<vmem>>, vector<2x32xf32>
    %cst_31 = arith.constant dense<0.000000e+00> : vector<2x8xf32>
    %154 = tpu.matmul %153, %152, %cst_31 {dimension_numbers = #tpu.dot_dimension_numbers<[1], [1], [0], [0], [0, 0, 1, 0], [], []>} : vector<2x32xf32>, vector<8x32xf32>, vector<2x8xf32> -> vector<2x8xf32>
    %c0_32 = arith.constant 0 : index
    %c0_33 = arith.constant 0 : index
    %155 = vector.load %arg10[%c0_32, %c0_33] : memref<2x1xf32, #tpu.memory_space<vmem>>, vector<2x1xf32>
    %156 = vector.broadcast %155 : vector<2x1xf32> to vector<2x8xf32>
    %157 = arith.addf %154, %156 : vector<2x8xf32>
    %c0_34 = arith.constant 0 : index
    %c0_35 = arith.constant 0 : index
    %158 = vector.load %arg11[%c0_34, %c0_35] : memref<2x8xf32, #tpu.memory_space<vmem>>, vector<2x8xf32>
    tpu.vector_store %arg11[%c0_34, %c0_35], %157 {strides = array<i32>} : memref<2x8xf32, #tpu.memory_space<vmem>>, vector<2x8xf32>,
    return
  }
  func.func @transform_0(%arg0: i32) -> (i32, i32, i32) {
    %c0_i32 = arith.constant 0 : i32
    %c0_i32_0 = arith.constant 0 : i32
    %c0_i32_1 = arith.constant 0 : i32
    return %arg0, %c0_i32, %c0_i32_0 : i32, i32, i32
  }
  func.func @transform_1(%arg0: i32) -> (i32, i32, i32) {
    %c0_i32 = arith.constant 0 : i32
    %c0_i32_0 = arith.constant 0 : i32
    %c0_i32_1 = arith.constant 0 : i32
    return %arg0, %c0_i32, %c0_i32_0 : i32, i32, i32
  }
  func.func @transform_2(%arg0: i32) -> (i32, i32) {
    %c0_i32 = arith.constant 0 : i32
    %c0_i32_0 = arith.constant 0 : i32
    %c0_i32_1 = arith.constant 0 : i32
    return %c0_i32, %c0_i32_0 : i32, i32
  }
  func.func @transform_3(%arg0: i32) -> (i32, i32) {
    %c0_i32 = arith.constant 0 : i32
    %c0_i32_0 = arith.constant 0 : i32
    %c0_i32_1 = arith.constant 0 : i32
    return %c0_i32, %c0_i32_0 : i32, i32
  }
  func.func @transform_4(%arg0: i32) -> (i32, i32) {
    %c0_i32 = arith.constant 0 : i32
    %c0_i32_0 = arith.constant 0 : i32
    %c0_i32_1 = arith.constant 0 : i32
    return %c0_i32, %c0_i32_0 : i32, i32
  }
  func.func @transform_5(%arg0: i32) -> (i32, i32) {
    %c0_i32 = arith.constant 0 : i32
    %c0_i32_0 = arith.constant 0 : i32
    %c0_i32_1 = arith.constant 0 : i32
    return %c0_i32, %c0_i32_0 : i32, i32
  }
  func.func @transform_6(%arg0: i32) -> (i32, i32) {
    %c0_i32 = arith.constant 0 : i32
    %c0_i32_0 = arith.constant 0 : i32
    %c0_i32_1 = arith.constant 0 : i32
    return %c0_i32, %c0_i32_0 : i32, i32
  }
  func.func @transform_7(%arg0: i32) -> (i32, i32) {
    %c0_i32 = arith.constant 0 : i32
    %c0_i32_0 = arith.constant 0 : i32
    %c0_i32_1 = arith.constant 0 : i32
    return %c0_i32, %c0_i32_0 : i32, i32
  }
  func.func @transform_8(%arg0: i32) -> (i32, i32) {
    %c0_i32 = arith.constant 0 : i32
    %c0_i32_0 = arith.constant 0 : i32
    %c0_i32_1 = arith.constant 0 : i32
    return %c0_i32, %c0_i32_0 : i32, i32
  }
  func.func @transform_9(%arg0: i32) -> (i32, i32) {
    %c0_i32 = arith.constant 0 : i32
    %c0_i32_0 = arith.constant 0 : i32
    %c0_i32_1 = arith.constant 0 : i32
    return %c0_i32, %c0_i32_0 : i32, i32
  }
  func.func @transform_10(%arg0: i32) -> (i32, i32) {
    %c0_i32 = arith.constant 0 : i32
    %c0_i32_0 = arith.constant 0 : i32
    return %c0_i32, %arg0 : i32, i32
  }
}

</mosaic_0001>

<llo_original>
// kernel: tile.14
$region0: #{tile.14}
  %s0 = inlined_call_operand.vmem [shape: f32[14,8], index: 0, kind: input, shape index: {}]
  %s1 = inlined_call_operand.vmem [shape: f32[1,112], index: 1, kind: output, shape index: {}]
  $region1: #{tile.14} parent=0
    #allocation0 [shape = 'u8[4096]{0}', space=vmem, size = 0x1000, scoped, tag = 'scoped mem for output reshape']
    %v2 = vld [vmem:[%s0] sm:$0x1]
    %vm3 = vcmask 64512
    %4 = vst.msk [vmem:[#allocation0] sm:$0x1] %vm3, %v2
    %s5 = scalar_lea.vmem %s0, 13
    %v6 = vld [vmem:[%s5] sm:$0x1]
    %7 = vrot.lane.b32.xlu0 %v6, 104
    %v8 = vpop.permute.xlu0 %7
    %vm9 = vcmask 917312
    %10 = vst.msk [vmem:[#allocation0] sm:$0x1] %vm9, %v8
    %s11 = scalar_lea.vmem %s0, 12
    %v12 = vld [vmem:[%s11] sm:$0x1]
    %13 = vrot.lane.b32.xlu0 %v12, 96
    %v14 = vpop.permute.xlu0 %13
    %vm15 = vcmask 851712
    %16 = vst.msk [vmem:[#allocation0] sm:$0x1] %vm15, %v14
    %s17 = scalar_lea.vmem %s0, 11
    %v18 = vld [vmem:[%s17] sm:$0x1]
    %19 = vrot.lane.b32.xlu0 %v18, 88
    %v20 = vpop.permute.xlu0 %19
    %vm21 = vcmask 786112
    %22 = vst.msk [vmem:[#allocation0] sm:$0x1] %vm21, %v20
    %s23 = scalar_lea.vmem %s0, 10
    %v24 = vld [vmem:[%s23] sm:$0x1]
    %25 = vrot.lane.b32.xlu0 %v24, 80
    %v26 = vpop.permute.xlu0 %25
    %vm27 = vcmask 720512
    %28 = vst.msk [vmem:[#allocation0] sm:$0x1] %vm27, %v26
    %s29 = scalar_lea.vmem %s0, 9
    %v30 = vld [vmem:[%s29] sm:$0x1]
    %31 = vrot.lane.b32.xlu0 %v30, 72
    %v32 = vpop.permute.xlu0 %31
    %vm33 = vcmask 654912
    %34 = vst.msk [vmem:[#allocation0] sm:$0x1] %vm33, %v32
    %s35 = scalar_lea.vmem %s0, 8
    %v36 = vld [vmem:[%s35] sm:$0x1]
    %37 = vrot.lane.b32.xlu0 %v36, 64
    %v38 = vpop.permute.xlu0 %37
    %vm39 = vcmask 589312
    %40 = vst.msk [vmem:[#allocation0] sm:$0x1] %vm39, %v38
    %s41 = scalar_lea.vmem %s0, 7
    %v42 = vld [vmem:[%s41] sm:$0x1]
    %43 = vrot.lane.b32.xlu0 %v42, 56
    %v44 = vpop.permute.xlu0 %43
    %vm45 = vcmask 523712
    %46 = vst.msk [vmem:[#allocation0] sm:$0x1] %vm45, %v44
    %s47 = scalar_lea.vmem %s0, 6
    %v48 = vld [vmem:[%s47] sm:$0x1]
    %49 = vrot.lane.b32.xlu0 %v48, 48
    %v50 = vpop.permute.xlu0 %49
    %vm51 = vcmask 458112
    %52 = vst.msk [vmem:[#allocation0] sm:$0x1] %vm51, %v50
    %s53 = scalar_lea.vmem %s0, 5
    %v54 = vld [vmem:[%s53] sm:$0x1]
    %55 = vrot.lane.b32.xlu0 %v54, 40
    %v56 = vpop.permute.xlu0 %55
    %vm57 = vcmask 392512
    %58 = vst.msk [vmem:[#allocation0] sm:$0x1] %vm57, %v56
    %s59 = scalar_lea.vmem %s0, 4
    %v60 = vld [vmem:[%s59] sm:$0x1]
    %61 = vrot.lane.b32.xlu0 %v60, 32
    %v62 = vpop.permute.xlu0 %61
    %vm63 = vcmask 326912
    %64 = vst.msk [vmem:[#allocation0] sm:$0x1] %vm63, %v62
    %s65 = scalar_lea.vmem %s0, 3
    %v66 = vld [vmem:[%s65] sm:$0x1]
    %67 = vrot.lane.b32.xlu0 %v66, 24
    %v68 = vpop.permute.xlu0 %67
    %vm69 = vcmask 261312
    %70 = vst.msk [vmem:[#allocation0] sm:$0x1] %vm69, %v68
    %s71 = scalar_lea.vmem %s0, 2
    %v72 = vld [vmem:[%s71] sm:$0x1]
    %73 = vrot.lane.b32.xlu0 %v72, 16
    %v74 = vpop.permute.xlu0 %73
    %vm75 = vcmask 195712
    %76 = vst.msk [vmem:[#allocation0] sm:$0x1] %vm75, %v74
    %s77 = scalar_lea.vmem %s0, 1
    %v78 = vld [vmem:[%s77] sm:$0x1]
    %79 = vrot.lane.b32.xlu0 %v78, 8
    %v80 = vpop.permute.xlu0 %79
    %vm81 = vcmask 130112
    %82 = vst.msk [vmem:[#allocation0] sm:$0x1] %vm81, %v80
    %s84 = sshllo.u32 0, 1
    %v86 = vld [vmem:[#allocation0] sm:%s84]
    %s87 = sshllo.u32 0, 1
    %88 = vst [vmem:[%s1] sm:%s87] %v86

// kernel: tile.18
$region0: #{tile.18}
  #allocation0 [shape = 's32[1]{0}', space=sflag, size = 0x4, scoped, tag = 'scoped memory for tile.18']
  %s0 = inlined_call_operand.vmem [shape: f32[16], index: 0, kind: input, shape index: {}]
  %s1 = inlined_call_operand.vmem [shape: f32[6,16], index: 1, kind: output, shape index: {}]
  // Predicated region
  $region2: #{tile.18} parent=0 // pred_check
    _
  $region3: #{tile.18} parent=0 // pred_check_branch
    %3 = sbr.rel (0) target = $region5
  $region4: #{tile.18} parent=0 // pred_region
    _
  $region5: #{tile.18} parent=0 // pred_fallthru
    _
  %v4 = vld [vmem:[%s0] ss:$0 sm:$0xff]
  %5 = vst [vmem:[%s1] sm:$0xff] %v4

// kernel: tile.19
$region0: #{tile.19}
  %s0 = inlined_call_operand.vmem [shape: f32[6,16], index: 0, kind: input, shape index: {}]
  %s1 = inlined_call_operand.vmem [shape: f32[1,96], index: 1, kind: output, shape index: {}]
  $region1: #{tile.19} parent=0
    #allocation0 [shape = 'u8[4096]{0}', space=vmem, size = 0x1000, scoped, tag = 'scoped mem for output reshape']
    %v2 = vld [vmem:[%s0] sm:$0x1]
    %vm3 = vcmask 130048
    %4 = vst.msk [vmem:[#allocation0] sm:$0x1] %vm3, %v2
    %s5 = scalar_lea.vmem %s0, 5
    %v6 = vld [vmem:[%s5] sm:$0x1]
    %7 = vrot.lane.b32.xlu0 %v6, 80
    %v8 = vpop.permute.xlu0 %7
    %vm9 = vcmask 786048
    %10 = vst.msk [vmem:[#allocation0] sm:$0x1] %vm9, %v8
    %s11 = scalar_lea.vmem %s0, 4
    %v12 = vld [vmem:[%s11] sm:$0x1]
    %13 = vrot.lane.b32.xlu0 %v12, 64
    %v14 = vpop.permute.xlu0 %13
    %vm15 = vcmask 654848
    %16 = vst.msk [vmem:[#allocation0] sm:$0x1] %vm15, %v14
    %s17 = scalar_lea.vmem %s0, 3
    %v18 = vld [vmem:[%s17] sm:$0x1]
    %19 = vrot.lane.b32.xlu0 %v18, 48
    %v20 = vpop.permute.xlu0 %19
    %vm21 = vcmask 523648
    %22 = vst.msk [vmem:[#allocation0] sm:$0x1] %vm21, %v20
    %s23 = scalar_lea.vmem %s0, 2
    %v24 = vld [vmem:[%s23] sm:$0x1]
    %25 = vrot.lane.b32.xlu0 %v24, 32
    %v26 = vpop.permute.xlu0 %25
    %vm27 = vcmask 392448
    %28 = vst.msk [vmem:[#allocation0] sm:$0x1] %vm27, %v26
    %s29 = scalar_lea.vmem %s0, 1
    %v30 = vld [vmem:[%s29] sm:$0x1]
    %31 = vrot.lane.b32.xlu0 %v30, 16
    %v32 = vpop.permute.xlu0 %31
    %vm33 = vcmask 261248
    %34 = vst.msk [vmem:[#allocation0] sm:$0x1] %vm33, %v32
    %s36 = sshllo.u32 0, 1
    %v38 = vld [vmem:[#allocation0] sm:%s36]
    %s39 = sshllo.u32 0, 1
    %40 = vst [vmem:[%s1] sm:%s39] %v38

// kernel: matchpyramid_forward.1
$region0: #{matchpyramid_forward.1}
  #allocation0 [shape = 'u32[]', space=smem, size = 0x4, offset = 0x4, fixed_abs, tag = 'smem constant byte address 0x4 - core index']
  #allocation1 [shape = 'u32[144,128]{1,0:T(1,128)}', space=vmem, size = 0x12000, scoped, tag = 'internal scratch']
  %s0 = inlined_call_operand.vmem [shape: f32[8,16,32], index: 0, kind: input, shape index: {}]
  %s1 = inlined_call_operand.vmem [shape: f32[8,16,32], index: 1, kind: input, shape index: {}]
  %s2 = inlined_call_operand.vmem [shape: f32[16,336], index: 2, kind: input, shape index: {}]
  %s3 = inlined_call_operand.vmem [shape: f32[1,112], index: 3, kind: input, shape index: {}]
  %s4 = inlined_call_operand.vmem [shape: f32[64,288], index: 4, kind: input, shape index: {}]
  %s5 = inlined_call_operand.vmem [shape: f32[1,96], index: 5, kind: input, shape index: {}]
  %s6 = inlined_call_operand.vmem [shape: f32[256,32], index: 6, kind: input, shape index: {}]
  %s7 = inlined_call_operand.vmem [shape: f32[1,32], index: 7, kind: input, shape index: {}]
  %s8 = inlined_call_operand.vmem [shape: f32[2,32], index: 8, kind: input, shape index: {}]
  %s9 = inlined_call_operand.vmem [shape: f32[2,1], index: 9, kind: input, shape index: {}]
  %s10 = inlined_call_operand.vmem [shape: f32[2,8], index: 10, kind: output, shape index: {}]
  %s11 = sld [smem:[#allocation0]]
  $region50: #{matchpyramid_forward.1} parent=0
    _
  %s13 = ssub.s32 1, %s11
  %s14 = scalar_select 0, %s13, %s11
  // Predicated region
  $region2: #{matchpyramid_forward.1} parent=0 // pred_check
    _
  $region3: #{matchpyramid_forward.1} parent=0 // pred_check_branch
    %16 = sbr.rel (0) target = $region5
  $region4: #{matchpyramid_forward.1} parent=0 // pred_region
    _
  $region5: #{matchpyramid_forward.1} parent=0 // pred_fallthru
    _
  // Predicated region
  $region6: #{matchpyramid_forward.1} parent=0 // pred_check
    _
  $region7: #{matchpyramid_forward.1} parent=0 // pred_check_branch
    %18 = sbr.rel (0) target = $region9
  $region8: #{matchpyramid_forward.1} parent=0 // pred_region
    _
  $region9: #{matchpyramid_forward.1} parent=0 // pred_fallthru
    _
  // Predicated region
  $region10: #{matchpyramid_forward.1} parent=0 // pred_check
    _
  $region11: #{matchpyramid_forward.1} parent=0 // pred_check_branch
    %20 = sbr.rel (0) target = $region13
  $region12: #{matchpyramid_forward.1} parent=0 // pred_region
    _
  $region13: #{matchpyramid_forward.1} parent=0 // pred_fallthru
    _
  // Predicated region
  $region14: #{matchpyramid_forward.1} parent=0 // pred_check
    _
  $region15: #{matchpyramid_forward.1} parent=0 // pred_check_branch
    %22 = sbr.rel (0) target = $region17
  $region16: #{matchpyramid_forward.1} parent=0 // pred_region
    _
  $region17: #{matchpyramid_forward.1} parent=0 // pred_fallthru
    _
  // Predicated region
  $region18: #{matchpyramid_forward.1} parent=0 // pred_check
    _
  $region19: #{matchpyramid_forward.1} parent=0 // pred_check_branch
    %24 = sbr.rel (0) target = $region21
  $region20: #{matchpyramid_forward.1} parent=0 // pred_region
    _
  $region21: #{matchpyramid_forward.1} parent=0 // pred_fallthru
    _
  // Predicated region
  $region22: #{matchpyramid_forward.1} parent=0 // pred_check
    _
  $region23: #{matchpyramid_forward.1} parent=0 // pred_check_branch
    %26 = sbr.rel (0) target = $region25
  $region24: #{matchpyramid_forward.1} parent=0 // pred_region
    _
  $region25: #{matchpyramid_forward.1} parent=0 // pred_fallthru
    _
  // Predicated region
  $region26: #{matchpyramid_forward.1} parent=0 // pred_check
    _
  $region27: #{matchpyramid_forward.1} parent=0 // pred_check_branch
    %28 = sbr.rel (0) target = $region29
  $region28: #{matchpyramid_forward.1} parent=0 // pred_region
    _
  $region29: #{matchpyramid_forward.1} parent=0 // pred_fallthru
    _
  // Predicated region
  $region30: #{matchpyramid_forward.1} parent=0 // pred_check
    _
  $region31: #{matchpyramid_forward.1} parent=0 // pred_check_branch
    %30 = sbr.rel (0) target = $region33
  $region32: #{matchpyramid_forward.1} parent=0 // pred_region
    _
  $region33: #{matchpyramid_forward.1} parent=0 // pred_fallthru
    _
  // Predicated region
  $region34: #{matchpyramid_forward.1} parent=0 // pred_check
    _
  $region35: #{matchpyramid_forward.1} parent=0 // pred_check_branch
    %32 = sbr.rel (0) target = $region37
  $region36: #{matchpyramid_forward.1} parent=0 // pred_region
    _
  $region37: #{matchpyramid_forward.1} parent=0 // pred_fallthru
    _
  // Predicated region
  $region38: #{matchpyramid_forward.1} parent=0 // pred_check
    _
  $region39: #{matchpyramid_forward.1} parent=0 // pred_check_branch
    %34 = sbr.rel (0) target = $region41
  $region40: #{matchpyramid_forward.1} parent=0 // pred_region
    _
  $region41: #{matchpyramid_forward.1} parent=0 // pred_fallthru
    _
  %v35 = vld [vmem:[%s0] sm:$0xff]
  %v36 = vld [vmem:[%s0 + $0x8] sm:$0xff]
  %v37 = vld [vmem:[%s0 + $0x10] sm:$0xff]
  %v38 = vld [vmem:[%s0 + $0x18] sm:$0xff]
  %v39 = vld [vmem:[%s0 + $0x20] sm:$0xff]
  %v40 = vld [vmem:[%s0 + $0x28] sm:$0xff]
  %v41 = vld [vmem:[%s0 + $0x30] sm:$0xff]
  %v42 = vld [vmem:[%s0 + $0x38] sm:$0xff]
  %v43 = vld [vmem:[%s0 + $0x40] sm:$0xff]
  %v44 = vld [vmem:[%s0 + $0x48] sm:$0xff]
  %v45 = vld [vmem:[%s0 + $0x50] sm:$0xff]
  %v46 = vld [vmem:[%s0 + $0x58] sm:$0xff]
  %v47 = vld [vmem:[%s0 + $0x60] sm:$0xff]
  %v48 = vld [vmem:[%s0 + $0x68] sm:$0xff]
  %v49 = vld [vmem:[%s0 + $0x70] sm:$0xff]
  %v50 = vld [vmem:[%s0 + $0x78] sm:$0xff]
  %v51 = vld [vmem:[%s1] sm:$0xff]
  %v52 = vld [vmem:[%s1 + $0x8] sm:$0xff]
  %v53 = vld [vmem:[%s1 + $0x10] sm:$0xff]
  %v54 = vld [vmem:[%s1 + $0x18] sm:$0xff]
  %v55 = vld [vmem:[%s1 + $0x20] sm:$0xff]
  %v56 = vld [vmem:[%s1 + $0x28] sm:$0xff]
  %v57 = vld [vmem:[%s1 + $0x30] sm:$0xff]
  %v58 = vld [vmem:[%s1 + $0x38] sm:$0xff]
  %v59 = vld [vmem:[%s1 + $0x40] sm:$0xff]
  %v60 = vld [vmem:[%s1 + $0x48] sm:$0xff]
  %v61 = vld [vmem:[%s1 + $0x50] sm:$0xff]
  %v62 = vld [vmem:[%s1 + $0x58] sm:$0xff]
  %v63 = vld [vmem:[%s1 + $0x60] sm:$0xff]
  %v64 = vld [vmem:[%s1 + $0x68] sm:$0xff]
  %v65 = vld [vmem:[%s1 + $0x70] sm:$0xff]
  %v66 = vld [vmem:[%s1 + $0x78] sm:$0xff]
  %v67 = vmul.f32 %v35, %v35
  %v68 = vmul.f32 %v36, %v36
  %v69 = vmul.f32 %v37, %v37
  %v70 = vmul.f32 %v38, %v38
  %v71 = vmul.f32 %v39, %v39
  %v72 = vmul.f32 %v40, %v40
  %v73 = vmul.f32 %v41, %v41
  %v74 = vmul.f32 %v42, %v42
  %v75 = vmul.f32 %v43, %v43
  %v76 = vmul.f32 %v44, %v44
  %v77 = vmul.f32 %v45, %v45
  %v78 = vmul.f32 %v46, %v46
  %v79 = vmul.f32 %v47, %v47
  %v80 = vmul.f32 %v48, %v48
  %v81 = vmul.f32 %v49, %v49
  %v82 = vmul.f32 %v50, %v50
  %vm83 = vcmask 261120
  %v84 = vsel %vm83, %v67, 0.0
  %85 = vadd.xlane.f32.xlu0 %v84
  %v86 = vpop.xlane.xlu0 %85
  %v87 = vsel %vm83, %v68, 0.0
  %88 = vadd.xlane.f32.xlu0 %v87
  %v89 = vpop.xlane.xlu0 %88
  %v90 = vsel %vm83, %v69, 0.0
  %91 = vadd.xlane.f32.xlu0 %v90
  %v92 = vpop.xlane.xlu0 %91
  %v93 = vsel %vm83, %v70, 0.0
  %94 = vadd.xlane.f32.xlu0 %v93
  %v95 = vpop.xlane.xlu0 %94
  %v96 = vsel %vm83, %v71, 0.0
  %97 = vadd.xlane.f32.xlu0 %v96
  %v98 = vpop.xlane.xlu0 %97
  %v99 = vsel %vm83, %v72, 0.0
  %100 = vadd.xlane.f32.xlu0 %v99
  %v101 = vpop.xlane.xlu0 %100
  %v102 = vsel %vm83, %v73, 0.0
  %103 = vadd.xlane.f32.xlu0 %v102
  %v104 = vpop.xlane.xlu0 %103
  %v105 = vsel %vm83, %v74, 0.0
  %106 = vadd.xlane.f32.xlu0 %v105
  %v107 = vpop.xlane.xlu0 %106
  %v108 = vsel %vm83, %v75, 0.0
  %109 = vadd.xlane.f32.xlu0 %v108
  %v110 = vpop.xlane.xlu0 %109
  %v111 = vsel %vm83, %v76, 0.0
  %112 = vadd.xlane.f32.xlu0 %v111
  %v113 = vpop.xlane.xlu0 %112
  %v114 = vsel %vm83, %v77, 0.0
  %115 = vadd.xlane.f32.xlu0 %v114
  %v116 = vpop.xlane.xlu0 %115
  %v117 = vsel %vm83, %v78, 0.0
  %118 = vadd.xlane.f32.xlu0 %v117
  %v119 = vpop.xlane.xlu0 %118
  %v120 = vsel %vm83, %v79, 0.0
  %121 = vadd.xlane.f32.xlu0 %v120
  %v122 = vpop.xlane.xlu0 %121
  %v123 = vsel %vm83, %v80, 0.0
  %124 = vadd.xlane.f32.xlu0 %v123
  %v125 = vpop.xlane.xlu0 %124
  %v126 = vsel %vm83, %v81, 0.0
  %127 = vadd.xlane.f32.xlu0 %v126
  %v128 = vpop.xlane.xlu0 %127
  %v129 = vsel %vm83, %v82, 0.0
  %130 = vadd.xlane.f32.xlu0 %v129
  %v131 = vpop.xlane.xlu0 %130
  %v132 = vrsqrt.pop %v86
  %v133 = vmul.f32 %v86, %v132
  %vm134 = vcmp.eq.f32.partialorder %v86, inf
  %v135 = vsel %vm134, %v86, %v133
  %vm136 = vcmp.eq.f32.partialorder %v86, 0.0
  %v137 = vand.u32 %v86, 2147483648
  %v138 = vsel %vm136, %v137, %v135
  %v139 = vrsqrt.pop %v89
  %v140 = vmul.f32 %v89, %v139
  %vm141 = vcmp.eq.f32.partialorder %v89, inf
  %v142 = vsel %vm141, %v89, %v140
  %vm143 = vcmp.eq.f32.partialorder %v89, 0.0
  %v144 = vand.u32 %v89, 2147483648
  %v145 = vsel %vm143, %v144, %v142
  %v146 = vrsqrt.pop %v92
  %v147 = vmul.f32 %v92, %v146
  %vm148 = vcmp.eq.f32.partialorder %v92, inf
  %v149 = vsel %vm148, %v92, %v147
  %vm150 = vcmp.eq.f32.partialorder %v92, 0.0
  %v151 = vand.u32 %v92, 2147483648
  %v152 = vsel %vm150, %v151, %v149
  %v153 = vrsqrt.pop %v95
  %v154 = vmul.f32 %v95, %v153
  %vm155 = vcmp.eq.f32.partialorder %v95, inf
  %v156 = vsel %vm155, %v95, %v154
  %vm157 = vcmp.eq.f32.partialorder %v95, 0.0
  %v158 = vand.u32 %v95, 2147483648
  %v159 = vsel %vm157, %v158, %v156
  %v160 = vrsqrt.pop %v98
  %v161 = vmul.f32 %v98, %v160
  %vm162 = vcmp.eq.f32.partialorder %v98, inf
  %v163 = vsel %vm162, %v98, %v161
  %vm164 = vcmp.eq.f32.partialorder %v98, 0.0
  %v165 = vand.u32 %v98, 2147483648
  %v166 = vsel %vm164, %v165, %v163
  %v167 = vrsqrt.pop %v101
  %v168 = vmul.f32 %v101, %v167
  %vm169 = vcmp.eq.f32.partialorder %v101, inf
  %v170 = vsel %vm169, %v101, %v168
  %vm171 = vcmp.eq.f32.partialorder %v101, 0.0
  %v172 = vand.u32 %v101, 2147483648
  %v173 = vsel %vm171, %v172, %v170
  %v174 = vrsqrt.pop %v104
  %v175 = vmul.f32 %v104, %v174
  %vm176 = vcmp.eq.f32.partialorder %v104, inf
  %v177 = vsel %vm176, %v104, %v175
  %vm178 = vcmp.eq.f32.partialorder %v104, 0.0
  %v179 = vand.u32 %v104, 2147483648
  %v180 = vsel %vm178, %v179, %v177
  %v181 = vrsqrt.pop %v107
  %v182 = vmul.f32 %v107, %v181
  %vm183 = vcmp.eq.f32.partialorder %v107, inf
  %v184 = vsel %vm183, %v107, %v182
  %vm185 = vcmp.eq.f32.partialorder %v107, 0.0
  %v186 = vand.u32 %v107, 2147483648
  %v187 = vsel %vm185, %v186, %v184
  %v188 = vrsqrt.pop %v110
  %v189 = vmul.f32 %v110, %v188
  %vm190 = vcmp.eq.f32.partialorder %v110, inf
  %v191 = vsel %vm190, %v110, %v189
  %vm192 = vcmp.eq.f32.partialorder %v110, 0.0
  %v193 = vand.u32 %v110, 2147483648
  %v194 = vsel %vm192, %v193, %v191
  %v195 = vrsqrt.pop %v113
  %v196 = vmul.f32 %v113, %v195
  %vm197 = vcmp.eq.f32.partialorder %v113, inf
  %v198 = vsel %vm197, %v113, %v196
  %vm199 = vcmp.eq.f32.partialorder %v113, 0.0
  %v200 = vand.u32 %v113, 2147483648
  %v201 = vsel %vm199, %v200, %v198
  %v202 = vrsqrt.pop %v116
  %v203 = vmul.f32 %v116, %v202
  %vm204 = vcmp.eq.f32.partialorder %v116, inf
  %v205 = vsel %vm204, %v116, %v203
  %vm206 = vcmp.eq.f32.partialorder %v116, 0.0
  %v207 = vand.u32 %v116, 2147483648
  %v208 = vsel %vm206, %v207, %v205
  %v209 = vrsqrt.pop %v119
  %v210 = vmul.f32 %v119, %v209
  %vm211 = vcmp.eq.f32.partialorder %v119, inf
  %v212 = vsel %vm211, %v119, %v210
  %vm213 = vcmp.eq.f32.partialorder %v119, 0.0
  %v214 = vand.u32 %v119, 2147483648
  %v215 = vsel %vm213, %v214, %v212
  %v216 = vrsqrt.pop %v122
  %v217 = vmul.f32 %v122, %v216
  %vm218 = vcmp.eq.f32.partialorder %v122, inf
  %v219 = vsel %vm218, %v122, %v217
  %vm220 = vcmp.eq.f32.partialorder %v122, 0.0
  %v221 = vand.u32 %v122, 2147483648
  %v222 = vsel %vm220, %v221, %v219
  %v223 = vrsqrt.pop %v125
  %v224 = vmul.f32 %v125, %v223
  %vm225 = vcmp.eq.f32.partialorder %v125, inf
  %v226 = vsel %vm225, %v125, %v224
  %vm227 = vcmp.eq.f32.partialorder %v125, 0.0
  %v228 = vand.u32 %v125, 2147483648
  %v229 = vsel %vm227, %v228, %v226
  %v230 = vrsqrt.pop %v128
  %v231 = vmul.f32 %v128, %v230
  %vm232 = vcmp.eq.f32.partialorder %v128, inf
  %v233 = vsel %vm232, %v128, %v231
  %vm234 = vcmp.eq.f32.partialorder %v128, 0.0
  %v235 = vand.u32 %v128, 2147483648
  %v236 = vsel %vm234, %v235, %v233
  %v237 = vrsqrt.pop %v131
  %v238 = vmul.f32 %v131, %v237
  %vm239 = vcmp.eq.f32.partialorder %v131, inf
  %v240 = vsel %vm239, %v131, %v238
  %vm241 = vcmp.eq.f32.partialorder %v131, 0.0
  %v242 = vand.u32 %v131, 2147483648
  %v243 = vsel %vm241, %v242, %v240
  %v244 = vadd.f32 %v138, 1e-08
  %v245 = vadd.f32 %v145, 1e-08
  %v246 = vadd.f32 %v152, 1e-08
  %v247 = vadd.f32 %v159, 1e-08
  %v248 = vadd.f32 %v166, 1e-08
  %v249 = vadd.f32 %v173, 1e-08
  %v250 = vadd.f32 %v180, 1e-08
  %v251 = vadd.f32 %v187, 1e-08
  %v252 = vadd.f32 %v194, 1e-08
  %v253 = vadd.f32 %v201, 1e-08
  %v254 = vadd.f32 %v208, 1e-08
  %v255 = vadd.f32 %v215, 1e-08
  %v256 = vadd.f32 %v222, 1e-08
  %v257 = vadd.f32 %v229, 1e-08
  %v258 = vadd.f32 %v236, 1e-08
  %v259 = vadd.f32 %v243, 1e-08
  %v260 = vmul.f32 %v51, %v51
  %v261 = vmul.f32 %v52, %v52
  %v262 = vmul.f32 %v53, %v53
  %v263 = vmul.f32 %v54, %v54
  %v264 = vmul.f32 %v55, %v55
  %v265 = vmul.f32 %v56, %v56
  %v266 = vmul.f32 %v57, %v57
  %v267 = vmul.f32 %v58, %v58
  %v268 = vmul.f32 %v59, %v59
  %v269 = vmul.f32 %v60, %v60
  %v270 = vmul.f32 %v61, %v61
  %v271 = vmul.f32 %v62, %v62
  %v272 = vmul.f32 %v63, %v63
  %v273 = vmul.f32 %v64, %v64
  %v274 = vmul.f32 %v65, %v65
  %v275 = vmul.f32 %v66, %v66
  %v276 = vsel %vm83, %v260, 0.0
  %277 = vadd.xlane.f32.xlu0 %v276
  %v278 = vpop.xlane.xlu0 %277
  %v279 = vsel %vm83, %v261, 0.0
  %280 = vadd.xlane.f32.xlu0 %v279
  %v281 = vpop.xlane.xlu0 %280
  %v282 = vsel %vm83, %v262, 0.0
  %283 = vadd.xlane.f32.xlu0 %v282
  %v284 = vpop.xlane.xlu0 %283
  %v285 = vsel %vm83, %v263, 0.0
  %286 = vadd.xlane.f32.xlu0 %v285
  %v287 = vpop.xlane.xlu0 %286
  %v288 = vsel %vm83, %v264, 0.0
  %289 = vadd.xlane.f32.xlu0 %v288
  %v290 = vpop.xlane.xlu0 %289
  %v291 = vsel %vm83, %v265, 0.0
  %292 = vadd.xlane.f32.xlu0 %v291
  %v293 = vpop.xlane.xlu0 %292
  %v294 = vsel %vm83, %v266, 0.0
  %295 = vadd.xlane.f32.xlu0 %v294
  %v296 = vpop.xlane.xlu0 %295
  %v297 = vsel %vm83, %v267, 0.0
  %298 = vadd.xlane.f32.xlu0 %v297
  %v299 = vpop.xlane.xlu0 %298
  %v300 = vsel %vm83, %v268, 0.0
  %301 = vadd.xlane.f32.xlu0 %v300
  %v302 = vpop.xlane.xlu0 %301
  %v303 = vsel %vm83, %v269, 0.0
  %304 = vadd.xlane.f32.xlu0 %v303
  %v305 = vpop.xlane.xlu0 %304
  %v306 = vsel %vm83, %v270, 0.0
  %307 = vadd.xlane.f32.xlu0 %v306
  %v308 = vpop.xlane.xlu0 %307
  %v309 = vsel %vm83, %v271, 0.0
  %310 = vadd.xlane.f32.xlu0 %v309
  %v311 = vpop.xlane.xlu0 %310
  %v312 = vsel %vm83, %v272, 0.0
  %313 = vadd.xlane.f32.xlu0 %v312
  %v314 = vpop.xlane.xlu0 %313
  %v315 = vsel %vm83, %v273, 0.0
  %316 = vadd.xlane.f32.xlu0 %v315
  %v317 = vpop.xlane.xlu0 %316
  %v318 = vsel %vm83, %v274, 0.0
  %319 = vadd.xlane.f32.xlu0 %v318
  %v320 = vpop.xlane.xlu0 %319
  %v321 = vsel %vm83, %v275, 0.0
  %322 = vadd.xlane.f32.xlu0 %v321
  %v323 = vpop.xlane.xlu0 %322
  %v324 = vrsqrt.pop %v278
  %v325 = vmul.f32 %v278, %v324
  %vm326 = vcmp.eq.f32.partialorder %v278, inf
  %v327 = vsel %vm326, %v278, %v325
  %vm328 = vcmp.eq.f32.partialorder %v278, 0.0
  %v329 = vand.u32 %v278, 2147483648
  %v330 = vsel %vm328, %v329, %v327
  %v331 = vrsqrt.pop %v281
  %v332 = vmul.f32 %v281, %v331
  %vm333 = vcmp.eq.f32.partialorder %v281, inf
  %v334 = vsel %vm333, %v281, %v332
  %vm335 = vcmp.eq.f32.partialorder %v281, 0.0
  %v336 = vand.u32 %v281, 2147483648
  %v337 = vsel %vm335, %v336, %v334
  %v338 = vrsqrt.pop %v284
  %v339 = vmul.f32 %v284, %v338
  %vm340 = vcmp.eq.f32.partialorder %v284, inf
  %v341 = vsel %vm340, %v284, %v339
  %vm342 = vcmp.eq.f32.partialorder %v284, 0.0
  %v343 = vand.u32 %v284, 2147483648
  %v344 = vsel %vm342, %v343, %v341
  %v345 = vrsqrt.pop %v287
  %v346 = vmul.f32 %v287, %v345
  %vm347 = vcmp.eq.f32.partialorder %v287, inf
  %v348 = vsel %vm347, %v287, %v346
  %vm349 = vcmp.eq.f32.partialorder %v287, 0.0
  %v350 = vand.u32 %v287, 2147483648
  %v351 = vsel %vm349, %v350, %v348
  %v352 = vrsqrt.pop %v290
  %v353 = vmul.f32 %v290, %v352
  %vm354 = vcmp.eq.f32.partialorder %v290, inf
  %v355 = vsel %vm354, %v290, %v353
  %vm356 = vcmp.eq.f32.partialorder %v290, 0.0
  %v357 = vand.u32 %v290, 2147483648
  %v358 = vsel %vm356, %v357, %v355
  %v359 = vrsqrt.pop %v293
  %v360 = vmul.f32 %v293, %v359
  %vm361 = vcmp.eq.f32.partialorder %v293, inf
  %v362 = vsel %vm361, %v293, %v360
  %vm363 = vcmp.eq.f32.partialorder %v293, 0.0
  %v364 = vand.u32 %v293, 2147483648
  %v365 = vsel %vm363, %v364, %v362
  %v366 = vrsqrt.pop %v296
  %v367 = vmul.f32 %v296, %v366
  %vm368 = vcmp.eq.f32.partialorder %v296, inf
  %v369 = vsel %vm368, %v296, %v367
  %vm370 = vcmp.eq.f32.partialorder %v296, 0.0
  %v371 = vand.u32 %v296, 2147483648
  %v372 = vsel %vm370, %v371, %v369
  %v373 = vrsqrt.pop %v299
  %v374 = vmul.f32 %v299, %v373
  %vm375 = vcmp.eq.f32.partialorder %v299, inf
  %v376 = vsel %vm375, %v299, %v374
  %vm377 = vcmp.eq.f32.partialorder %v299, 0.0
  %v378 = vand.u32 %v299, 2147483648
  %v379 = vsel %vm377, %v378, %v376
  %v380 = vrsqrt.pop %v302
  %v381 = vmul.f32 %v302, %v380
  %vm382 = vcmp.eq.f32.partialorder %v302, inf
  %v383 = vsel %vm382, %v302, %v381
  %vm384 = vcmp.eq.f32.partialorder %v302, 0.0
  %v385 = vand.u32 %v302, 2147483648
  %v386 = vsel %vm384, %v385, %v383
  %v387 = vrsqrt.pop %v305
  %v388 = vmul.f32 %v305, %v387
  %vm389 = vcmp.eq.f32.partialorder %v305, inf
  %v390 = vsel %vm389, %v305, %v388
  %vm391 = vcmp.eq.f32.partialorder %v305, 0.0
  %v392 = vand.u32 %v305, 2147483648
  %v393 = vsel %vm391, %v392, %v390
  %v394 = vrsqrt.pop %v308
  %v395 = vmul.f32 %v308, %v394
  %vm396 = vcmp.eq.f32.partialorder %v308, inf
  %v397 = vsel %vm396, %v308, %v395
  %vm398 = vcmp.eq.f32.partialorder %v308, 0.0
  %v399 = vand.u32 %v308, 2147483648
  %v400 = vsel %vm398, %v399, %v397
  %v401 = vrsqrt.pop %v311
  %v402 = vmul.f32 %v311, %v401
  %vm403 = vcmp.eq.f32.partialorder %v311, inf
  %v404 = vsel %vm403, %v311, %v402
  %vm405 = vcmp.eq.f32.partialorder %v311, 0.0
  %v406 = vand.u32 %v311, 2147483648
  %v407 = vsel %vm405, %v406, %v404
  %v408 = vrsqrt.pop %v314
  %v409 = vmul.f32 %v314, %v408
  %vm410 = vcmp.eq.f32.partialorder %v314, inf
  %v411 = vsel %vm410, %v314, %v409
  %vm412 = vcmp.eq.f32.partialorder %v314, 0.0
  %v413 = vand.u32 %v314, 2147483648
  %v414 = vsel %vm412, %v413, %v411
  %v415 = vrsqrt.pop %v317
  %v416 = vmul.f32 %v317, %v415
  %vm417 = vcmp.eq.f32.partialorder %v317, inf
  %v418 = vsel %vm417, %v317, %v416
  %vm419 = vcmp.eq.f32.partialorder %v317, 0.0
  %v420 = vand.u32 %v317, 2147483648
  %v421 = vsel %vm419, %v420, %v418
  %v422 = vrsqrt.pop %v320
  %v423 = vmul.f32 %v320, %v422
  %vm424 = vcmp.eq.f32.partialorder %v320, inf
  %v425 = vsel %vm424, %v320, %v423
  %vm426 = vcmp.eq.f32.partialorder %v320, 0.0
  %v427 = vand.u32 %v320, 2147483648
  %v428 = vsel %vm426, %v427, %v425
  %v429 = vrsqrt.pop %v323
  %v430 = vmul.f32 %v323, %v429
  %vm431 = vcmp.eq.f32.partialorder %v323, inf
  %v432 = vsel %vm431, %v323, %v430
  %vm433 = vcmp.eq.f32.partialorder %v323, 0.0
  %v434 = vand.u32 %v323, 2147483648
  %v435 = vsel %vm433, %v434, %v432
  %v436 = vadd.f32 %v330, 1e-08
  %v437 = vadd.f32 %v337, 1e-08
  %v438 = vadd.f32 %v344, 1e-08
  %v439 = vadd.f32 %v351, 1e-08
  %v440 = vadd.f32 %v358, 1e-08
  %v441 = vadd.f32 %v365, 1e-08
  %v442 = vadd.f32 %v372, 1e-08
  %v443 = vadd.f32 %v379, 1e-08
  %v444 = vadd.f32 %v386, 1e-08
  %v445 = vadd.f32 %v393, 1e-08
  %v446 = vadd.f32 %v400, 1e-08
  %v447 = vadd.f32 %v407, 1e-08
  %v448 = vadd.f32 %v414, 1e-08
  %v449 = vadd.f32 %v421, 1e-08
  %v450 = vadd.f32 %v428, 1e-08
  %v451 = vadd.f32 %v435, 1e-08
  %v452 = vrcp.pop %v244
  %v453 = vmul.f32 %v35, %v452
  %v454 = vrcp.pop %v245
  %v455 = vmul.f32 %v36, %v454
  %v456 = vrcp.pop %v246
  %v457 = vmul.f32 %v37, %v456
  %v458 = vrcp.pop %v247
  %v459 = vmul.f32 %v38, %v458
  %v460 = vrcp.pop %v248
  %v461 = vmul.f32 %v39, %v460
  %v462 = vrcp.pop %v249
  %v463 = vmul.f32 %v40, %v462
  %v464 = vrcp.pop %v250
  %v465 = vmul.f32 %v41, %v464
  %v466 = vrcp.pop %v251
  %v467 = vmul.f32 %v42, %v466
  %v468 = vrcp.pop %v252
  %v469 = vmul.f32 %v43, %v468
  %v470 = vrcp.pop %v253
  %v471 = vmul.f32 %v44, %v470
  %v472 = vrcp.pop %v254
  %v473 = vmul.f32 %v45, %v472
  %v474 = vrcp.pop %v255
  %v475 = vmul.f32 %v46, %v474
  %v476 = vrcp.pop %v256
  %v477 = vmul.f32 %v47, %v476
  %v478 = vrcp.pop %v257
  %v479 = vmul.f32 %v48, %v478
  %v480 = vrcp.pop %v258
  %v481 = vmul.f32 %v49, %v480
  %v482 = vrcp.pop %v259
  %v483 = vmul.f32 %v50, %v482
  %v484 = vrcp.pop %v436
  %v485 = vmul.f32 %v51, %v484
  %v486 = vrcp.pop %v437
  %v487 = vmul.f32 %v52, %v486
  %v488 = vrcp.pop %v438
  %v489 = vmul.f32 %v53, %v488
  %v490 = vrcp.pop %v439
  %v491 = vmul.f32 %v54, %v490
  %v492 = vrcp.pop %v440
  %v493 = vmul.f32 %v55, %v492
  %v494 = vrcp.pop %v441
  %v495 = vmul.f32 %v56, %v494
  %v496 = vrcp.pop %v442
  %v497 = vmul.f32 %v57, %v496
  %v498 = vrcp.pop %v443
  %v499 = vmul.f32 %v58, %v498
  %v500 = vrcp.pop %v444
  %v501 = vmul.f32 %v59, %v500
  %v502 = vrcp.pop %v445
  %v503 = vmul.f32 %v60, %v502
  %v504 = vrcp.pop %v446
  %v505 = vmul.f32 %v61, %v504
  %v506 = vrcp.pop %v447
  %v507 = vmul.f32 %v62, %v506
  %v508 = vrcp.pop %v448
  %v509 = vmul.f32 %v63, %v508
  %v510 = vrcp.pop %v449
  %v511 = vmul.f32 %v64, %v510
  %v512 = vrcp.pop %v450
  %v513 = vmul.f32 %v65, %v512
  %v514 = vrcp.pop %v451
  %v515 = vmul.f32 %v66, %v514
  %v517 = vsel %vm83, %v453, 0
  %v520 = vsel %vm83, %v455, 0
  %v523 = vsel %vm83, %v485, 0
  %v526 = vsel %vm83, %v487, 0
  %528 = vmatprep.subr.mxu0 0.0
  %529 = vmatpush1.xpose.msra.mxu0 %v523
  %530 = vmatprep.subr.mxu0 0.0
  %531 = vmatpush1.xpose.msra.mxu0 %v526
  %532 = vmatprep.subr.mxu0 0.0
  %533 = vmatpush1.xpose.msra.mxu0 0.0
  %534 = vmatprep.subr.mxu0 0.0
  %535 = vmatpush1.xpose.msra.mxu0 0.0
  %536 = vmatprep.subr.mxu0 0.0
  %537 = vmatpush1.xpose.msra.mxu0 0.0
  %538 = vmatprep.subr.mxu0 0.0
  %539 = vmatpush1.xpose.msra.mxu0 0.0
  %540 = vmatprep.subr.mxu0 0.0
  %541 = vmatpush1.xpose.msra.mxu0 0.0
  %542 = vmatprep.subr.mxu0 0.0
  %543 = vmatpush1.xpose.msra.mxu0 0.0
  %544 = vmatprep.subr.mxu0 0.0
  %545 = vmatpush1.xpose.msra.mxu0 0.0
  %546 = vmatprep.subr.mxu0 0.0
  %547 = vmatpush1.xpose.msra.mxu0 0.0
  %548 = vmatprep.subr.mxu0 0.0
  %549 = vmatpush1.xpose.msra.mxu0 0.0
  %550 = vmatprep.subr.mxu0 0.0
  %551 = vmatpush1.xpose.msra.mxu0 0.0
  %552 = vmatprep.subr.mxu0 0.0
  %553 = vmatpush1.xpose.msra.mxu0 0.0
  %554 = vmatprep.subr.mxu0 0.0
  %555 = vmatpush1.xpose.msra.mxu0 0.0
  %556 = vmatprep.subr.mxu0 0.0
  %557 = vmatpush1.xpose.msra.mxu0 0.0
  %558 = vmatprep.subr.mxu0 0.0
  %559 = vmatpush1.xpose.msra.mxu0 0.0
  %560 = vmatprep.subr.mxu0 0.0
  %561 = vmatpush1.xpose.msra.mxu0 0.0
  %562 = vmatprep.subr.mxu0 0.0
  %563 = vmatpush1.xpose.msra.mxu0 0.0
  %564 = vmatprep.subr.mxu0 0.0
  %565 = vmatpush1.xpose.msra.mxu0 0.0
  %566 = vmatprep.subr.mxu0 0.0
  %567 = vmatpush1.xpose.msra.mxu0 0.0
  %568 = vmatprep.subr.mxu0 0.0
  %569 = vmatpush1.xpose.msra.mxu0 0.0
  %570 = vmatprep.subr.mxu0 0.0
  %571 = vmatpush1.xpose.msra.mxu0 0.0
  %572 = vmatprep.subr.mxu0 0.0
  %573 = vmatpush1.xpose.msra.mxu0 0.0
  %574 = vmatprep.subr.mxu0 0.0
  %575 = vmatpush1.xpose.msra.mxu0 0.0
  %576 = vmatprep.subr.mxu0 0.0
  %577 = vmatpush1.xpose.msra.mxu0 0.0
  %578 = vmatprep.subr.mxu0 0.0
  %579 = vmatpush1.xpose.msra.mxu0 0.0
  %580 = vmatprep.subr.mxu0 0.0
  %581 = vmatpush1.xpose.msra.mxu0 0.0
  %582 = vmatprep.subr.mxu0 0.0
  %583 = vmatpush1.xpose.msra.mxu0 0.0
  %584 = vmatprep.subr.mxu0 0.0
  %585 = vmatpush1.xpose.msra.mxu0 0.0
  %586 = vmatprep.subr.mxu0 0.0
  %587 = vmatpush1.xpose.msra.mxu0 0.0
  %588 = vmatprep.subr.mxu0 0.0
  %589 = vmatpush1.xpose.msra.mxu0 0.0
  %590 = vmatprep.subr.mxu0 0.0
  %591 = vmatpush1.xpose.msra.mxu0 0.0
  %592 = vmatprep.mubr.f32.mxu0 0.0
  %593 = vmatmul.mubr.f32.gmra.mrb[0].mxu0 %v517
  %v594 = vpop.f32.mrb[0].mxu0
  %v595 = vadd.f32 0.0, %v594
  %v596 = vpop.f32.mrb[0].mxu0
  %597 = vmatprep.mubr.f32.mxu0 0.0
  %598 = vmatmul.mubr.f32.gmra.mrb[0].mxu0 %v520
  %v599 = vpop.f32.mrb[0].mxu0
  %v600 = vadd.f32 0.0, %v599
  %v601 = vpop.f32.mrb[0].mxu0
  %602 = vdwg.mxu0
  %v604 = vsel %vm83, %v457, 0
  %v607 = vsel %vm83, %v459, 0
  %v610 = vsel %vm83, %v489, 0
  %v613 = vsel %vm83, %v491, 0
  %615 = vmatprep.subr.mxu0 0.0
  %616 = vmatpush1.xpose.msra.mxu0 %v610
  %617 = vmatprep.subr.mxu0 0.0
  %618 = vmatpush1.xpose.msra.mxu0 %v613
  %619 = vmatprep.subr.mxu0 0.0
  %620 = vmatpush1.xpose.msra.mxu0 0.0
  %621 = vmatprep.subr.mxu0 0.0
  %622 = vmatpush1.xpose.msra.mxu0 0.0
  %623 = vmatprep.subr.mxu0 0.0
  %624 = vmatpush1.xpose.msra.mxu0 0.0
  %625 = vmatprep.subr.mxu0 0.0
  %626 = vmatpush1.xpose.msra.mxu0 0.0
  %627 = vmatprep.subr.mxu0 0.0
  %628 = vmatpush1.xpose.msra.mxu0 0.0
  %629 = vmatprep.subr.mxu0 0.0
  %630 = vmatpush1.xpose.msra.mxu0 0.0
  %631 = vmatprep.subr.mxu0 0.0
  %632 = vmatpush1.xpose.msra.mxu0 0.0
  %633 = vmatprep.subr.mxu0 0.0
  %634 = vmatpush1.xpose.msra.mxu0 0.0
  %635 = vmatprep.subr.mxu0 0.0
  %636 = vmatpush1.xpose.msra.mxu0 0.0
  %637 = vmatprep.subr.mxu0 0.0
  %638 = vmatpush1.xpose.msra.mxu0 0.0
  %639 = vmatprep.subr.mxu0 0.0
  %640 = vmatpush1.xpose.msra.mxu0 0.0
  %641 = vmatprep.subr.mxu0 0.0
  %642 = vmatpush1.xpose.msra.mxu0 0.0
  %643 = vmatprep.subr.mxu0 0.0
  %644 = vmatpush1.xpose.msra.mxu0 0.0
  %645 = vmatprep.subr.mxu0 0.0
  %646 = vmatpush1.xpose.msra.mxu0 0.0
  %647 = vmatprep.subr.mxu0 0.0
  %648 = vmatpush1.xpose.msra.mxu0 0.0
  %649 = vmatprep.subr.mxu0 0.0
  %650 = vmatpush1.xpose.msra.mxu0 0.0
  %651 = vmatprep.subr.mxu0 0.0
  %652 = vmatpush1.xpose.msra.mxu0 0.0
  %653 = vmatprep.subr.mxu0 0.0
  %654 = vmatpush1.xpose.msra.mxu0 0.0
  %655 = vmatprep.subr.mxu0 0.0
  %656 = vmatpush1.xpose.msra.mxu0 0.0
  %657 = vmatprep.subr.mxu0 0.0
  %658 = vmatpush1.xpose.msra.mxu0 0.0
  %659 = vmatprep.subr.mxu0 0.0
  %660 = vmatpush1.xpose.msra.mxu0 0.0
  %661 = vmatprep.subr.mxu0 0.0
  %662 = vmatpush1.xpose.msra.mxu0 0.0
  %663 = vmatprep.subr.mxu0 0.0
  %664 = vmatpush1.xpose.msra.mxu0 0.0
  %665 = vmatprep.subr.mxu0 0.0
  %666 = vmatpush1.xpose.msra.mxu0 0.0
  %667 = vmatprep.subr.mxu0 0.0
  %668 = vmatpush1.xpose.msra.mxu0 0.0
  %669 = vmatprep.subr.mxu0 0.0
  %670 = vmatpush1.xpose.msra.mxu0 0.0
  %671 = vmatprep.subr.mxu0 0.0
  %672 = vmatpush1.xpose.msra.mxu0 0.0
  %673 = vmatprep.subr.mxu0 0.0
  %674 = vmatpush1.xpose.msra.mxu0 0.0
  %675 = vmatprep.subr.mxu0 0.0
  %676 = vmatpush1.xpose.msra.mxu0 0.0
  %677 = vmatprep.subr.mxu0 0.0
  %678 = vmatpush1.xpose.msra.mxu0 0.0
  %679 = vmatprep.mubr.f32.mxu0 0.0
  %680 = vmatmul.mubr.f32.gmra.mrb[0].mxu0 %v604
  %v681 = vpop.f32.mrb[0].mxu0
  %v682 = vadd.f32 0.0, %v681
  %v683 = vpop.f32.mrb[0].mxu0
  %684 = vmatprep.mubr.f32.mxu0 0.0
  %685 = vmatmul.mubr.f32.gmra.mrb[0].mxu0 %v607
  %v686 = vpop.f32.mrb[0].mxu0
  %v687 = vadd.f32 0.0, %v686
  %v688 = vpop.f32.mrb[0].mxu0
  %689 = vdwg.mxu0
  %v691 = vsel %vm83, %v461, 0
  %v694 = vsel %vm83, %v463, 0
  %v697 = vsel %vm83, %v493, 0
  %v700 = vsel %vm83, %v495, 0
  %702 = vmatprep.subr.mxu0 0.0
  %703 = vmatpush1.xpose.msra.mxu0 %v697
  %704 = vmatprep.subr.mxu0 0.0
  %705 = vmatpush1.xpose.msra.mxu0 %v700
  %706 = vmatprep.subr.mxu0 0.0
  %707 = vmatpush1.xpose.msra.mxu0 0.0
  %708 = vmatprep.subr.mxu0 0.0
  %709 = vmatpush1.xpose.msra.mxu0 0.0
  %710 = vmatprep.subr.mxu0 0.0
  %711 = vmatpush1.xpose.msra.mxu0 0.0
  %712 = vmatprep.subr.mxu0 0.0
  %713 = vmatpush1.xpose.msra.mxu0 0.0
  %714 = vmatprep.subr.mxu0 0.0
  %715 = vmatpush1.xpose.msra.mxu0 0.0
  %716 = vmatprep.subr.mxu0 0.0
  %717 = vmatpush1.xpose.msra.mxu0 0.0
  %718 = vmatprep.subr.mxu0 0.0
  %719 = vmatpush1.xpose.msra.mxu0 0.0
  %720 = vmatprep.subr.mxu0 0.0
  %721 = vmatpush1.xpose.msra.mxu0 0.0
  %722 = vmatprep.subr.mxu0 0.0
  %723 = vmatpush1.xpose.msra.mxu0 0.0
  %724 = vmatprep.subr.mxu0 0.0
  %725 = vmatpush1.xpose.msra.mxu0 0.0
  %726 = vmatprep.subr.mxu0 0.0
  %727 = vmatpush1.xpose.msra.mxu0 0.0
  %728 = vmatprep.subr.mxu0 0.0
  %729 = vmatpush1.xpose.msra.mxu0 0.0
  %730 = vmatprep.subr.mxu0 0.0
  %731 = vmatpush1.xpose.msra.mxu0 0.0
  %732 = vmatprep.subr.mxu0 0.0
  %733 = vmatpush1.xpose.msra.mxu0 0.0
  %734 = vmatprep.subr.mxu0 0.0
  %735 = vmatpush1.xpose.msra.mxu0 0.0
  %736 = vmatprep.subr.mxu0 0.0
  %737 = vmatpush1.xpose.msra.mxu0 0.0
  %738 = vmatprep.subr.mxu0 0.0
  %739 = vmatpush1.xpose.msra.mxu0 0.0
  %740 = vmatprep.subr.mxu0 0.0
  %741 = vmatpush1.xpose.msra.mxu0 0.0
  %742 = vmatprep.subr.mxu0 0.0
  %743 = vmatpush1.xpose.msra.mxu0 0.0
  %744 = vmatprep.subr.mxu0 0.0
  %745 = vmatpush1.xpose.msra.mxu0 0.0
  %746 = vmatprep.subr.mxu0 0.0
  %747 = vmatpush1.xpose.msra.mxu0 0.0
  %748 = vmatprep.subr.mxu0 0.0
  %749 = vmatpush1.xpose.msra.mxu0 0.0
  %750 = vmatprep.subr.mxu0 0.0
  %751 = vmatpush1.xpose.msra.mxu0 0.0
  %752 = vmatprep.subr.mxu0 0.0
  %753 = vmatpush1.xpose.msra.mxu0 0.0
  %754 = vmatprep.subr.mxu0 0.0
  %755 = vmatpush1.xpose.msra.mxu0 0.0
  %756 = vmatprep.subr.mxu0 0.0
  %757 = vmatpush1.xpose.msra.mxu0 0.0
  %758 = vmatprep.subr.mxu0 0.0
  %759 = vmatpush1.xpose.msra.mxu0 0.0
  %760 = vmatprep.subr.mxu0 0.0
  %761 = vmatpush1.xpose.msra.mxu0 0.0
  %762 = vmatprep.subr.mxu0 0.0
  %763 = vmatpush1.xpose.msra.mxu0 0.0
  %764 = vmatprep.subr.mxu0 0.0
  %765 = vmatpush1.xpose.msra.mxu0 0.0
  %766 = vmatprep.mubr.f32.mxu0 0.0
  %767 = vmatmul.mubr.f32.gmra.mrb[0].mxu0 %v691
  %v768 = vpop.f32.mrb[0].mxu0
  %v769 = vadd.f32 0.0, %v768
  %v770 = vpop.f32.mrb[0].mxu0
  %771 = vmatprep.mubr.f32.mxu0 0.0
  %772 = vmatmul.mubr.f32.gmra.mrb[0].mxu0 %v694
  %v773 = vpop.f32.mrb[0].mxu0
  %v774 = vadd.f32 0.0, %v773
  %v775 = vpop.f32.mrb[0].mxu0
  %776 = vdwg.mxu0
  %v778 = vsel %vm83, %v465, 0
  %v781 = vsel %vm83, %v467, 0
  %v784 = vsel %vm83, %v497, 0
  %v787 = vsel %vm83, %v499, 0
  %789 = vmatprep.subr.mxu0 0.0
  %790 = vmatpush1.xpose.msra.mxu0 %v784
  %791 = vmatprep.subr.mxu0 0.0
  %792 = vmatpush1.xpose.msra.mxu0 %v787
  %793 = vmatprep.subr.mxu0 0.0
  %794 = vmatpush1.xpose.msra.mxu0 0.0
  %795 = vmatprep.subr.mxu0 0.0
  %796 = vmatpush1.xpose.msra.mxu0 0.0
  %797 = vmatprep.subr.mxu0 0.0
  %798 = vmatpush1.xpose.msra.mxu0 0.0
  %799 = vmatprep.subr.mxu0 0.0
  %800 = vmatpush1.xpose.msra.mxu0 0.0
  %801 = vmatprep.subr.mxu0 0.0
  %802 = vmatpush1.xpose.msra.mxu0 0.0
  %803 = vmatprep.subr.mxu0 0.0
  %804 = vmatpush1.xpose.msra.mxu0 0.0
  %805 = vmatprep.subr.mxu0 0.0
  %806 = vmatpush1.xpose.msra.mxu0 0.0
  %807 = vmatprep.subr.mxu0 0.0
  %808 = vmatpush1.xpose.msra.mxu0 0.0
  %809 = vmatprep.subr.mxu0 0.0
  %810 = vmatpush1.xpose.msra.mxu0 0.0
  %811 = vmatprep.subr.mxu0 0.0
  %812 = vmatpush1.xpose.msra.mxu0 0.0
  %813 = vmatprep.subr.mxu0 0.0
  %814 = vmatpush1.xpose.msra.mxu0 0.0
  %815 = vmatprep.subr.mxu0 0.0
  %816 = vmatpush1.xpose.msra.mxu0 0.0
  %817 = vmatprep.subr.mxu0 0.0
  %818 = vmatpush1.xpose.msra.mxu0 0.0
  %819 = vmatprep.subr.mxu0 0.0
  %820 = vmatpush1.xpose.msra.mxu0 0.0
  %821 = vmatprep.subr.mxu0 0.0
  %822 = vmatpush1.xpose.msra.mxu0 0.0
  %823 = vmatprep.subr.mxu0 0.0
  %824 = vmatpush1.xpose.msra.mxu0 0.0
  %825 = vmatprep.subr.mxu0 0.0
  %826 = vmatpush1.xpose.msra.mxu0 0.0
  %827 = vmatprep.subr.mxu0 0.0
  %828 = vmatpush1.xpose.msra.mxu0 0.0
  %829 = vmatprep.subr.mxu0 0.0
  %830 = vmatpush1.xpose.msra.mxu0 0.0
  %831 = vmatprep.subr.mxu0 0.0
  %832 = vmatpush1.xpose.msra.mxu0 0.0
  %833 = vmatprep.subr.mxu0 0.0
  %834 = vmatpush1.xpose.msra.mxu0 0.0
  %835 = vmatprep.subr.mxu0 0.0
  %836 = vmatpush1.xpose.msra.mxu0 0.0
  %837 = vmatprep.subr.mxu0 0.0
  %838 = vmatpush1.xpose.msra.mxu0 0.0
  %839 = vmatprep.subr.mxu0 0.0
  %840 = vmatpush1.xpose.msra.mxu0 0.0
  %841 = vmatprep.subr.mxu0 0.0
  %842 = vmatpush1.xpose.msra.mxu0 0.0
  %843 = vmatprep.subr.mxu0 0.0
  %844 = vmatpush1.xpose.msra.mxu0 0.0
  %845 = vmatprep.subr.mxu0 0.0
  %846 = vmatpush1.xpose.msra.mxu0 0.0
  %847 = vmatprep.subr.mxu0 0.0
  %848 = vmatpush1.xpose.msra.mxu0 0.0
  %849 = vmatprep.subr.mxu0 0.0
  %850 = vmatpush1.xpose.msra.mxu0 0.0
  %851 = vmatprep.subr.mxu0 0.0
  %852 = vmatpush1.xpose.msra.mxu0 0.0
  %853 = vmatprep.mubr.f32.mxu0 0.0
  %854 = vmatmul.mubr.f32.gmra.mrb[0].mxu0 %v778
  %v855 = vpop.f32.mrb[0].mxu0
  %v856 = vadd.f32 0.0, %v855
  %v857 = vpop.f32.mrb[0].mxu0
  %858 = vmatprep.mubr.f32.mxu0 0.0
  %859 = vmatmul.mubr.f32.gmra.mrb[0].mxu0 %v781
  %v860 = vpop.f32.mrb[0].mxu0
  %v861 = vadd.f32 0.0, %v860
  %v862 = vpop.f32.mrb[0].mxu0
  %863 = vdwg.mxu0
  %v865 = vsel %vm83, %v469, 0
  %v868 = vsel %vm83, %v471, 0
  %v871 = vsel %vm83, %v501, 0
  %v874 = vsel %vm83, %v503, 0
  %876 = vmatprep.subr.mxu0 0.0
  %877 = vmatpush1.xpose.msra.mxu0 %v871
  %878 = vmatprep.subr.mxu0 0.0
  %879 = vmatpush1.xpose.msra.mxu0 %v874
  %880 = vmatprep.subr.mxu0 0.0
  %881 = vmatpush1.xpose.msra.mxu0 0.0
  %882 = vmatprep.subr.mxu0 0.0
  %883 = vmatpush1.xpose.msra.mxu0 0.0
  %884 = vmatprep.subr.mxu0 0.0
  %885 = vmatpush1.xpose.msra.mxu0 0.0
  %886 = vmatprep.subr.mxu0 0.0
  %887 = vmatpush1.xpose.msra.mxu0 0.0
  %888 = vmatprep.subr.mxu0 0.0
  %889 = vmatpush1.xpose.msra.mxu0 0.0
  %890 = vmatprep.subr.mxu0 0.0
  %891 = vmatpush1.xpose.msra.mxu0 0.0
  %892 = vmatprep.subr.mxu0 0.0
  %893 = vmatpush1.xpose.msra.mxu0 0.0
  %894 = vmatprep.subr.mxu0 0.0
  %895 = vmatpush1.xpose.msra.mxu0 0.0
  %896 = vmatprep.subr.mxu0 0.0
  %897 = vmatpush1.xpose.msra.mxu0 0.0
  %898 = vmatprep.subr.mxu0 0.0
  %899 = vmatpush1.xpose.msra.mxu0 0.0
  %900 = vmatprep.subr.mxu0 0.0
  %901 = vmatpush1.xpose.msra.mxu0 0.0
  %902 = vmatprep.subr.mxu0 0.0
  %903 = vmatpush1.xpose.msra.mxu0 0.0
  %904 = vmatprep.subr.mxu0 0.0
  %905 = vmatpush1.xpose.msra.mxu0 0.0
  %906 = vmatprep.subr.mxu0 0.0
  %907 = vmatpush1.xpose.msra.mxu0 0.0
  %908 = vmatprep.subr.mxu0 0.0
  %909 = vmatpush1.xpose.msra.mxu0 0.0
  %910 = vmatprep.subr.mxu0 0.0
  %911 = vmatpush1.xpose.msra.mxu0 0.0
  %912 = vmatprep.subr.mxu0 0.0
  %913 = vmatpush1.xpose.msra.mxu0 0.0
  %914 = vmatprep.subr.mxu0 0.0
  %915 = vmatpush1.xpose.msra.mxu0 0.0
  %916 = vmatprep.subr.mxu0 0.0
  %917 = vmatpush1.xpose.msra.mxu0 0.0
  %918 = vmatprep.subr.mxu0 0.0
  %919 = vmatpush1.xpose.msra.mxu0 0.0
  %920 = vmatprep.subr.mxu0 0.0
  %921 = vmatpush1.xpose.msra.mxu0 0.0
  %922 = vmatprep.subr.mxu0 0.0
  %923 = vmatpush1.xpose.msra.mxu0 0.0
  %924 = vmatprep.subr.mxu0 0.0
  %925 = vmatpush1.xpose.msra.mxu0 0.0
  %926 = vmatprep.subr.mxu0 0.0
  %927 = vmatpush1.xpose.msra.mxu0 0.0
  %928 = vmatprep.subr.mxu0 0.0
  %929 = vmatpush1.xpose.msra.mxu0 0.0
  %930 = vmatprep.subr.mxu0 0.0
  %931 = vmatpush1.xpose.msra.mxu0 0.0
  %932 = vmatprep.subr.mxu0 0.0
  %933 = vmatpush1.xpose.msra.mxu0 0.0
  %934 = vmatprep.subr.mxu0 0.0
  %935 = vmatpush1.xpose.msra.mxu0 0.0
  %936 = vmatprep.subr.mxu0 0.0
  %937 = vmatpush1.xpose.msra.mxu0 0.0
  %938 = vmatprep.subr.mxu0 0.0
  %939 = vmatpush1.xpose.msra.mxu0 0.0
  %940 = vmatprep.mubr.f32.mxu0 0.0
  %941 = vmatmul.mubr.f32.gmra.mrb[0].mxu0 %v865
  %v942 = vpop.f32.mrb[0].mxu0
  %v943 = vadd.f32 0.0, %v942
  %v944 = vpop.f32.mrb[0].mxu0
  %945 = vmatprep.mubr.f32.mxu0 0.0
  %946 = vmatmul.mubr.f32.gmra.mrb[0].mxu0 %v868
  %v947 = vpop.f32.mrb[0].mxu0
  %v948 = vadd.f32 0.0, %v947
  %v949 = vpop.f32.mrb[0].mxu0
  %950 = vdwg.mxu0
  %v952 = vsel %vm83, %v473, 0
  %v955 = vsel %vm83, %v475, 0
  %v958 = vsel %vm83, %v505, 0
  %v961 = vsel %vm83, %v507, 0
  %963 = vmatprep.subr.mxu0 0.0
  %964 = vmatpush1.xpose.msra.mxu0 %v958
  %965 = vmatprep.subr.mxu0 0.0
  %966 = vmatpush1.xpose.msra.mxu0 %v961
  %967 = vmatprep.subr.mxu0 0.0
  %968 = vmatpush1.xpose.msra.mxu0 0.0
  %969 = vmatprep.subr.mxu0 0.0
  %970 = vmatpush1.xpose.msra.mxu0 0.0
  %971 = vmatprep.subr.mxu0 0.0
  %972 = vmatpush1.xpose.msra.mxu0 0.0
  %973 = vmatprep.subr.mxu0 0.0
  %974 = vmatpush1.xpose.msra.mxu0 0.0
  %975 = vmatprep.subr.mxu0 0.0
  %976 = vmatpush1.xpose.msra.mxu0 0.0
  %977 = vmatprep.subr.mxu0 0.0
  %978 = vmatpush1.xpose.msra.mxu0 0.0
  %979 = vmatprep.subr.mxu0 0.0
  %980 = vmatpush1.xpose.msra.mxu0 0.0
  %981 = vmatprep.subr.mxu0 0.0
  %982 = vmatpush1.xpose.msra.mxu0 0.0
  %983 = vmatprep.subr.mxu0 0.0
  %984 = vmatpush1.xpose.msra.mxu0 0.0
  %985 = vmatprep.subr.mxu0 0.0
  %986 = vmatpush1.xpose.msra.mxu0 0.0
  %987 = vmatprep.subr.mxu0 0.0
  %988 = vmatpush1.xpose.msra.mxu0 0.0
  %989 = vmatprep.subr.mxu0 0.0
  %990 = vmatpush1.xpose.msra.mxu0 0.0
  %991 = vmatprep.subr.mxu0 0.0
  %992 = vmatpush1.xpose.msra.mxu0 0.0
  %993 = vmatprep.subr.mxu0 0.0
  %994 = vmatpush1.xpose.msra.mxu0 0.0
  %995 = vmatprep.subr.mxu0 0.0
  %996 = vmatpush1.xpose.msra.mxu0 0.0
  %997 = vmatprep.subr.mxu0 0.0
  %998 = vmatpush1.xpose.msra.mxu0 0.0
  %999 = vmatprep.subr.mxu0 0.0
  %1000 = vmatpush1.xpose.msra.mxu0 0.0
  %1001 = vmatprep.subr.mxu0 0.0
  %1002 = vmatpush1.xpose.msra.mxu0 0.0
  %1003 = vmatprep.subr.mxu0 0.0
  %1004 = vmatpush1.xpose.msra.mxu0 0.0
  %1005 = vmatprep.subr.mxu0 0.0
  %1006 = vmatpush1.xpose.msra.mxu0 0.0
  %1007 = vmatprep.subr.mxu0 0.0
  %1008 = vmatpush1.xpose.msra.mxu0 0.0
  %1009 = vmatprep.subr.mxu0 0.0
  %1010 = vmatpush1.xpose.msra.mxu0 0.0
  %1011 = vmatprep.subr.mxu0 0.0
  %1012 = vmatpush1.xpose.msra.mxu0 0.0
  %1013 = vmatprep.subr.mxu0 0.0
  %1014 = vmatpush1.xpose.msra.mxu0 0.0
  %1015 = vmatprep.subr.mxu0 0.0
  %1016 = vmatpush1.xpose.msra.mxu0 0.0
  %1017 = vmatprep.subr.mxu0 0.0
  %1018 = vmatpush1.xpose.msra.mxu0 0.0
  %1019 = vmatprep.subr.mxu0 0.0
  %1020 = vmatpush1.xpose.msra.mxu0 0.0
  %1021 = vmatprep.subr.mxu0 0.0
  %1022 = vmatpush1.xpose.msra.mxu0 0.0
  %1023 = vmatprep.subr.mxu0 0.0
  %1024 = vmatpush1.xpose.msra.mxu0 0.0
  %1025 = vmatprep.subr.mxu0 0.0
  %1026 = vmatpush1.xpose.msra.mxu0 0.0
  %1027 = vmatprep.mubr.f32.mxu0 0.0
  %1028 = vmatmul.mubr.f32.gmra.mrb[0].mxu0 %v952
  %v1029 = vpop.f32.mrb[0].mxu0
  %v1030 = vadd.f32 0.0, %v1029
  %v1031 = vpop.f32.mrb[0].mxu0
  %1032 = vmatprep.mubr.f32.mxu0 0.0
  %1033 = vmatmul.mubr.f32.gmra.mrb[0].mxu0 %v955
  %v1034 = vpop.f32.mrb[0].mxu0
  %v1035 = vadd.f32 0.0, %v1034
  %v1036 = vpop.f32.mrb[0].mxu0
  %1037 = vdwg.mxu0
  %v1039 = vsel %vm83, %v477, 0
  %v1042 = vsel %vm83, %v479, 0
  %v1045 = vsel %vm83, %v509, 0
  %v1048 = vsel %vm83, %v511, 0
  %1050 = vmatprep.subr.mxu0 0.0
  %1051 = vmatpush1.xpose.msra.mxu0 %v1045
  %1052 = vmatprep.subr.mxu0 0.0
  %1053 = vmatpush1.xpose.msra.mxu0 %v1048
  %1054 = vmatprep.subr.mxu0 0.0
  %1055 = vmatpush1.xpose.msra.mxu0 0.0
  %1056 = vmatprep.subr.mxu0 0.0
  %1057 = vmatpush1.xpose.msra.mxu0 0.0
  %1058 = vmatprep.subr.mxu0 0.0
  %1059 = vmatpush1.xpose.msra.mxu0 0.0
  %1060 = vmatprep.subr.mxu0 0.0
  %1061 = vmatpush1.xpose.msra.mxu0 0.0
  %1062 = vmatprep.subr.mxu0 0.0
  %1063 = vmatpush1.xpose.msra.mxu0 0.0
  %1064 = vmatprep.subr.mxu0 0.0
  %1065 = vmatpush1.xpose.msra.mxu0 0.0
  %1066 = vmatprep.subr.mxu0 0.0
  %1067 = vmatpush1.xpose.msra.mxu0 0.0
  %1068 = vmatprep.subr.mxu0 0.0
  %1069 = vmatpush1.xpose.msra.mxu0 0.0
  %1070 = vmatprep.subr.mxu0 0.0
  %1071 = vmatpush1.xpose.msra.mxu0 0.0
  %1072 = vmatprep.subr.mxu0 0.0
  %1073 = vmatpush1.xpose.msra.mxu0 0.0
  %1074 = vmatprep.subr.mxu0 0.0
  %1075 = vmatpush1.xpose.msra.mxu0 0.0
  %1076 = vmatprep.subr.mxu0 0.0
  %1077 = vmatpush1.xpose.msra.mxu0 0.0
  %1078 = vmatprep.subr.mxu0 0.0
  %1079 = vmatpush1.xpose.msra.mxu0 0.0
  %1080 = vmatprep.subr.mxu0 0.0
  %1081 = vmatpush1.xpose.msra.mxu0 0.0
  %1082 = vmatprep.subr.mxu0 0.0
  %1083 = vmatpush1.xpose.msra.mxu0 0.0
  %1084 = vmatprep.subr.mxu0 0.0
  %1085 = vmatpush1.xpose.msra.mxu0 0.0
  %1086 = vmatprep.subr.mxu0 0.0
  %1087 = vmatpush1.xpose.msra.mxu0 0.0
  %1088 = vmatprep.subr.mxu0 0.0
  %1089 = vmatpush1.xpose.msra.mxu0 0.0
  %1090 = vmatprep.subr.mxu0 0.0
  %1091 = vmatpush1.xpose.msra.mxu0 0.0
  %1092 = vmatprep.subr.mxu0 0.0
  %1093 = vmatpush1.xpose.msra.mxu0 0.0
  %1094 = vmatprep.subr.mxu0 0.0
  %1095 = vmatpush1.xpose.msra.mxu0 0.0
  %1096 = vmatprep.subr.mxu0 0.0
  %1097 = vmatpush1.xpose.msra.mxu0 0.0
  %1098 = vmatprep.subr.mxu0 0.0
  %1099 = vmatpush1.xpose.msra.mxu0 0.0
  %1100 = vmatprep.subr.mxu0 0.0
  %1101 = vmatpush1.xpose.msra.mxu0 0.0
  %1102 = vmatprep.subr.mxu0 0.0
  %1103 = vmatpush1.xpose.msra.mxu0 0.0
  %1104 = vmatprep.subr.mxu0 0.0
  %1105 = vmatpush1.xpose.msra.mxu0 0.0
  %1106 = vmatprep.subr.mxu0 0.0
  %1107 = vmatpush1.xpose.msra.mxu0 0.0
  %1108 = vmatprep.subr.mxu0 0.0
  %1109 = vmatpush1.xpose.msra.mxu0 0.0
  %1110 = vmatprep.subr.mxu0 0.0
  %1111 = vmatpush1.xpose.msra.mxu0 0.0
  %1112 = vmatprep.subr.mxu0 0.0
  %1113 = vmatpush1.xpose.msra.mxu0 0.0
  %1114 = vmatprep.mubr.f32.mxu0 0.0
  %1115 = vmatmul.mubr.f32.gmra.mrb[0].mxu0 %v1039
  %v1116 = vpop.f32.mrb[0].mxu0
  %v1117 = vadd.f32 0.0, %v1116
  %v1118 = vpop.f32.mrb[0].mxu0
  %1119 = vmatprep.mubr.f32.mxu0 0.0
  %1120 = vmatmul.mubr.f32.gmra.mrb[0].mxu0 %v1042
  %v1121 = vpop.f32.mrb[0].mxu0
  %v1122 = vadd.f32 0.0, %v1121
  %v1123 = vpop.f32.mrb[0].mxu0
  %1124 = vdwg.mxu0
  %v1126 = vsel %vm83, %v481, 0
  %v1129 = vsel %vm83, %v483, 0
  %v1132 = vsel %vm83, %v513, 0
  %v1135 = vsel %vm83, %v515, 0
  %1137 = vmatprep.subr.mxu0 0.0
  %1138 = vmatpush1.xpose.msra.mxu0 %v1132
  %1139 = vmatprep.subr.mxu0 0.0
  %1140 = vmatpush1.xpose.msra.mxu0 %v1135
  %1141 = vmatprep.subr.mxu0 0.0
  %1142 = vmatpush1.xpose.msra.mxu0 0.0
  %1143 = vmatprep.subr.mxu0 0.0
  %1144 = vmatpush1.xpose.msra.mxu0 0.0
  %1145 = vmatprep.subr.mxu0 0.0
  %1146 = vmatpush1.xpose.msra.mxu0 0.0
  %1147 = vmatprep.subr.mxu0 0.0
  %1148 = vmatpush1.xpose.msra.mxu0 0.0
  %1149 = vmatprep.subr.mxu0 0.0
  %1150 = vmatpush1.xpose.msra.mxu0 0.0
  %1151 = vmatprep.subr.mxu0 0.0
  %1152 = vmatpush1.xpose.msra.mxu0 0.0
  %1153 = vmatprep.subr.mxu0 0.0
  %1154 = vmatpush1.xpose.msra.mxu0 0.0
  %1155 = vmatprep.subr.mxu0 0.0
  %1156 = vmatpush1.xpose.msra.mxu0 0.0
  %1157 = vmatprep.subr.mxu0 0.0
  %1158 = vmatpush1.xpose.msra.mxu0 0.0
  %1159 = vmatprep.subr.mxu0 0.0
  %1160 = vmatpush1.xpose.msra.mxu0 0.0
  %1161 = vmatprep.subr.mxu0 0.0
  %1162 = vmatpush1.xpose.msra.mxu0 0.0
  %1163 = vmatprep.subr.mxu0 0.0
  %1164 = vmatpush1.xpose.msra.mxu0 0.0
  %1165 = vmatprep.subr.mxu0 0.0
  %1166 = vmatpush1.xpose.msra.mxu0 0.0
  %1167 = vmatprep.subr.mxu0 0.0
  %1168 = vmatpush1.xpose.msra.mxu0 0.0
  %1169 = vmatprep.subr.mxu0 0.0
  %1170 = vmatpush1.xpose.msra.mxu0 0.0
  %1171 = vmatprep.subr.mxu0 0.0
  %1172 = vmatpush1.xpose.msra.mxu0 0.0
  %1173 = vmatprep.subr.mxu0 0.0
  %1174 = vmatpush1.xpose.msra.mxu0 0.0
  %1175 = vmatprep.subr.mxu0 0.0
  %1176 = vmatpush1.xpose.msra.mxu0 0.0
  %1177 = vmatprep.subr.mxu0 0.0
  %1178 = vmatpush1.xpose.msra.mxu0 0.0
  %1179 = vmatprep.subr.mxu0 0.0
  %1180 = vmatpush1.xpose.msra.mxu0 0.0
  %1181 = vmatprep.subr.mxu0 0.0
  %1182 = vmatpush1.xpose.msra.mxu0 0.0
  %1183 = vmatprep.subr.mxu0 0.0
  %1184 = vmatpush1.xpose.msra.mxu0 0.0
  %1185 = vmatprep.subr.mxu0 0.0
  %1186 = vmatpush1.xpose.msra.mxu0 0.0
  %1187 = vmatprep.subr.mxu0 0.0
  %1188 = vmatpush1.xpose.msra.mxu0 0.0
  %1189 = vmatprep.subr.mxu0 0.0
  %1190 = vmatpush1.xpose.msra.mxu0 0.0
  %1191 = vmatprep.subr.mxu0 0.0
  %1192 = vmatpush1.xpose.msra.mxu0 0.0
  %1193 = vmatprep.subr.mxu0 0.0
  %1194 = vmatpush1.xpose.msra.mxu0 0.0
  %1195 = vmatprep.subr.mxu0 0.0
  %1196 = vmatpush1.xpose.msra.mxu0 0.0
  %1197 = vmatprep.subr.mxu0 0.0
  %1198 = vmatpush1.xpose.msra.mxu0 0.0
  %1199 = vmatprep.subr.mxu0 0.0
  %1200 = vmatpush1.xpose.msra.mxu0 0.0
  %1201 = vmatprep.mubr.f32.mxu0 0.0
  %1202 = vmatmul.mubr.f32.gmra.mrb[0].mxu0 %v1126
  %v1203 = vpop.f32.mrb[0].mxu0
  %v1204 = vadd.f32 0.0, %v1203
  %v1205 = vpop.f32.mrb[0].mxu0
  %1206 = vmatprep.mubr.f32.mxu0 0.0
  %1207 = vmatmul.mubr.f32.gmra.mrb[0].mxu0 %v1129
  %v1208 = vpop.f32.mrb[0].mxu0
  %v1209 = vadd.f32 0.0, %v1208
  %v1210 = vpop.f32.mrb[0].mxu0
  %1211 = vdwg.mxu0
  %vm1212 = vcmp.gt.f32.partialorder %v595, 0.3
  %vm1213 = vcmp.gt.f32.partialorder %v600, 0.3
  %vm1214 = vcmp.gt.f32.partialorder %v682, 0.3
  %vm1215 = vcmp.gt.f32.partialorder %v687, 0.3
  %vm1216 = vcmp.gt.f32.partialorder %v769, 0.3
  %vm1217 = vcmp.gt.f32.partialorder %v774, 0.3
  %vm1218 = vcmp.gt.f32.partialorder %v856, 0.3
  %vm1219 = vcmp.gt.f32.partialorder %v861, 0.3
  %vm1220 = vcmp.gt.f32.partialorder %v943, 0.3
  %vm1221 = vcmp.gt.f32.partialorder %v948, 0.3
  %vm1222 = vcmp.gt.f32.partialorder %v1030, 0.3
  %vm1223 = vcmp.gt.f32.partialorder %v1035, 0.3
  %vm1224 = vcmp.gt.f32.partialorder %v1117, 0.3
  %vm1225 = vcmp.gt.f32.partialorder %v1122, 0.3
  %vm1226 = vcmp.gt.f32.partialorder %v1204, 0.3
  %vm1227 = vcmp.gt.f32.partialorder %v1209, 0.3
  %v1228 = vsel %vm1212, %v595, 0.0
  %v1229 = vsel %vm1213, %v600, 0.0
  %v1230 = vsel %vm1214, %v682, 0.0
  %v1231 = vsel %vm1215, %v687, 0.0
  %v1232 = vsel %vm1216, %v769, 0.0
  %v1233 = vsel %vm1217, %v774, 0.0
  %v1234 = vsel %vm1218, %v856, 0.0
  %v1235 = vsel %vm1219, %v861, 0.0
  %v1236 = vsel %vm1220, %v943, 0.0
  %v1237 = vsel %vm1221, %v948, 0.0
  %v1238 = vsel %vm1222, %v1030, 0.0
  %v1239 = vsel %vm1223, %v1035, 0.0
  %v1240 = vsel %vm1224, %v1117, 0.0
  %v1241 = vsel %vm1225, %v1122, 0.0
  %v1242 = vsel %vm1226, %v1204, 0.0
  %v1243 = vsel %vm1227, %v1209, 0.0
  %v1244 = vld [vmem:[%s2] sm:$0xff]
  %v1245 = vld [vmem:[%s2 + $0x8] sm:$0xff]
  %v1246 = vld [vmem:[%s2 + $0x10] sm:$0xff]
  %v1247 = vld [vmem:[%s2 + $0x18] sm:$0xff]
  %v1248 = vld [vmem:[%s2 + $0x20] sm:$0xff]
  %v1249 = vld [vmem:[%s2 + $0x28] sm:$0xff]
  %vm1250 = vcmask 130048
  %v1252 = vsel %vm1250, %v1228, 0
  %v1255 = vsel %vm1250, %v1229, 0
  %v1258 = vsel %vm1250, %v1230, 0
  %v1261 = vsel %vm1250, %v1231, 0
  %v1264 = vsel %vm1250, %v1232, 0
  %v1267 = vsel %vm1250, %v1233, 0
  %v1270 = vsel %vm1250, %v1234, 0
  %v1273 = vsel %vm1250, %v1235, 0
  %v1276 = vsel %vm1250, %v1236, 0
  %v1279 = vsel %vm1250, %v1237, 0
  %v1282 = vsel %vm1250, %v1238, 0
  %v1285 = vsel %vm1250, %v1239, 0
  %v1288 = vsel %vm1250, %v1240, 0
  %v1291 = vsel %vm1250, %v1241, 0
  %v1294 = vsel %vm1250, %v1242, 0
  %v1297 = vsel %vm1250, %v1243, 0
  %1299 = vmatprep.subr.mxu0 %v1245
  %1300 = vmatpush1.msra.mxu0 %v1244
  %1301 = vmatprep.subr.mxu0 %v1248
  %1302 = vmatpush1.msra.mxu0 %v1247
  %1303 = vmatprep.subr.mxu0 0.0
  %1304 = vmatpush1.msra.mxu0 0.0
  %1305 = vmatprep.subr.mxu0 0.0
  %1306 = vmatpush1.msra.mxu0 0.0
  %1307 = vmatprep.subr.mxu0 0.0
  %1308 = vmatpush1.msra.mxu0 0.0
  %1309 = vmatprep.subr.mxu0 0.0
  %1310 = vmatpush1.msra.mxu0 0.0
  %1311 = vmatprep.subr.mxu0 0.0
  %1312 = vmatpush1.msra.mxu0 0.0
  %1313 = vmatprep.subr.mxu0 0.0
  %1314 = vmatpush1.msra.mxu0 0.0
  %1315 = vmatprep.subr.mxu0 0.0
  %1316 = vmatpush1.msra.mxu0 0.0
  %1317 = vmatprep.subr.mxu0 0.0
  %1318 = vmatpush1.msra.mxu0 0.0
  %1319 = vmatprep.subr.mxu0 0.0
  %1320 = vmatpush1.msra.mxu0 0.0
  %1321 = vmatprep.subr.mxu0 0.0
  %1322 = vmatpush1.msra.mxu0 0.0
  %1323 = vmatprep.subr.mxu0 0.0
  %1324 = vmatpush1.msra.mxu0 0.0
  %1325 = vmatprep.subr.mxu0 0.0
  %1326 = vmatpush1.msra.mxu0 0.0
  %1327 = vmatprep.subr.mxu0 0.0
  %1328 = vmatpush1.msra.mxu0 0.0
  %1329 = vmatprep.subr.mxu0 0.0
  %1330 = vmatpush1.msra.mxu0 0.0
  %1331 = vmatprep.subr.mxu0 0.0
  %1332 = vmatpush1.msra.mxu0 0.0
  %1333 = vmatprep.subr.mxu0 0.0
  %1334 = vmatpush1.msra.mxu0 0.0
  %1335 = vmatprep.subr.mxu0 0.0
  %1336 = vmatpush1.msra.mxu0 0.0
  %1337 = vmatprep.subr.mxu0 0.0
  %1338 = vmatpush1.msra.mxu0 0.0
  %1339 = vmatprep.subr.mxu0 0.0
  %1340 = vmatpush1.msra.mxu0 0.0
  %1341 = vmatprep.subr.mxu0 0.0
  %1342 = vmatpush1.msra.mxu0 0.0
  %1343 = vmatprep.subr.mxu0 0.0
  %1344 = vmatpush1.msra.mxu0 0.0
  %1345 = vmatprep.subr.mxu0 0.0
  %1346 = vmatpush1.msra.mxu0 0.0
  %1347 = vmatprep.subr.mxu0 0.0
  %1348 = vmatpush1.msra.mxu0 0.0
  %1349 = vmatprep.subr.mxu0 0.0
  %1350 = vmatpush1.msra.mxu0 0.0
  %1351 = vmatprep.subr.mxu0 0.0
  %1352 = vmatpush1.msra.mxu0 0.0
  %1353 = vmatprep.subr.mxu0 0.0
  %1354 = vmatpush1.msra.mxu0 0.0
  %1355 = vmatprep.subr.mxu0 0.0
  %1356 = vmatpush1.msra.mxu0 0.0
  %1357 = vmatprep.subr.mxu0 0.0
  %1358 = vmatpush1.msra.mxu0 0.0
  %1359 = vmatprep.subr.mxu0 0.0
  %1360 = vmatpush1.msra.mxu0 0.0
  %1361 = vmatprep.subr.mxu0 0.0
  %1362 = vmatpush1.msra.mxu0 0.0
  %1363 = vmatprep.mubr.f32.mxu0 0.0
  %1364 = vmatmul.mubr.f32.gmra.mrb[0].mxu0 %v1252
  %v1365 = vpop.f32.mrb[0].mxu0
  %v1366 = vadd.f32 0.0, %v1365
  %v1367 = vpop.f32.mrb[0].mxu0
  %v1368 = vadd.f32 0.0, %v1367
  %1369 = vmatprep.mubr.f32.mxu0 0.0
  %1370 = vmatmul.mubr.f32.gmra.mrb[0].mxu0 %v1255
  %v1371 = vpop.f32.mrb[0].mxu0
  %v1372 = vadd.f32 0.0, %v1371
  %v1373 = vpop.f32.mrb[0].mxu0
  %v1374 = vadd.f32 0.0, %v1373
  %1375 = vmatprep.mubr.f32.mxu0 0.0
  %1376 = vmatmul.mubr.f32.gmra.mrb[0].mxu0 %v1258
  %v1377 = vpop.f32.mrb[0].mxu0
  %v1378 = vadd.f32 0.0, %v1377
  %v1379 = vpop.f32.mrb[0].mxu0
  %v1380 = vadd.f32 0.0, %v1379
  %1381 = vmatprep.mubr.f32.mxu0 0.0
  %1382 = vmatmul.mubr.f32.gmra.mrb[0].mxu0 %v1261
  %v1383 = vpop.f32.mrb[0].mxu0
  %v1384 = vadd.f32 0.0, %v1383
  %v1385 = vpop.f32.mrb[0].mxu0
  %v1386 = vadd.f32 0.0, %v1385
  %1387 = vmatprep.mubr.f32.mxu0 0.0
  %1388 = vmatmul.mubr.f32.gmra.mrb[0].mxu0 %v1264
  %v1389 = vpop.f32.mrb[0].mxu0
  %v1390 = vadd.f32 0.0, %v1389
  %v1391 = vpop.f32.mrb[0].mxu0
  %v1392 = vadd.f32 0.0, %v1391
  %1393 = vmatprep.mubr.f32.mxu0 0.0
  %1394 = vmatmul.mubr.f32.gmra.mrb[0].mxu0 %v1267
  %v1395 = vpop.f32.mrb[0].mxu0
  %v1396 = vadd.f32 0.0, %v1395
  %v1397 = vpop.f32.mrb[0].mxu0
  %v1398 = vadd.f32 0.0, %v1397
  %1399 = vmatprep.mubr.f32.mxu0 0.0
  %1400 = vmatmul.mubr.f32.gmra.mrb[0].mxu0 %v1270
  %v1401 = vpop.f32.mrb[0].mxu0
  %v1402 = vadd.f32 0.0, %v1401
  %v1403 = vpop.f32.mrb[0].mxu0
  %v1404 = vadd.f32 0.0, %v1403
  %1405 = vmatprep.mubr.f32.mxu0 0.0
  %1406 = vmatmul.mubr.f32.gmra.mrb[0].mxu0 %v1273
  %v1407 = vpop.f32.mrb[0].mxu0
  %v1408 = vadd.f32 0.0, %v1407
  %v1409 = vpop.f32.mrb[0].mxu0
  %v1410 = vadd.f32 0.0, %v1409
  %1411 = vmatprep.mubr.f32.mxu0 0.0
  %1412 = vmatmul.mubr.f32.gmra.mrb[0].mxu0 %v1276
  %v1413 = vpop.f32.mrb[0].mxu0
  %v1414 = vadd.f32 0.0, %v1413
  %v1415 = vpop.f32.mrb[0].mxu0
  %v1416 = vadd.f32 0.0, %v1415
  %1417 = vmatprep.mubr.f32.mxu0 0.0
  %1418 = vmatmul.mubr.f32.gmra.mrb[0].mxu0 %v1279
  %v1419 = vpop.f32.mrb[0].mxu0
  %v1420 = vadd.f32 0.0, %v1419
  %v1421 = vpop.f32.mrb[0].mxu0
  %v1422 = vadd.f32 0.0, %v1421
  %1423 = vmatprep.mubr.f32.mxu0 0.0
  %1424 = vmatmul.mubr.f32.gmra.mrb[0].mxu0 %v1282
  %v1425 = vpop.f32.mrb[0].mxu0
  %v1426 = vadd.f32 0.0, %v1425
  %v1427 = vpop.f32.mrb[0].mxu0
  %v1428 = vadd.f32 0.0, %v1427
  %1429 = vmatprep.mubr.f32.mxu0 0.0
  %1430 = vmatmul.mubr.f32.gmra.mrb[0].mxu0 %v1285
  %v1431 = vpop.f32.mrb[0].mxu0
  %v1432 = vadd.f32 0.0, %v1431
  %v1433 = vpop.f32.mrb[0].mxu0
  %v1434 = vadd.f32 0.0, %v1433
  %1435 = vmatprep.mubr.f32.mxu0 0.0
  %1436 = vmatmul.mubr.f32.gmra.mrb[0].mxu0 %v1288
  %v1437 = vpop.f32.mrb[0].mxu0
  %v1438 = vadd.f32 0.0, %v1437
  %v1439 = vpop.f32.mrb[0].mxu0
  %v1440 = vadd.f32 0.0, %v1439
  %1441 = vmatprep.mubr.f32.mxu0 0.0
  %1442 = vmatmul.mubr.f32.gmra.mrb[0].mxu0 %v1291
  %v1443 = vpop.f32.mrb[0].mxu0
  %v1444 = vadd.f32 0.0, %v1443
  %v1445 = vpop.f32.mrb[0].mxu0
  %v1446 = vadd.f32 0.0, %v1445
  %1447 = vmatprep.mubr.f32.mxu0 0.0
  %1448 = vmatmul.mubr.f32.gmra.mrb[0].mxu0 %v1294
  %v1449 = vpop.f32.mrb[0].mxu0
  %v1450 = vadd.f32 0.0, %v1449
  %v1451 = vpop.f32.mrb[0].mxu0
  %v1452 = vadd.f32 0.0, %v1451
  %1453 = vmatprep.mubr.f32.mxu0 0.0
  %1454 = vmatmul.mubr.f32.gmra.mrb[0].mxu0 %v1297
  %v1455 = vpop.f32.mrb[0].mxu0
  %v1456 = vadd.f32 0.0, %v1455
  %v1457 = vpop.f32.mrb[0].mxu0
  %v1458 = vadd.f32 0.0, %v1457
  %1459 = vdwg.mxu0
  %1460 = vmatprep.subr.mxu0 0.0
  %1461 = vmatpush1.msra.mxu0 %v1246
  %1462 = vmatprep.subr.mxu0 0.0
  %1463 = vmatpush1.msra.mxu0 %v1249
  %1464 = vmatprep.subr.mxu0 0.0
  %1465 = vmatpush1.msra.mxu0 0.0
  %1466 = vmatprep.subr.mxu0 0.0
  %1467 = vmatpush1.msra.mxu0 0.0
  %1468 = vmatprep.subr.mxu0 0.0
  %1469 = vmatpush1.msra.mxu0 0.0
  %1470 = vmatprep.subr.mxu0 0.0
  %1471 = vmatpush1.msra.mxu0 0.0
  %1472 = vmatprep.subr.mxu0 0.0
  %1473 = vmatpush1.msra.mxu0 0.0
  %1474 = vmatprep.subr.mxu0 0.0
  %1475 = vmatpush1.msra.mxu0 0.0
  %1476 = vmatprep.subr.mxu0 0.0
  %1477 = vmatpush1.msra.mxu0 0.0
  %1478 = vmatprep.subr.mxu0 0.0
  %1479 = vmatpush1.msra.mxu0 0.0
  %1480 = vmatprep.subr.mxu0 0.0
  %1481 = vmatpush1.msra.mxu0 0.0
  %1482 = vmatprep.subr.mxu0 0.0
  %1483 = vmatpush1.msra.mxu0 0.0
  %1484 = vmatprep.subr.mxu0 0.0
  %1485 = vmatpush1.msra.mxu0 0.0
  %1486 = vmatprep.subr.mxu0 0.0
  %1487 = vmatpush1.msra.mxu0 0.0
  %1488 = vmatprep.subr.mxu0 0.0
  %1489 = vmatpush1.msra.mxu0 0.0
  %1490 = vmatprep.subr.mxu0 0.0
  %1491 = vmatpush1.msra.mxu0 0.0
  %1492 = vmatprep.subr.mxu0 0.0
  %1493 = vmatpush1.msra.mxu0 0.0
  %1494 = vmatprep.subr.mxu0 0.0
  %1495 = vmatpush1.msra.mxu0 0.0
  %1496 = vmatprep.subr.mxu0 0.0
  %1497 = vmatpush1.msra.mxu0 0.0
  %1498 = vmatprep.subr.mxu0 0.0
  %1499 = vmatpush1.msra.mxu0 0.0
  %1500 = vmatprep.subr.mxu0 0.0
  %1501 = vmatpush1.msra.mxu0 0.0
  %1502 = vmatprep.subr.mxu0 0.0
  %1503 = vmatpush1.msra.mxu0 0.0
  %1504 = vmatprep.subr.mxu0 0.0
  %1505 = vmatpush1.msra.mxu0 0.0
  %1506 = vmatprep.subr.mxu0 0.0
  %1507 = vmatpush1.msra.mxu0 0.0
  %1508 = vmatprep.subr.mxu0 0.0
  %1509 = vmatpush1.msra.mxu0 0.0
  %1510 = vmatprep.subr.mxu0 0.0
  %1511 = vmatpush1.msra.mxu0 0.0
  %1512 = vmatprep.subr.mxu0 0.0
  %1513 = vmatpush1.msra.mxu0 0.0
  %1514 = vmatprep.subr.mxu0 0.0
  %1515 = vmatpush1.msra.mxu0 0.0
  %1516 = vmatprep.subr.mxu0 0.0
  %1517 = vmatpush1.msra.mxu0 0.0
  %1518 = vmatprep.subr.mxu0 0.0
  %1519 = vmatpush1.msra.mxu0 0.0
  %1520 = vmatprep.subr.mxu0 0.0
  %1521 = vmatpush1.msra.mxu0 0.0
  %1522 = vmatprep.subr.mxu0 0.0
  %1523 = vmatpush1.msra.mxu0 0.0
  %1524 = vmatprep.mubr.f32.mxu0 0.0
  %1525 = vmatmul.mubr.f32.gmra.mrb[0].mxu0 %v1252
  %v1526 = vpop.f32.mrb[0].mxu0
  %v1527 = vadd.f32 0.0, %v1526
  %v1528 = vpop.f32.mrb[0].mxu0
  %1529 = vmatprep.mubr.f32.mxu0 0.0
  %1530 = vmatmul.mubr.f32.gmra.mrb[0].mxu0 %v1255
  %v1531 = vpop.f32.mrb[0].mxu0
  %v1532 = vadd.f32 0.0, %v1531
  %v1533 = vpop.f32.mrb[0].mxu0
  %1534 = vmatprep.mubr.f32.mxu0 0.0
  %1535 = vmatmul.mubr.f32.gmra.mrb[0].mxu0 %v1258
  %v1536 = vpop.f32.mrb[0].mxu0
  %v1537 = vadd.f32 0.0, %v1536
  %v1538 = vpop.f32.mrb[0].mxu0
  %1539 = vmatprep.mubr.f32.mxu0 0.0
  %1540 = vmatmul.mubr.f32.gmra.mrb[0].mxu0 %v1261
  %v1541 = vpop.f32.mrb[0].mxu0
  %v1542 = vadd.f32 0.0, %v1541
  %v1543 = vpop.f32.mrb[0].mxu0
  %1544 = vmatprep.mubr.f32.mxu0 0.0
  %1545 = vmatmul.mubr.f32.gmra.mrb[0].mxu0 %v1264
  %v1546 = vpop.f32.mrb[0].mxu0
  %v1547 = vadd.f32 0.0, %v1546
  %v1548 = vpop.f32.mrb[0].mxu0
  %1549 = vmatprep.mubr.f32.mxu0 0.0
  %1550 = vmatmul.mubr.f32.gmra.mrb[0].mxu0 %v1267
  %v1551 = vpop.f32.mrb[0].mxu0
  %v1552 = vadd.f32 0.0, %v1551
  %v1553 = vpop.f32.mrb[0].mxu0
  %1554 = vmatprep.mubr.f32.mxu0 0.0
  %1555 = vmatmul.mubr.f32.gmra.mrb[0].mxu0 %v1270
  %v1556 = vpop.f32.mrb[0].mxu0
  %v1557 = vadd.f32 0.0, %v1556
  %v1558 = vpop.f32.mrb[0].mxu0
  %1559 = vmatprep.mubr.f32.mxu0 0.0
  %1560 = vmatmul.mubr.f32.gmra.mrb[0].mxu0 %v1273
  %v1561 = vpop.f32.mrb[0].mxu0
  %v1562 = vadd.f32 0.0, %v1561
  %v1563 = vpop.f32.mrb[0].mxu0
  %1564 = vmatprep.mubr.f32.mxu0 0.0
  %1565 = vmatmul.mubr.f32.gmra.mrb[0].mxu0 %v1276
  %v1566 = vpop.f32.mrb[0].mxu0
  %v1567 = vadd.f32 0.0, %v1566
  %v1568 = vpop.f32.mrb[0].mxu0
  %1569 = vmatprep.mubr.f32.mxu0 0.0
  %1570 = vmatmul.mubr.f32.gmra.mrb[0].mxu0 %v1279
  %v1571 = vpop.f32.mrb[0].mxu0
  %v1572 = vadd.f32 0.0, %v1571
  %v1573 = vpop.f32.mrb[0].mxu0
  %1574 = vmatprep.mubr.f32.mxu0 0.0
  %1575 = vmatmul.mubr.f32.gmra.mrb[0].mxu0 %v1282
  %v1576 = vpop.f32.mrb[0].mxu0
  %v1577 = vadd.f32 0.0, %v1576
  %v1578 = vpop.f32.mrb[0].mxu0
  %1579 = vmatprep.mubr.f32.mxu0 0.0
  %1580 = vmatmul.mubr.f32.gmra.mrb[0].mxu0 %v1285
  %v1581 = vpop.f32.mrb[0].mxu0
  %v1582 = vadd.f32 0.0, %v1581
  %v1583 = vpop.f32.mrb[0].mxu0
  %1584 = vmatprep.mubr.f32.mxu0 0.0
  %1585 = vmatmul.mubr.f32.gmra.mrb[0].mxu0 %v1288
  %v1586 = vpop.f32.mrb[0].mxu0
  %v1587 = vadd.f32 0.0, %v1586
  %v1588 = vpop.f32.mrb[0].mxu0
  %1589 = vmatprep.mubr.f32.mxu0 0.0
  %1590 = vmatmul.mubr.f32.gmra.mrb[0].mxu0 %v1291
  %v1591 = vpop.f32.mrb[0].mxu0
  %v1592 = vadd.f32 0.0, %v1591
  %v1593 = vpop.f32.mrb[0].mxu0
  %1594 = vmatprep.mubr.f32.mxu0 0.0
  %1595 = vmatmul.mubr.f32.gmra.mrb[0].mxu0 %v1294
  %v1596 = vpop.f32.mrb[0].mxu0
  %v1597 = vadd.f32 0.0, %v1596
  %v1598 = vpop.f32.mrb[0].mxu0
  %1599 = vmatprep.mubr.f32.mxu0 0.0
  %1600 = vmatmul.mubr.f32.gmra.mrb[0].mxu0 %v1297
  %v1601 = vpop.f32.mrb[0].mxu0
  %v1602 = vadd.f32 0.0, %v1601
  %v1603 = vpop.f32.mrb[0].mxu0
  %1604 = vdwg.mxu0
  %vm1637 = vcmask 1046528
  %v1638 = vrot.slane %v1366, 1
  %v1639 = vrot.slane %v1372, 1
  %v1640 = vsel %vm1637, %v1638, %v1639
  %v1641 = vrot.slane %v1368, 1
  %v1642 = vrot.slane %v1374, 1
  %v1643 = vsel %vm1637, %v1641, %v1642
  %v1644 = vrot.slane %v1378, 1
  %v1645 = vrot.slane %v1384, 1
  %v1646 = vsel %vm1637, %v1644, %v1645
  %v1647 = vrot.slane %v1380, 1
  %v1648 = vrot.slane %v1386, 1
  %v1649 = vsel %vm1637, %v1647, %v1648
  %v1650 = vrot.slane %v1390, 1
  %v1651 = vrot.slane %v1396, 1
  %v1652 = vsel %vm1637, %v1650, %v1651
  %v1653 = vrot.slane %v1392, 1
  %v1654 = vrot.slane %v1398, 1
  %v1655 = vsel %vm1637, %v1653, %v1654
  %v1656 = vrot.slane %v1402, 1
  %v1657 = vrot.slane %v1408, 1
  %v1658 = vsel %vm1637, %v1656, %v1657
  %v1659 = vrot.slane %v1404, 1
  %v1660 = vrot.slane %v1410, 1
  %v1661 = vsel %vm1637, %v1659, %v1660
  %v1662 = vrot.slane %v1414, 1
  %v1663 = vrot.slane %v1420, 1
  %v1664 = vsel %vm1637, %v1662, %v1663
  %v1665 = vrot.slane %v1416, 1
  %v1666 = vrot.slane %v1422, 1
  %v1667 = vsel %vm1637, %v1665, %v1666
  %v1668 = vrot.slane %v1426, 1
  %v1669 = vrot.slane %v1432, 1
  %v1670 = vsel %vm1637, %v1668, %v1669
  %v1671 = vrot.slane %v1428, 1
  %v1672 = vrot.slane %v1434, 1
  %v1673 = vsel %vm1637, %v1671, %v1672
  %v1674 = vrot.slane %v1438, 1
  %v1675 = vrot.slane %v1444, 1
  %v1676 = vsel %vm1637, %v1674, %v1675
  %v1677 = vrot.slane %v1440, 1
  %v1678 = vrot.slane %v1446, 1
  %v1679 = vsel %vm1637, %v1677, %v1678
  %v1680 = vrot.slane %v1450, 1
  %v1681 = vrot.slane %v1456, 1
  %v1682 = vsel %vm1637, %v1680, %v1681
  %v1683 = vrot.slane %v1452, 1
  %v1684 = vrot.slane %v1458, 1
  %v1685 = vsel %vm1637, %v1683, %v1684
  %1686 = vrot.lane.b32.xlu0 %v1640, 16
  %v1687 = vpop.permute.xlu0 %1686
  %1688 = vrot.lane.b32.xlu0 %v1643, 16
  %v1689 = vpop.permute.xlu0 %1688
  %1690 = vrot.lane.b32.xlu0 %v1639, 16
  %v1691 = vpop.permute.xlu0 %1690
  %1692 = vrot.lane.b32.xlu0 %v1642, 16
  %v1693 = vpop.permute.xlu0 %1692
  %1694 = vrot.lane.b32.xlu0 %v1646, 16
  %v1695 = vpop.permute.xlu0 %1694
  %1696 = vrot.lane.b32.xlu0 %v1649, 16
  %v1697 = vpop.permute.xlu0 %1696
  %1698 = vrot.lane.b32.xlu0 %v1645, 16
  %v1699 = vpop.permute.xlu0 %1698
  %1700 = vrot.lane.b32.xlu0 %v1648, 16
  %v1701 = vpop.permute.xlu0 %1700
  %1702 = vrot.lane.b32.xlu0 %v1652, 16
  %v1703 = vpop.permute.xlu0 %1702
  %1704 = vrot.lane.b32.xlu0 %v1655, 16
  %v1705 = vpop.permute.xlu0 %1704
  %1706 = vrot.lane.b32.xlu0 %v1651, 16
  %v1707 = vpop.permute.xlu0 %1706
  %1708 = vrot.lane.b32.xlu0 %v1654, 16
  %v1709 = vpop.permute.xlu0 %1708
  %1710 = vrot.lane.b32.xlu0 %v1658, 16
  %v1711 = vpop.permute.xlu0 %1710
  %1712 = vrot.lane.b32.xlu0 %v1661, 16
  %v1713 = vpop.permute.xlu0 %1712
  %1714 = vrot.lane.b32.xlu0 %v1657, 16
  %v1715 = vpop.permute.xlu0 %1714
  %1716 = vrot.lane.b32.xlu0 %v1660, 16
  %v1717 = vpop.permute.xlu0 %1716
  %1718 = vrot.lane.b32.xlu0 %v1664, 16
  %v1719 = vpop.permute.xlu0 %1718
  %1720 = vrot.lane.b32.xlu0 %v1667, 16
  %v1721 = vpop.permute.xlu0 %1720
  %1722 = vrot.lane.b32.xlu0 %v1663, 16
  %v1723 = vpop.permute.xlu0 %1722
  %1724 = vrot.lane.b32.xlu0 %v1666, 16
  %v1725 = vpop.permute.xlu0 %1724
  %1726 = vrot.lane.b32.xlu0 %v1670, 16
  %v1727 = vpop.permute.xlu0 %1726
  %1728 = vrot.lane.b32.xlu0 %v1673, 16
  %v1729 = vpop.permute.xlu0 %1728
  %1730 = vrot.lane.b32.xlu0 %v1669, 16
  %v1731 = vpop.permute.xlu0 %1730
  %1732 = vrot.lane.b32.xlu0 %v1672, 16
  %v1733 = vpop.permute.xlu0 %1732
  %1734 = vrot.lane.b32.xlu0 %v1676, 16
  %v1735 = vpop.permute.xlu0 %1734
  %1736 = vrot.lane.b32.xlu0 %v1679, 16
  %v1737 = vpop.permute.xlu0 %1736
  %1738 = vrot.lane.b32.xlu0 %v1675, 16
  %v1739 = vpop.permute.xlu0 %1738
  %1740 = vrot.lane.b32.xlu0 %v1678, 16
  %v1741 = vpop.permute.xlu0 %1740
  %1742 = vrot.lane.b32.xlu0 %v1682, 16
  %v1743 = vpop.permute.xlu0 %1742
  %1744 = vrot.lane.b32.xlu0 %v1685, 16
  %v1745 = vpop.permute.xlu0 %1744
  %1746 = vrot.lane.b32.xlu0 %v1681, 16
  %v1747 = vpop.permute.xlu0 %1746
  %1748 = vrot.lane.b32.xlu0 %v1684, 16
  %v1749 = vpop.permute.xlu0 %1748
  %v1750 = vsel %vm1250, %v1687, %v1689
  %v1751 = vsel %vm1250, %v1691, %v1693
  %v1752 = vsel %vm1250, %v1695, %v1697
  %v1753 = vsel %vm1250, %v1699, %v1701
  %v1754 = vsel %vm1250, %v1703, %v1705
  %v1755 = vsel %vm1250, %v1707, %v1709
  %v1756 = vsel %vm1250, %v1711, %v1713
  %v1757 = vsel %vm1250, %v1715, %v1717
  %v1758 = vsel %vm1250, %v1719, %v1721
  %v1759 = vsel %vm1250, %v1723, %v1725
  %v1760 = vsel %vm1250, %v1727, %v1729
  %v1761 = vsel %vm1250, %v1731, %v1733
  %v1762 = vsel %vm1250, %v1735, %v1737
  %v1763 = vsel %vm1250, %v1739, %v1741
  %v1764 = vsel %vm1250, %v1743, %v1745
  %v1765 = vsel %vm1250, %v1747, %v1749
  %v1782 = vadd.f32 %v1366, %v1750
  %v1783 = vadd.f32 %v1372, %v1751
  %v1784 = vadd.f32 %v1378, %v1752
  %v1785 = vadd.f32 %v1384, %v1753
  %v1786 = vadd.f32 %v1390, %v1754
  %v1787 = vadd.f32 %v1396, %v1755
  %v1788 = vadd.f32 %v1402, %v1756
  %v1789 = vadd.f32 %v1408, %v1757
  %v1790 = vadd.f32 %v1414, %v1758
  %v1791 = vadd.f32 %v1420, %v1759
  %v1792 = vadd.f32 %v1426, %v1760
  %v1793 = vadd.f32 %v1432, %v1761
  %v1794 = vadd.f32 %v1438, %v1762
  %v1795 = vadd.f32 %v1444, %v1763
  %v1796 = vadd.f32 %v1450, %v1764
  %v1797 = vadd.f32 %v1456, %v1765
  %vm1814 = vcmask 1045504
  %v1815 = vrot.slane %v1368, 2
  %v1816 = vrot.slane %v1374, 2
  %v1817 = vsel %vm1814, %v1815, %v1816
  %v1818 = vrot.slane %v1527, 2
  %v1819 = vrot.slane %v1532, 2
  %v1820 = vsel %vm1814, %v1818, %v1819
  %v1821 = vrot.slane %v1380, 2
  %v1822 = vrot.slane %v1386, 2
  %v1823 = vsel %vm1814, %v1821, %v1822
  %v1824 = vrot.slane %v1537, 2
  %v1825 = vrot.slane %v1542, 2
  %v1826 = vsel %vm1814, %v1824, %v1825
  %v1827 = vrot.slane %v1392, 2
  %v1828 = vrot.slane %v1398, 2
  %v1829 = vsel %vm1814, %v1827, %v1828
  %v1830 = vrot.slane %v1547, 2
  %v1831 = vrot.slane %v1552, 2
  %v1832 = vsel %vm1814, %v1830, %v1831
  %v1833 = vrot.slane %v1404, 2
  %v1834 = vrot.slane %v1410, 2
  %v1835 = vsel %vm1814, %v1833, %v1834
  %v1836 = vrot.slane %v1557, 2
  %v1837 = vrot.slane %v1562, 2
  %v1838 = vsel %vm1814, %v1836, %v1837
  %v1839 = vrot.slane %v1416, 2
  %v1840 = vrot.slane %v1422, 2
  %v1841 = vsel %vm1814, %v1839, %v1840
  %v1842 = vrot.slane %v1567, 2
  %v1843 = vrot.slane %v1572, 2
  %v1844 = vsel %vm1814, %v1842, %v1843
  %v1845 = vrot.slane %v1428, 2
  %v1846 = vrot.slane %v1434, 2
  %v1847 = vsel %vm1814, %v1845, %v1846
  %v1848 = vrot.slane %v1577, 2
  %v1849 = vrot.slane %v1582, 2
  %v1850 = vsel %vm1814, %v1848, %v1849
  %v1851 = vrot.slane %v1440, 2
  %v1852 = vrot.slane %v1446, 2
  %v1853 = vsel %vm1814, %v1851, %v1852
  %v1854 = vrot.slane %v1587, 2
  %v1855 = vrot.slane %v1592, 2
  %v1856 = vsel %vm1814, %v1854, %v1855
  %v1857 = vrot.slane %v1452, 2
  %v1858 = vrot.slane %v1458, 2
  %v1859 = vsel %vm1814, %v1857, %v1858
  %v1860 = vrot.slane %v1597, 2
  %v1861 = vrot.slane %v1602, 2
  %v1862 = vsel %vm1814, %v1860, %v1861
  %1863 = vrot.lane.b32.xlu0 %v1817, 32
  %v1864 = vpop.permute.xlu0 %1863
  %1865 = vrot.lane.b32.xlu0 %v1820, 32
  %v1866 = vpop.permute.xlu0 %1865
  %1867 = vrot.lane.b32.xlu0 %v1816, 32
  %v1868 = vpop.permute.xlu0 %1867
  %1869 = vrot.lane.b32.xlu0 %v1819, 32
  %v1870 = vpop.permute.xlu0 %1869
  %1871 = vrot.lane.b32.xlu0 %v1823, 32
  %v1872 = vpop.permute.xlu0 %1871
  %1873 = vrot.lane.b32.xlu0 %v1826, 32
  %v1874 = vpop.permute.xlu0 %1873
  %1875 = vrot.lane.b32.xlu0 %v1822, 32
  %v1876 = vpop.permute.xlu0 %1875
  %1877 = vrot.lane.b32.xlu0 %v1825, 32
  %v1878 = vpop.permute.xlu0 %1877
  %1879 = vrot.lane.b32.xlu0 %v1829, 32
  %v1880 = vpop.permute.xlu0 %1879
  %1881 = vrot.lane.b32.xlu0 %v1832, 32
  %v1882 = vpop.permute.xlu0 %1881
  %1883 = vrot.lane.b32.xlu0 %v1828, 32
  %v1884 = vpop.permute.xlu0 %1883
  %1885 = vrot.lane.b32.xlu0 %v1831, 32
  %v1886 = vpop.permute.xlu0 %1885
  %1887 = vrot.lane.b32.xlu0 %v1835, 32
  %v1888 = vpop.permute.xlu0 %1887
  %1889 = vrot.lane.b32.xlu0 %v1838, 32
  %v1890 = vpop.permute.xlu0 %1889
  %1891 = vrot.lane.b32.xlu0 %v1834, 32
  %v1892 = vpop.permute.xlu0 %1891
  %1893 = vrot.lane.b32.xlu0 %v1837, 32
  %v1894 = vpop.permute.xlu0 %1893
  %1895 = vrot.lane.b32.xlu0 %v1841, 32
  %v1896 = vpop.permute.xlu0 %1895
  %1897 = vrot.lane.b32.xlu0 %v1844, 32
  %v1898 = vpop.permute.xlu0 %1897
  %1899 = vrot.lane.b32.xlu0 %v1840, 32
  %v1900 = vpop.permute.xlu0 %1899
  %1901 = vrot.lane.b32.xlu0 %v1843, 32
  %v1902 = vpop.permute.xlu0 %1901
  %1903 = vrot.lane.b32.xlu0 %v1847, 32
  %v1904 = vpop.permute.xlu0 %1903
  %1905 = vrot.lane.b32.xlu0 %v1850, 32
  %v1906 = vpop.permute.xlu0 %1905
  %1907 = vrot.lane.b32.xlu0 %v1846, 32
  %v1908 = vpop.permute.xlu0 %1907
  %1909 = vrot.lane.b32.xlu0 %v1849, 32
  %v1910 = vpop.permute.xlu0 %1909
  %1911 = vrot.lane.b32.xlu0 %v1853, 32
  %v1912 = vpop.permute.xlu0 %1911
  %1913 = vrot.lane.b32.xlu0 %v1856, 32
  %v1914 = vpop.permute.xlu0 %1913
  %1915 = vrot.lane.b32.xlu0 %v1852, 32
  %v1916 = vpop.permute.xlu0 %1915
  %1917 = vrot.lane.b32.xlu0 %v1855, 32
  %v1918 = vpop.permute.xlu0 %1917
  %1919 = vrot.lane.b32.xlu0 %v1859, 32
  %v1920 = vpop.permute.xlu0 %1919
  %1921 = vrot.lane.b32.xlu0 %v1862, 32
  %v1922 = vpop.permute.xlu0 %1921
  %1923 = vrot.lane.b32.xlu0 %v1858, 32
  %v1924 = vpop.permute.xlu0 %1923
  %1925 = vrot.lane.b32.xlu0 %v1861, 32
  %v1926 = vpop.permute.xlu0 %1925
  %v1927 = vsel %vm83, %v1864, %v1866
  %v1928 = vsel %vm83, %v1868, %v1870
  %v1929 = vsel %vm83, %v1872, %v1874
  %v1930 = vsel %vm83, %v1876, %v1878
  %v1931 = vsel %vm83, %v1880, %v1882
  %v1932 = vsel %vm83, %v1884, %v1886
  %v1933 = vsel %vm83, %v1888, %v1890
  %v1934 = vsel %vm83, %v1892, %v1894
  %v1935 = vsel %vm83, %v1896, %v1898
  %v1936 = vsel %vm83, %v1900, %v1902
  %v1937 = vsel %vm83, %v1904, %v1906
  %v1938 = vsel %vm83, %v1908, %v1910
  %v1939 = vsel %vm83, %v1912, %v1914
  %v1940 = vsel %vm83, %v1916, %v1918
  %v1941 = vsel %vm83, %v1920, %v1922
  %v1942 = vsel %vm83, %v1924, %v1926
  %v1959 = vadd.f32 %v1782, %v1927
  %v1960 = vadd.f32 %v1783, %v1928
  %v1961 = vadd.f32 %v1784, %v1929
  %v1962 = vadd.f32 %v1785, %v1930
  %v1963 = vadd.f32 %v1786, %v1931
  %v1964 = vadd.f32 %v1787, %v1932
  %v1965 = vadd.f32 %v1788, %v1933
  %v1966 = vadd.f32 %v1789, %v1934
  %v1967 = vadd.f32 %v1790, %v1935
  %v1968 = vadd.f32 %v1791, %v1936
  %v1969 = vadd.f32 %v1792, %v1937
  %v1970 = vadd.f32 %v1793, %v1938
  %v1971 = vadd.f32 %v1794, %v1939
  %v1972 = vadd.f32 %v1795, %v1940
  %v1973 = vadd.f32 %v1796, %v1941
  %v1974 = vadd.f32 %v1797, %v1942
  %v1975 = vld [vmem:[%s3] sm:$0x1]
  %v1977 = vlaneseq
  %v1978 = vshrl.u32 %v1977, 7
  %v1979 = vsub.s32 0, %v1978
  %v1980 = vrot.slane %v1975, %v1979
  %v1982 = vadd.f32 %v1959, %v1980
  %v1983 = vadd.f32 %v1960, %v1980
  %v1984 = vadd.f32 %v1961, %v1980
  %v1985 = vadd.f32 %v1962, %v1980
  %v1986 = vadd.f32 %v1963, %v1980
  %v1987 = vadd.f32 %v1964, %v1980
  %v1988 = vadd.f32 %v1965, %v1980
  %v1989 = vadd.f32 %v1966, %v1980
  %v1990 = vadd.f32 %v1967, %v1980
  %v1991 = vadd.f32 %v1968, %v1980
  %v1992 = vadd.f32 %v1969, %v1980
  %v1993 = vadd.f32 %v1970, %v1980
  %v1994 = vadd.f32 %v1971, %v1980
  %v1995 = vadd.f32 %v1972, %v1980
  %v1996 = vadd.f32 %v1973, %v1980
  %v1997 = vadd.f32 %v1974, %v1980
  %v1998 = vmax.f32 %v1982, 0.0
  %v1999 = vmax.f32 %v1983, 0.0
  %v2000 = vmax.f32 %v1984, 0.0
  %v2001 = vmax.f32 %v1985, 0.0
  %v2002 = vmax.f32 %v1986, 0.0
  %v2003 = vmax.f32 %v1987, 0.0
  %v2004 = vmax.f32 %v1988, 0.0
  %v2005 = vmax.f32 %v1989, 0.0
  %v2006 = vmax.f32 %v1990, 0.0
  %v2007 = vmax.f32 %v1991, 0.0
  %v2008 = vmax.f32 %v1992, 0.0
  %v2009 = vmax.f32 %v1993, 0.0
  %v2010 = vmax.f32 %v1994, 0.0
  %v2011 = vmax.f32 %v1995, 0.0
  %v2012 = vmax.f32 %v1996, 0.0
  %v2013 = vmax.f32 %v1997, 0.0
  %v2022 = vrot.slane %v1998, 1
  %v2023 = vrot.slane %v2000, 1
  %v2024 = vrot.slane %v2002, 1
  %v2025 = vrot.slane %v2004, 1
  %v2026 = vrot.slane %v2006, 1
  %v2027 = vrot.slane %v2008, 1
  %v2028 = vrot.slane %v2010, 1
  %v2029 = vrot.slane %v2012, 1
  %v2038 = vmax.f32 %v1998, %v2022
  %v2039 = vmax.f32 %v2000, %v2023
  %v2040 = vmax.f32 %v2002, %v2024
  %v2041 = vmax.f32 %v2004, %v2025
  %v2042 = vmax.f32 %v2006, %v2026
  %v2043 = vmax.f32 %v2008, %v2027
  %v2044 = vmax.f32 %v2010, %v2028
  %v2045 = vmax.f32 %v2012, %v2029
  %v2046 = vrot.slane %v1998, 2
  %v2047 = vrot.slane %v2000, 2
  %v2048 = vrot.slane %v2002, 2
  %v2049 = vrot.slane %v2004, 2
  %v2050 = vrot.slane %v2006, 2
  %v2051 = vrot.slane %v2008, 2
  %v2052 = vrot.slane %v2010, 2
  %v2053 = vrot.slane %v2012, 2
  %v2062 = vmax.f32 %v2038, %v2046
  %v2063 = vmax.f32 %v2039, %v2047
  %v2064 = vmax.f32 %v2040, %v2048
  %v2065 = vmax.f32 %v2041, %v2049
  %v2066 = vmax.f32 %v2042, %v2050
  %v2067 = vmax.f32 %v2043, %v2051
  %v2068 = vmax.f32 %v2044, %v2052
  %v2069 = vmax.f32 %v2045, %v2053
  %v2078 = vrot.slane %v1999, 1
  %v2079 = vrot.slane %v2001, 1
  %v2080 = vrot.slane %v2003, 1
  %v2081 = vrot.slane %v2005, 1
  %v2082 = vrot.slane %v2007, 1
  %v2083 = vrot.slane %v2009, 1
  %v2084 = vrot.slane %v2011, 1
  %v2085 = vrot.slane %v2013, 1
  %v2094 = vmax.f32 %v1998, %v2078
  %v2095 = vmax.f32 %v2000, %v2079
  %v2096 = vmax.f32 %v2002, %v2080
  %v2097 = vmax.f32 %v2004, %v2081
  %v2098 = vmax.f32 %v2006, %v2082
  %v2099 = vmax.f32 %v2008, %v2083
  %v2100 = vmax.f32 %v2010, %v2084
  %v2101 = vmax.f32 %v2012, %v2085
  %v2102 = vmax.f32 %v1999, %v2078
  %v2103 = vmax.f32 %v2001, %v2079
  %v2104 = vmax.f32 %v2003, %v2080
  %v2105 = vmax.f32 %v2005, %v2081
  %v2106 = vmax.f32 %v2007, %v2082
  %v2107 = vmax.f32 %v2009, %v2083
  %v2108 = vmax.f32 %v2011, %v2084
  %v2109 = vmax.f32 %v2013, %v2085
  %v2110 = vrot.slane %v1999, 2
  %v2111 = vrot.slane %v2001, 2
  %v2112 = vrot.slane %v2003, 2
  %v2113 = vrot.slane %v2005, 2
  %v2114 = vrot.slane %v2007, 2
  %v2115 = vrot.slane %v2009, 2
  %v2116 = vrot.slane %v2011, 2
  %v2117 = vrot.slane %v2013, 2
  %v2126 = vmax.f32 %v2102, %v2110
  %v2127 = vmax.f32 %v2103, %v2111
  %v2128 = vmax.f32 %v2104, %v2112
  %v2129 = vmax.f32 %v2105, %v2113
  %v2130 = vmax.f32 %v2106, %v2114
  %v2131 = vmax.f32 %v2107, %v2115
  %v2132 = vmax.f32 %v2108, %v2116
  %v2133 = vmax.f32 %v2109, %v2117
  %v2142 = vrot.slane %v2062, 1
  %v2143 = vrot.slane %v2063, 1
  %v2144 = vrot.slane %v2064, 1
  %v2145 = vrot.slane %v2065, 1
  %v2146 = vrot.slane %v2066, 1
  %v2147 = vrot.slane %v2067, 1
  %v2148 = vrot.slane %v2068, 1
  %v2149 = vrot.slane %v2069, 1
  %v2166 = vrot.slane %v2038, 2
  %v2167 = vrot.slane %v2039, 2
  %v2168 = vrot.slane %v2040, 2
  %v2169 = vrot.slane %v2041, 2
  %v2170 = vrot.slane %v2042, 2
  %v2171 = vrot.slane %v2043, 2
  %v2172 = vrot.slane %v2044, 2
  %v2173 = vrot.slane %v2045, 2
  %v2190 = vrot.slane %v2094, 3
  %v2191 = vrot.slane %v2095, 3
  %v2192 = vrot.slane %v2096, 3
  %v2193 = vrot.slane %v2097, 3
  %v2194 = vrot.slane %v2098, 3
  %v2195 = vrot.slane %v2099, 3
  %v2196 = vrot.slane %v2100, 3
  %v2197 = vrot.slane %v2101, 3
  %v2214 = vrot.slane %v2126, 3
  %v2215 = vrot.slane %v2127, 3
  %v2216 = vrot.slane %v2128, 3
  %v2217 = vrot.slane %v2129, 3
  %v2218 = vrot.slane %v2130, 3
  %v2219 = vrot.slane %v2131, 3
  %v2220 = vrot.slane %v2132, 3
  %v2221 = vrot.slane %v2133, 3
  %v2230 = vrot.slane %v2126, 4
  %v2231 = vrot.slane %v2127, 4
  %v2232 = vrot.slane %v2128, 4
  %v2233 = vrot.slane %v2129, 4
  %v2234 = vrot.slane %v2130, 4
  %v2235 = vrot.slane %v2131, 4
  %v2236 = vrot.slane %v2132, 4
  %v2237 = vrot.slane %v2133, 4
  %v2254 = vrot.slane %v2102, 5
  %v2255 = vrot.slane %v2103, 5
  %v2256 = vrot.slane %v2104, 5
  %v2257 = vrot.slane %v2105, 5
  %v2258 = vrot.slane %v2106, 5
  %v2259 = vrot.slane %v2107, 5
  %v2260 = vrot.slane %v2108, 5
  %v2261 = vrot.slane %v2109, 5
  %vm2270 = vcmask 1040384
  %v2271 = vsel %vm2270, %v2038, %v2062
  %v2272 = vsel %vm2270, %v2039, %v2063
  %v2273 = vsel %vm2270, %v2040, %v2064
  %v2274 = vsel %vm2270, %v2041, %v2065
  %v2275 = vsel %vm2270, %v2042, %v2066
  %v2276 = vsel %vm2270, %v2043, %v2067
  %v2277 = vsel %vm2270, %v2044, %v2068
  %v2278 = vsel %vm2270, %v2045, %v2069
  %vm2279 = vcmask 1041408
  %v2280 = vsel %vm2279, %v2271, %v2142
  %v2281 = vsel %vm2279, %v2272, %v2143
  %v2282 = vsel %vm2279, %v2273, %v2144
  %v2283 = vsel %vm2279, %v2274, %v2145
  %v2284 = vsel %vm2279, %v2275, %v2146
  %v2285 = vsel %vm2279, %v2276, %v2147
  %v2286 = vsel %vm2279, %v2277, %v2148
  %v2287 = vsel %vm2279, %v2278, %v2149
  %vm2288 = vcmask 1042432
  %v2289 = vsel %vm2288, %v2280, %v2166
  %v2290 = vsel %vm2288, %v2281, %v2167
  %v2291 = vsel %vm2288, %v2282, %v2168
  %v2292 = vsel %vm2288, %v2283, %v2169
  %v2293 = vsel %vm2288, %v2284, %v2170
  %v2294 = vsel %vm2288, %v2285, %v2171
  %v2295 = vsel %vm2288, %v2286, %v2172
  %v2296 = vsel %vm2288, %v2287, %v2173
  %vm2297 = vcmask 1043456
  %v2298 = vsel %vm2297, %v2289, %v2190
  %v2299 = vsel %vm2297, %v2290, %v2191
  %v2300 = vsel %vm2297, %v2291, %v2192
  %v2301 = vsel %vm2297, %v2292, %v2193
  %v2302 = vsel %vm2297, %v2293, %v2194
  %v2303 = vsel %vm2297, %v2294, %v2195
  %v2304 = vsel %vm2297, %v2295, %v2196
  %v2305 = vsel %vm2297, %v2296, %v2197
  %vm2306 = vcmask 1044480
  %v2307 = vsel %vm2306, %v2298, %v2214
  %v2308 = vsel %vm2306, %v2299, %v2215
  %v2309 = vsel %vm2306, %v2300, %v2216
  %v2310 = vsel %vm2306, %v2301, %v2217
  %v2311 = vsel %vm2306, %v2302, %v2218
  %v2312 = vsel %vm2306, %v2303, %v2219
  %v2313 = vsel %vm2306, %v2304, %v2220
  %v2314 = vsel %vm2306, %v2305, %v2221
  %v2315 = vsel %vm1814, %v2307, %v2230
  %v2316 = vsel %vm1814, %v2308, %v2231
  %v2317 = vsel %vm1814, %v2309, %v2232
  %v2318 = vsel %vm1814, %v2310, %v2233
  %v2319 = vsel %vm1814, %v2311, %v2234
  %v2320 = vsel %vm1814, %v2312, %v2235
  %v2321 = vsel %vm1814, %v2313, %v2236
  %v2322 = vsel %vm1814, %v2314, %v2237
  %v2323 = vsel %vm1637, %v2315, %v2254
  %v2324 = vsel %vm1637, %v2316, %v2255
  %v2325 = vsel %vm1637, %v2317, %v2256
  %v2326 = vsel %vm1637, %v2318, %v2257
  %v2327 = vsel %vm1637, %v2319, %v2258
  %v2328 = vsel %vm1637, %v2320, %v2259
  %v2329 = vsel %vm1637, %v2321, %v2260
  %v2330 = vsel %vm1637, %v2322, %v2261
  %2339 = vrot.lane.b32.xlu0 %v2323, 120
  %v2340 = vpop.permute.xlu0 %2339
  %2341 = vrot.lane.b32.xlu0 %v2324, 120
  %v2342 = vpop.permute.xlu0 %2341
  %2343 = vrot.lane.b32.xlu0 %v2325, 120
  %v2344 = vpop.permute.xlu0 %2343
  %2345 = vrot.lane.b32.xlu0 %v2326, 120
  %v2346 = vpop.permute.xlu0 %2345
  %2347 = vrot.lane.b32.xlu0 %v2327, 120
  %v2348 = vpop.permute.xlu0 %2347
  %2349 = vrot.lane.b32.xlu0 %v2328, 120
  %v2350 = vpop.permute.xlu0 %2349
  %2351 = vrot.lane.b32.xlu0 %v2329, 120
  %v2352 = vpop.permute.xlu0 %2351
  %2353 = vrot.lane.b32.xlu0 %v2330, 120
  %v2354 = vpop.permute.xlu0 %2353
  %v2363 = vmax.f32 %v2323, %v2340
  %v2364 = vmax.f32 %v2324, %v2342
  %v2365 = vmax.f32 %v2325, %v2344
  %v2366 = vmax.f32 %v2326, %v2346
  %v2367 = vmax.f32 %v2327, %v2348
  %v2368 = vmax.f32 %v2328, %v2350
  %v2369 = vmax.f32 %v2329, %v2352
  %v2370 = vmax.f32 %v2330, %v2354
  %2371 = vrot.lane.b32.xlu0 %v2323, 112
  %v2372 = vpop.permute.xlu0 %2371
  %2373 = vrot.lane.b32.xlu0 %v2324, 112
  %v2374 = vpop.permute.xlu0 %2373
  %2375 = vrot.lane.b32.xlu0 %v2325, 112
  %v2376 = vpop.permute.xlu0 %2375
  %2377 = vrot.lane.b32.xlu0 %v2326, 112
  %v2378 = vpop.permute.xlu0 %2377
  %2379 = vrot.lane.b32.xlu0 %v2327, 112
  %v2380 = vpop.permute.xlu0 %2379
  %2381 = vrot.lane.b32.xlu0 %v2328, 112
  %v2382 = vpop.permute.xlu0 %2381
  %2383 = vrot.lane.b32.xlu0 %v2329, 112
  %v2384 = vpop.permute.xlu0 %2383
  %2385 = vrot.lane.b32.xlu0 %v2330, 112
  %v2386 = vpop.permute.xlu0 %2385
  %v2395 = vmax.f32 %v2363, %v2372
  %v2396 = vmax.f32 %v2364, %v2374
  %v2397 = vmax.f32 %v2365, %v2376
  %v2398 = vmax.f32 %v2366, %v2378
  %v2399 = vmax.f32 %v2367, %v2380
  %v2400 = vmax.f32 %v2368, %v2382
  %v2401 = vmax.f32 %v2369, %v2384
  %v2402 = vmax.f32 %v2370, %v2386
  %2411 = vrot.lane.b32.xlu0 %v2395, 120
  %v2412 = vpop.permute.xlu0 %2411
  %2413 = vrot.lane.b32.xlu0 %v2396, 120
  %v2414 = vpop.permute.xlu0 %2413
  %2415 = vrot.lane.b32.xlu0 %v2397, 120
  %v2416 = vpop.permute.xlu0 %2415
  %2417 = vrot.lane.b32.xlu0 %v2398, 120
  %v2418 = vpop.permute.xlu0 %2417
  %2419 = vrot.lane.b32.xlu0 %v2399, 120
  %v2420 = vpop.permute.xlu0 %2419
  %2421 = vrot.lane.b32.xlu0 %v2400, 120
  %v2422 = vpop.permute.xlu0 %2421
  %2423 = vrot.lane.b32.xlu0 %v2401, 120
  %v2424 = vpop.permute.xlu0 %2423
  %2425 = vrot.lane.b32.xlu0 %v2402, 120
  %v2426 = vpop.permute.xlu0 %2425
  %2443 = vrot.lane.b32.xlu0 %v2363, 112
  %v2444 = vpop.permute.xlu0 %2443
  %2445 = vrot.lane.b32.xlu0 %v2364, 112
  %v2446 = vpop.permute.xlu0 %2445
  %2447 = vrot.lane.b32.xlu0 %v2365, 112
  %v2448 = vpop.permute.xlu0 %2447
  %2449 = vrot.lane.b32.xlu0 %v2366, 112
  %v2450 = vpop.permute.xlu0 %2449
  %2451 = vrot.lane.b32.xlu0 %v2367, 112
  %v2452 = vpop.permute.xlu0 %2451
  %2453 = vrot.lane.b32.xlu0 %v2368, 112
  %v2454 = vpop.permute.xlu0 %2453
  %2455 = vrot.lane.b32.xlu0 %v2369, 112
  %v2456 = vpop.permute.xlu0 %2455
  %2457 = vrot.lane.b32.xlu0 %v2370, 112
  %v2458 = vpop.permute.xlu0 %2457
  %2467 = vrot.lane.b32.xlu0 %v2363, 104
  %v2468 = vpop.permute.xlu0 %2467
  %2469 = vrot.lane.b32.xlu0 %v2364, 104
  %v2470 = vpop.permute.xlu0 %2469
  %2471 = vrot.lane.b32.xlu0 %v2365, 104
  %v2472 = vpop.permute.xlu0 %2471
  %2473 = vrot.lane.b32.xlu0 %v2366, 104
  %v2474 = vpop.permute.xlu0 %2473
  %2475 = vrot.lane.b32.xlu0 %v2367, 104
  %v2476 = vpop.permute.xlu0 %2475
  %2477 = vrot.lane.b32.xlu0 %v2368, 104
  %v2478 = vpop.permute.xlu0 %2477
  %2479 = vrot.lane.b32.xlu0 %v2369, 104
  %v2480 = vpop.permute.xlu0 %2479
  %2481 = vrot.lane.b32.xlu0 %v2370, 104
  %v2482 = vpop.permute.xlu0 %2481
  %2491 = vrot.lane.b32.xlu0 %v2395, 104
  %v2492 = vpop.permute.xlu0 %2491
  %2493 = vrot.lane.b32.xlu0 %v2396, 104
  %v2494 = vpop.permute.xlu0 %2493
  %2495 = vrot.lane.b32.xlu0 %v2397, 104
  %v2496 = vpop.permute.xlu0 %2495
  %2497 = vrot.lane.b32.xlu0 %v2398, 104
  %v2498 = vpop.permute.xlu0 %2497
  %2499 = vrot.lane.b32.xlu0 %v2399, 104
  %v2500 = vpop.permute.xlu0 %2499
  %2501 = vrot.lane.b32.xlu0 %v2400, 104
  %v2502 = vpop.permute.xlu0 %2501
  %2503 = vrot.lane.b32.xlu0 %v2401, 104
  %v2504 = vpop.permute.xlu0 %2503
  %2505 = vrot.lane.b32.xlu0 %v2402, 104
  %v2506 = vpop.permute.xlu0 %2505
  %2515 = vrot.lane.b32.xlu0 %v2395, 96
  %v2516 = vpop.permute.xlu0 %2515
  %2517 = vrot.lane.b32.xlu0 %v2396, 96
  %v2518 = vpop.permute.xlu0 %2517
  %2519 = vrot.lane.b32.xlu0 %v2397, 96
  %v2520 = vpop.permute.xlu0 %2519
  %2521 = vrot.lane.b32.xlu0 %v2398, 96
  %v2522 = vpop.permute.xlu0 %2521
  %2523 = vrot.lane.b32.xlu0 %v2399, 96
  %v2524 = vpop.permute.xlu0 %2523
  %2525 = vrot.lane.b32.xlu0 %v2400, 96
  %v2526 = vpop.permute.xlu0 %2525
  %2527 = vrot.lane.b32.xlu0 %v2401, 96
  %v2528 = vpop.permute.xlu0 %2527
  %2529 = vrot.lane.b32.xlu0 %v2402, 96
  %v2530 = vpop.permute.xlu0 %2529
  %2539 = vrot.lane.b32.xlu0 %v2363, 88
  %v2540 = vpop.permute.xlu0 %2539
  %2541 = vrot.lane.b32.xlu0 %v2364, 88
  %v2542 = vpop.permute.xlu0 %2541
  %2543 = vrot.lane.b32.xlu0 %v2365, 88
  %v2544 = vpop.permute.xlu0 %2543
  %2545 = vrot.lane.b32.xlu0 %v2366, 88
  %v2546 = vpop.permute.xlu0 %2545
  %2547 = vrot.lane.b32.xlu0 %v2367, 88
  %v2548 = vpop.permute.xlu0 %2547
  %2549 = vrot.lane.b32.xlu0 %v2368, 88
  %v2550 = vpop.permute.xlu0 %2549
  %2551 = vrot.lane.b32.xlu0 %v2369, 88
  %v2552 = vpop.permute.xlu0 %2551
  %2553 = vrot.lane.b32.xlu0 %v2370, 88
  %v2554 = vpop.permute.xlu0 %2553
  %vm2563 = vcmask 64512
  %v2564 = vsel %vm2563, %v2363, %v2395
  %v2565 = vsel %vm2563, %v2364, %v2396
  %v2566 = vsel %vm2563, %v2365, %v2397
  %v2567 = vsel %vm2563, %v2366, %v2398
  %v2568 = vsel %vm2563, %v2367, %v2399
  %v2569 = vsel %vm2563, %v2368, %v2400
  %v2570 = vsel %vm2563, %v2369, %v2401
  %v2571 = vsel %vm2563, %v2370, %v2402
  %v2572 = vsel %vm1250, %v2564, %v2412
  %v2573 = vsel %vm1250, %v2565, %v2414
  %v2574 = vsel %vm1250, %v2566, %v2416
  %v2575 = vsel %vm1250, %v2567, %v2418
  %v2576 = vsel %vm1250, %v2568, %v2420
  %v2577 = vsel %vm1250, %v2569, %v2422
  %v2578 = vsel %vm1250, %v2570, %v2424
  %v2579 = vsel %vm1250, %v2571, %v2426
  %vm2580 = vcmask 195584
  %v2581 = vsel %vm2580, %v2572, %v2444
  %v2582 = vsel %vm2580, %v2573, %v2446
  %v2583 = vsel %vm2580, %v2574, %v2448
  %v2584 = vsel %vm2580, %v2575, %v2450
  %v2585 = vsel %vm2580, %v2576, %v2452
  %v2586 = vsel %vm2580, %v2577, %v2454
  %v2587 = vsel %vm2580, %v2578, %v2456
  %v2588 = vsel %vm2580, %v2579, %v2458
  %v2589 = vsel %vm83, %v2581, %v2468
  %v2590 = vsel %vm83, %v2582, %v2470
  %v2591 = vsel %vm83, %v2583, %v2472
  %v2592 = vsel %vm83, %v2584, %v2474
  %v2593 = vsel %vm83, %v2585, %v2476
  %v2594 = vsel %vm83, %v2586, %v2478
  %v2595 = vsel %vm83, %v2587, %v2480
  %v2596 = vsel %vm83, %v2588, %v2482
  %vm2597 = vcmask 326656
  %v2598 = vsel %vm2597, %v2589, %v2492
  %v2599 = vsel %vm2597, %v2590, %v2494
  %v2600 = vsel %vm2597, %v2591, %v2496
  %v2601 = vsel %vm2597, %v2592, %v2498
  %v2602 = vsel %vm2597, %v2593, %v2500
  %v2603 = vsel %vm2597, %v2594, %v2502
  %v2604 = vsel %vm2597, %v2595, %v2504
  %v2605 = vsel %vm2597, %v2596, %v2506
  %vm2606 = vcmask 392192
  %v2607 = vsel %vm2606, %v2598, %v2516
  %v2608 = vsel %vm2606, %v2599, %v2518
  %v2609 = vsel %vm2606, %v2600, %v2520
  %v2610 = vsel %vm2606, %v2601, %v2522
  %v2611 = vsel %vm2606, %v2602, %v2524
  %v2612 = vsel %vm2606, %v2603, %v2526
  %v2613 = vsel %vm2606, %v2604, %v2528
  %v2614 = vsel %vm2606, %v2605, %v2530
  %vm2615 = vcmask 457728
  %v2616 = vsel %vm2615, %v2607, %v2540
  %v2617 = vsel %vm2615, %v2608, %v2542
  %v2618 = vsel %vm2615, %v2609, %v2544
  %v2619 = vsel %vm2615, %v2610, %v2546
  %v2620 = vsel %vm2615, %v2611, %v2548
  %v2621 = vsel %vm2615, %v2612, %v2550
  %v2622 = vsel %vm2615, %v2613, %v2552
  %v2623 = vsel %vm2615, %v2614, %v2554
  %v2624 = vld [vmem:[%s4] sm:$0xff]
  %v2625 = vld [vmem:[%s4 + $0x8] sm:$0xff]
  %v2626 = vld [vmem:[%s4 + $0x10] sm:$0xff]
  %v2627 = vld [vmem:[%s4 + $0x18] sm:$0xff]
  %v2628 = vld [vmem:[%s4 + $0x20] sm:$0xff]
  %v2629 = vld [vmem:[%s4 + $0x28] sm:$0xff]
  %v2630 = vld [vmem:[%s4 + $0x30] sm:$0xff]
  %v2631 = vld [vmem:[%s4 + $0x38] sm:$0xff]
  %v2632 = vld [vmem:[%s4 + $0x40] sm:$0xff]
  %v2633 = vld [vmem:[%s4 + $0x48] sm:$0xff]
  %v2634 = vld [vmem:[%s4 + $0x50] sm:$0xff]
  %v2635 = vld [vmem:[%s4 + $0x58] sm:$0xff]
  %v2636 = vld [vmem:[%s4 + $0x60] sm:$0xff]
  %v2637 = vld [vmem:[%s4 + $0x68] sm:$0xff]
  %v2638 = vld [vmem:[%s4 + $0x70] sm:$0xff]
  %v2639 = vld [vmem:[%s4 + $0x78] sm:$0xff]
  %v2640 = vld [vmem:[%s4 + $0x80] sm:$0xff]
  %v2641 = vld [vmem:[%s4 + $0x88] sm:$0xff]
  %v2642 = vld [vmem:[%s4 + $0x90] sm:$0xff]
  %v2643 = vld [vmem:[%s4 + $0x98] sm:$0xff]
  %v2644 = vld [vmem:[%s4 + $0xa0] sm:$0xff]
  %v2645 = vld [vmem:[%s4 + $0xa8] sm:$0xff]
  %v2646 = vld [vmem:[%s4 + $0xb0] sm:$0xff]
  %v2647 = vld [vmem:[%s4 + $0xb8] sm:$0xff]
  %vm2648 = vcmask 523264
  %v2650 = vsel %vm2648, %v2616, 0
  %v2653 = vsel %vm2648, %v2617, 0
  %v2656 = vsel %vm2648, %v2618, 0
  %v2659 = vsel %vm2648, %v2619, 0
  %v2662 = vsel %vm2648, %v2620, 0
  %v2665 = vsel %vm2648, %v2621, 0
  %v2668 = vsel %vm2648, %v2622, 0
  %v2671 = vsel %vm2648, %v2623, 0
  %2673 = vmatprep.subr.mxu0 %v2625
  %2674 = vmatpush1.msra.mxu0 %v2624
  %2675 = vmatprep.subr.mxu0 %v2628
  %2676 = vmatpush1.msra.mxu0 %v2627
  %2677 = vmatprep.subr.mxu0 %v2631
  %2678 = vmatpush1.msra.mxu0 %v2630
  %2679 = vmatprep.subr.mxu0 %v2634
  %2680 = vmatpush1.msra.mxu0 %v2633
  %2681 = vmatprep.subr.mxu0 %v2637
  %2682 = vmatpush1.msra.mxu0 %v2636
  %2683 = vmatprep.subr.mxu0 %v2640
  %2684 = vmatpush1.msra.mxu0 %v2639
  %2685 = vmatprep.subr.mxu0 %v2643
  %2686 = vmatpush1.msra.mxu0 %v2642
  %2687 = vmatprep.subr.mxu0 %v2646
  %2688 = vmatpush1.msra.mxu0 %v2645
  %2689 = vmatprep.subr.mxu0 0.0
  %2690 = vmatpush1.msra.mxu0 0.0
  %2691 = vmatprep.subr.mxu0 0.0
  %2692 = vmatpush1.msra.mxu0 0.0
  %2693 = vmatprep.subr.mxu0 0.0
  %2694 = vmatpush1.msra.mxu0 0.0
  %2695 = vmatprep.subr.mxu0 0.0
  %2696 = vmatpush1.msra.mxu0 0.0
  %2697 = vmatprep.subr.mxu0 0.0
  %2698 = vmatpush1.msra.mxu0 0.0
  %2699 = vmatprep.subr.mxu0 0.0
  %2700 = vmatpush1.msra.mxu0 0.0
  %2701 = vmatprep.subr.mxu0 0.0
  %2702 = vmatpush1.msra.mxu0 0.0
  %2703 = vmatprep.subr.mxu0 0.0
  %2704 = vmatpush1.msra.mxu0 0.0
  %2705 = vmatprep.subr.mxu0 0.0
  %2706 = vmatpush1.msra.mxu0 0.0
  %2707 = vmatprep.subr.mxu0 0.0
  %2708 = vmatpush1.msra.mxu0 0.0
  %2709 = vmatprep.subr.mxu0 0.0
  %2710 = vmatpush1.msra.mxu0 0.0
  %2711 = vmatprep.subr.mxu0 0.0
  %2712 = vmatpush1.msra.mxu0 0.0
  %2713 = vmatprep.subr.mxu0 0.0
  %2714 = vmatpush1.msra.mxu0 0.0
  %2715 = vmatprep.subr.mxu0 0.0
  %2716 = vmatpush1.msra.mxu0 0.0
  %2717 = vmatprep.subr.mxu0 0.0
  %2718 = vmatpush1.msra.mxu0 0.0
  %2719 = vmatprep.subr.mxu0 0.0
  %2720 = vmatpush1.msra.mxu0 0.0
  %2721 = vmatprep.subr.mxu0 0.0
  %2722 = vmatpush1.msra.mxu0 0.0
  %2723 = vmatprep.subr.mxu0 0.0
  %2724 = vmatpush1.msra.mxu0 0.0
  %2725 = vmatprep.subr.mxu0 0.0
  %2726 = vmatpush1.msra.mxu0 0.0
  %2727 = vmatprep.subr.mxu0 0.0
  %2728 = vmatpush1.msra.mxu0 0.0
  %2729 = vmatprep.subr.mxu0 0.0
  %2730 = vmatpush1.msra.mxu0 0.0
  %2731 = vmatprep.subr.mxu0 0.0
  %2732 = vmatpush1.msra.mxu0 0.0
  %2733 = vmatprep.subr.mxu0 0.0
  %2734 = vmatpush1.msra.mxu0 0.0
  %2735 = vmatprep.subr.mxu0 0.0
  %2736 = vmatpush1.msra.mxu0 0.0
  %2737 = vmatprep.mubr.f32.mxu0 0.0
  %2738 = vmatmul.mubr.f32.gmra.mrb[0].mxu0 %v2650
  %v2739 = vpop.f32.mrb[0].mxu0
  %v2740 = vadd.f32 0.0, %v2739
  %v2741 = vpop.f32.mrb[0].mxu0
  %v2742 = vadd.f32 0.0, %v2741
  %2743 = vmatprep.mubr.f32.mxu0 0.0
  %2744 = vmatmul.mubr.f32.gmra.mrb[0].mxu0 %v2653
  %v2745 = vpop.f32.mrb[0].mxu0
  %v2746 = vadd.f32 0.0, %v2745
  %v2747 = vpop.f32.mrb[0].mxu0
  %v2748 = vadd.f32 0.0, %v2747
  %2749 = vmatprep.mubr.f32.mxu0 0.0
  %2750 = vmatmul.mubr.f32.gmra.mrb[0].mxu0 %v2656
  %v2751 = vpop.f32.mrb[0].mxu0
  %v2752 = vadd.f32 0.0, %v2751
  %v2753 = vpop.f32.mrb[0].mxu0
  %v2754 = vadd.f32 0.0, %v2753
  %2755 = vmatprep.mubr.f32.mxu0 0.0
  %2756 = vmatmul.mubr.f32.gmra.mrb[0].mxu0 %v2659
  %v2757 = vpop.f32.mrb[0].mxu0
  %v2758 = vadd.f32 0.0, %v2757
  %v2759 = vpop.f32.mrb[0].mxu0
  %v2760 = vadd.f32 0.0, %v2759
  %2761 = vmatprep.mubr.f32.mxu0 0.0
  %2762 = vmatmul.mubr.f32.gmra.mrb[0].mxu0 %v2662
  %v2763 = vpop.f32.mrb[0].mxu0
  %v2764 = vadd.f32 0.0, %v2763
  %v2765 = vpop.f32.mrb[0].mxu0
  %v2766 = vadd.f32 0.0, %v2765
  %2767 = vmatprep.mubr.f32.mxu0 0.0
  %2768 = vmatmul.mubr.f32.gmra.mrb[0].mxu0 %v2665
  %v2769 = vpop.f32.mrb[0].mxu0
  %v2770 = vadd.f32 0.0, %v2769
  %v2771 = vpop.f32.mrb[0].mxu0
  %v2772 = vadd.f32 0.0, %v2771
  %2773 = vmatprep.mubr.f32.mxu0 0.0
  %2774 = vmatmul.mubr.f32.gmra.mrb[0].mxu0 %v2668
  %v2775 = vpop.f32.mrb[0].mxu0
  %v2776 = vadd.f32 0.0, %v2775
  %v2777 = vpop.f32.mrb[0].mxu0
  %v2778 = vadd.f32 0.0, %v2777
  %2779 = vmatprep.mubr.f32.mxu0 0.0
  %2780 = vmatmul.mubr.f32.gmra.mrb[0].mxu0 %v2671
  %v2781 = vpop.f32.mrb[0].mxu0
  %v2782 = vadd.f32 0.0, %v2781
  %v2783 = vpop.f32.mrb[0].mxu0
  %v2784 = vadd.f32 0.0, %v2783
  %2785 = vdwg.mxu0
  %2786 = vmatprep.subr.mxu0 0.0
  %2787 = vmatpush1.msra.mxu0 %v2626
  %2788 = vmatprep.subr.mxu0 0.0
  %2789 = vmatpush1.msra.mxu0 %v2629
  %2790 = vmatprep.subr.mxu0 0.0
  %2791 = vmatpush1.msra.mxu0 %v2632
  %2792 = vmatprep.subr.mxu0 0.0
  %2793 = vmatpush1.msra.mxu0 %v2635
  %2794 = vmatprep.subr.mxu0 0.0
  %2795 = vmatpush1.msra.mxu0 %v2638
  %2796 = vmatprep.subr.mxu0 0.0
  %2797 = vmatpush1.msra.mxu0 %v2641
  %2798 = vmatprep.subr.mxu0 0.0
  %2799 = vmatpush1.msra.mxu0 %v2644
  %2800 = vmatprep.subr.mxu0 0.0
  %2801 = vmatpush1.msra.mxu0 %v2647
  %2802 = vmatprep.subr.mxu0 0.0
  %2803 = vmatpush1.msra.mxu0 0.0
  %2804 = vmatprep.subr.mxu0 0.0
  %2805 = vmatpush1.msra.mxu0 0.0
  %2806 = vmatprep.subr.mxu0 0.0
  %2807 = vmatpush1.msra.mxu0 0.0
  %2808 = vmatprep.subr.mxu0 0.0
  %2809 = vmatpush1.msra.mxu0 0.0
  %2810 = vmatprep.subr.mxu0 0.0
  %2811 = vmatpush1.msra.mxu0 0.0
  %2812 = vmatprep.subr.mxu0 0.0
  %2813 = vmatpush1.msra.mxu0 0.0
  %2814 = vmatprep.subr.mxu0 0.0
  %2815 = vmatpush1.msra.mxu0 0.0
  %2816 = vmatprep.subr.mxu0 0.0
  %2817 = vmatpush1.msra.mxu0 0.0
  %2818 = vmatprep.subr.mxu0 0.0
  %2819 = vmatpush1.msra.mxu0 0.0
  %2820 = vmatprep.subr.mxu0 0.0
  %2821 = vmatpush1.msra.mxu0 0.0
  %2822 = vmatprep.subr.mxu0 0.0
  %2823 = vmatpush1.msra.mxu0 0.0
  %2824 = vmatprep.subr.mxu0 0.0
  %2825 = vmatpush1.msra.mxu0 0.0
  %2826 = vmatprep.subr.mxu0 0.0
  %2827 = vmatpush1.msra.mxu0 0.0
  %2828 = vmatprep.subr.mxu0 0.0
  %2829 = vmatpush1.msra.mxu0 0.0
  %2830 = vmatprep.subr.mxu0 0.0
  %2831 = vmatpush1.msra.mxu0 0.0
  %2832 = vmatprep.subr.mxu0 0.0
  %2833 = vmatpush1.msra.mxu0 0.0
  %2834 = vmatprep.subr.mxu0 0.0
  %2835 = vmatpush1.msra.mxu0 0.0
  %2836 = vmatprep.subr.mxu0 0.0
  %2837 = vmatpush1.msra.mxu0 0.0
  %2838 = vmatprep.subr.mxu0 0.0
  %2839 = vmatpush1.msra.mxu0 0.0
  %2840 = vmatprep.subr.mxu0 0.0
  %2841 = vmatpush1.msra.mxu0 0.0
  %2842 = vmatprep.subr.mxu0 0.0
  %2843 = vmatpush1.msra.mxu0 0.0
  %2844 = vmatprep.subr.mxu0 0.0
  %2845 = vmatpush1.msra.mxu0 0.0
  %2846 = vmatprep.subr.mxu0 0.0
  %2847 = vmatpush1.msra.mxu0 0.0
  %2848 = vmatprep.subr.mxu0 0.0
  %2849 = vmatpush1.msra.mxu0 0.0
  %2850 = vmatprep.mubr.f32.mxu0 0.0
  %2851 = vmatmul.mubr.f32.gmra.mrb[0].mxu0 %v2650
  %v2852 = vpop.f32.mrb[0].mxu0
  %v2853 = vadd.f32 0.0, %v2852
  %v2854 = vpop.f32.mrb[0].mxu0
  %2855 = vmatprep.mubr.f32.mxu0 0.0
  %2856 = vmatmul.mubr.f32.gmra.mrb[0].mxu0 %v2653
  %v2857 = vpop.f32.mrb[0].mxu0
  %v2858 = vadd.f32 0.0, %v2857
  %v2859 = vpop.f32.mrb[0].mxu0
  %2860 = vmatprep.mubr.f32.mxu0 0.0
  %2861 = vmatmul.mubr.f32.gmra.mrb[0].mxu0 %v2656
  %v2862 = vpop.f32.mrb[0].mxu0
  %v2863 = vadd.f32 0.0, %v2862
  %v2864 = vpop.f32.mrb[0].mxu0
  %2865 = vmatprep.mubr.f32.mxu0 0.0
  %2866 = vmatmul.mubr.f32.gmra.mrb[0].mxu0 %v2659
  %v2867 = vpop.f32.mrb[0].mxu0
  %v2868 = vadd.f32 0.0, %v2867
  %v2869 = vpop.f32.mrb[0].mxu0
  %2870 = vmatprep.mubr.f32.mxu0 0.0
  %2871 = vmatmul.mubr.f32.gmra.mrb[0].mxu0 %v2662
  %v2872 = vpop.f32.mrb[0].mxu0
  %v2873 = vadd.f32 0.0, %v2872
  %v2874 = vpop.f32.mrb[0].mxu0
  %2875 = vmatprep.mubr.f32.mxu0 0.0
  %2876 = vmatmul.mubr.f32.gmra.mrb[0].mxu0 %v2665
  %v2877 = vpop.f32.mrb[0].mxu0
  %v2878 = vadd.f32 0.0, %v2877
  %v2879 = vpop.f32.mrb[0].mxu0
  %2880 = vmatprep.mubr.f32.mxu0 0.0
  %2881 = vmatmul.mubr.f32.gmra.mrb[0].mxu0 %v2668
  %v2882 = vpop.f32.mrb[0].mxu0
  %v2883 = vadd.f32 0.0, %v2882
  %v2884 = vpop.f32.mrb[0].mxu0
  %2885 = vmatprep.mubr.f32.mxu0 0.0
  %2886 = vmatmul.mubr.f32.gmra.mrb[0].mxu0 %v2671
  %v2887 = vpop.f32.mrb[0].mxu0
  %v2888 = vadd.f32 0.0, %v2887
  %v2889 = vpop.f32.mrb[0].mxu0
  %2890 = vdwg.mxu0
  %v2907 = vrot.slane %v2740, 1
  %v2908 = vrot.slane %v2742, 1
  %v2909 = vrot.slane %v2746, 1
  %v2910 = vrot.slane %v2748, 1
  %v2911 = vrot.slane %v2752, 1
  %v2912 = vrot.slane %v2754, 1
  %v2913 = vrot.slane %v2758, 1
  %v2914 = vrot.slane %v2760, 1
  %v2915 = vrot.slane %v2764, 1
  %v2916 = vrot.slane %v2766, 1
  %v2917 = vrot.slane %v2770, 1
  %v2918 = vrot.slane %v2772, 1
  %v2919 = vrot.slane %v2776, 1
  %v2920 = vrot.slane %v2778, 1
  %v2921 = vrot.slane %v2782, 1
  %v2922 = vrot.slane %v2784, 1
  %2923 = vrot.lane.b32.xlu0 %v2907, 32
  %v2924 = vpop.permute.xlu0 %2923
  %2925 = vrot.lane.b32.xlu0 %v2908, 32
  %v2926 = vpop.permute.xlu0 %2925
  %2927 = vrot.lane.b32.xlu0 %v2909, 32
  %v2928 = vpop.permute.xlu0 %2927
  %2929 = vrot.lane.b32.xlu0 %v2910, 32
  %v2930 = vpop.permute.xlu0 %2929
  %2931 = vrot.lane.b32.xlu0 %v2911, 32
  %v2932 = vpop.permute.xlu0 %2931
  %2933 = vrot.lane.b32.xlu0 %v2912, 32
  %v2934 = vpop.permute.xlu0 %2933
  %2935 = vrot.lane.b32.xlu0 %v2913, 32
  %v2936 = vpop.permute.xlu0 %2935
  %2937 = vrot.lane.b32.xlu0 %v2914, 32
  %v2938 = vpop.permute.xlu0 %2937
  %2939 = vrot.lane.b32.xlu0 %v2915, 32
  %v2940 = vpop.permute.xlu0 %2939
  %2941 = vrot.lane.b32.xlu0 %v2916, 32
  %v2942 = vpop.permute.xlu0 %2941
  %2943 = vrot.lane.b32.xlu0 %v2917, 32
  %v2944 = vpop.permute.xlu0 %2943
  %2945 = vrot.lane.b32.xlu0 %v2918, 32
  %v2946 = vpop.permute.xlu0 %2945
  %2947 = vrot.lane.b32.xlu0 %v2919, 32
  %v2948 = vpop.permute.xlu0 %2947
  %2949 = vrot.lane.b32.xlu0 %v2920, 32
  %v2950 = vpop.permute.xlu0 %2949
  %2951 = vrot.lane.b32.xlu0 %v2921, 32
  %v2952 = vpop.permute.xlu0 %2951
  %2953 = vrot.lane.b32.xlu0 %v2922, 32
  %v2954 = vpop.permute.xlu0 %2953
  %v2955 = vsel %vm83, %v2924, %v2926
  %v2956 = vsel %vm83, %v2928, %v2930
  %v2957 = vsel %vm83, %v2932, %v2934
  %v2958 = vsel %vm83, %v2936, %v2938
  %v2959 = vsel %vm83, %v2940, %v2942
  %v2960 = vsel %vm83, %v2944, %v2946
  %v2961 = vsel %vm83, %v2948, %v2950
  %v2962 = vsel %vm83, %v2952, %v2954
  %v2971 = vadd.f32 %v2740, %v2955
  %v2972 = vadd.f32 %v2746, %v2956
  %v2973 = vadd.f32 %v2752, %v2957
  %v2974 = vadd.f32 %v2758, %v2958
  %v2975 = vadd.f32 %v2764, %v2959
  %v2976 = vadd.f32 %v2770, %v2960
  %v2977 = vadd.f32 %v2776, %v2961
  %v2978 = vadd.f32 %v2782, %v2962
  %v2987 = vrot.slane %v2742, 2
  %v2988 = vrot.slane %v2853, 2
  %v2989 = vrot.slane %v2748, 2
  %v2990 = vrot.slane %v2858, 2
  %v2991 = vrot.slane %v2754, 2
  %v2992 = vrot.slane %v2863, 2
  %v2993 = vrot.slane %v2760, 2
  %v2994 = vrot.slane %v2868, 2
  %v2995 = vrot.slane %v2766, 2
  %v2996 = vrot.slane %v2873, 2
  %v2997 = vrot.slane %v2772, 2
  %v2998 = vrot.slane %v2878, 2
  %v2999 = vrot.slane %v2778, 2
  %v3000 = vrot.slane %v2883, 2
  %v3001 = vrot.slane %v2784, 2
  %v3002 = vrot.slane %v2888, 2
  %3003 = vrot.lane.b32.xlu0 %v2987, 64
  %v3004 = vpop.permute.xlu0 %3003
  %3005 = vrot.lane.b32.xlu0 %v2988, 64
  %v3006 = vpop.permute.xlu0 %3005
  %3007 = vrot.lane.b32.xlu0 %v2989, 64
  %v3008 = vpop.permute.xlu0 %3007
  %3009 = vrot.lane.b32.xlu0 %v2990, 64
  %v3010 = vpop.permute.xlu0 %3009
  %3011 = vrot.lane.b32.xlu0 %v2991, 64
  %v3012 = vpop.permute.xlu0 %3011
  %3013 = vrot.lane.b32.xlu0 %v2992, 64
  %v3014 = vpop.permute.xlu0 %3013
  %3015 = vrot.lane.b32.xlu0 %v2993, 64
  %v3016 = vpop.permute.xlu0 %3015
  %3017 = vrot.lane.b32.xlu0 %v2994, 64
  %v3018 = vpop.permute.xlu0 %3017
  %3019 = vrot.lane.b32.xlu0 %v2995, 64
  %v3020 = vpop.permute.xlu0 %3019
  %3021 = vrot.lane.b32.xlu0 %v2996, 64
  %v3022 = vpop.permute.xlu0 %3021
  %3023 = vrot.lane.b32.xlu0 %v2997, 64
  %v3024 = vpop.permute.xlu0 %3023
  %3025 = vrot.lane.b32.xlu0 %v2998, 64
  %v3026 = vpop.permute.xlu0 %3025
  %3027 = vrot.lane.b32.xlu0 %v2999, 64
  %v3028 = vpop.permute.xlu0 %3027
  %3029 = vrot.lane.b32.xlu0 %v3000, 64
  %v3030 = vpop.permute.xlu0 %3029
  %3031 = vrot.lane.b32.xlu0 %v3001, 64
  %v3032 = vpop.permute.xlu0 %3031
  %3033 = vrot.lane.b32.xlu0 %v3002, 64
  %v3034 = vpop.permute.xlu0 %3033
  %v3035 = vsel %vm2648, %v3004, %v3006
  %v3036 = vsel %vm2648, %v3008, %v3010
  %v3037 = vsel %vm2648, %v3012, %v3014
  %v3038 = vsel %vm2648, %v3016, %v3018
  %v3039 = vsel %vm2648, %v3020, %v3022
  %v3040 = vsel %vm2648, %v3024, %v3026
  %v3041 = vsel %vm2648, %v3028, %v3030
  %v3042 = vsel %vm2648, %v3032, %v3034
  %v3051 = vadd.f32 %v2971, %v3035
  %v3052 = vadd.f32 %v2972, %v3036
  %v3053 = vadd.f32 %v2973, %v3037
  %v3054 = vadd.f32 %v2974, %v3038
  %v3055 = vadd.f32 %v2975, %v3039
  %v3056 = vadd.f32 %v2976, %v3040
  %v3057 = vadd.f32 %v2977, %v3041
  %v3058 = vadd.f32 %v2978, %v3042
  %v3059 = vld [vmem:[%s5] sm:$0x1]
  %v3061 = vlaneseq
  %v3062 = vshrl.u32 %v3061, 7
  %v3063 = vsub.s32 0, %v3062
  %v3064 = vrot.slane %v3059, %v3063
  %v3066 = vadd.f32 %v3051, %v3064
  %v3067 = vadd.f32 %v3052, %v3064
  %v3068 = vadd.f32 %v3053, %v3064
  %v3069 = vadd.f32 %v3054, %v3064
  %v3070 = vadd.f32 %v3055, %v3064
  %v3071 = vadd.f32 %v3056, %v3064
  %v3072 = vadd.f32 %v3057, %v3064
  %v3073 = vadd.f32 %v3058, %v3064
  %v3074 = vmax.f32 %v3066, 0.0
  %v3075 = vmax.f32 %v3067, 0.0
  %v3076 = vmax.f32 %v3068, 0.0
  %v3077 = vmax.f32 %v3069, 0.0
  %v3078 = vmax.f32 %v3070, 0.0
  %v3079 = vmax.f32 %v3071, 0.0
  %v3080 = vmax.f32 %v3072, 0.0
  %v3081 = vmax.f32 %v3073, 0.0
  %v3090 = vrot.slane %v3074, 1
  %v3091 = vrot.slane %v3075, 1
  %v3092 = vrot.slane %v3076, 1
  %v3093 = vrot.slane %v3077, 1
  %v3094 = vrot.slane %v3078, 1
  %v3095 = vrot.slane %v3079, 1
  %v3096 = vrot.slane %v3080, 1
  %v3097 = vrot.slane %v3081, 1
  %v3106 = vmax.f32 %v3074, %v3090
  %v3107 = vmax.f32 %v3075, %v3091
  %v3108 = vmax.f32 %v3076, %v3092
  %v3109 = vmax.f32 %v3077, %v3093
  %v3110 = vmax.f32 %v3078, %v3094
  %v3111 = vmax.f32 %v3079, %v3095
  %v3112 = vmax.f32 %v3080, %v3096
  %v3113 = vmax.f32 %v3081, %v3097
  %v3122 = vrot.slane %v3106, 1
  %v3123 = vrot.slane %v3107, 1
  %v3124 = vrot.slane %v3108, 1
  %v3125 = vrot.slane %v3109, 1
  %v3126 = vrot.slane %v3110, 1
  %v3127 = vrot.slane %v3111, 1
  %v3128 = vrot.slane %v3112, 1
  %v3129 = vrot.slane %v3113, 1
  %v3138 = vsel %vm2279, %v3106, %v3122
  %v3139 = vsel %vm2279, %v3107, %v3123
  %v3140 = vsel %vm2279, %v3108, %v3124
  %v3141 = vsel %vm2279, %v3109, %v3125
  %v3142 = vsel %vm2279, %v3110, %v3126
  %v3143 = vsel %vm2279, %v3111, %v3127
  %v3144 = vsel %vm2279, %v3112, %v3128
  %v3145 = vsel %vm2279, %v3113, %v3129
  %v3146 = vsel %vm2288, %v3138, %v3122
  %v3147 = vsel %vm2288, %v3139, %v3123
  %v3148 = vsel %vm2288, %v3140, %v3124
  %v3149 = vsel %vm2288, %v3141, %v3125
  %v3150 = vsel %vm2288, %v3142, %v3126
  %v3151 = vsel %vm2288, %v3143, %v3127
  %v3152 = vsel %vm2288, %v3144, %v3128
  %v3153 = vsel %vm2288, %v3145, %v3129
  %3162 = vrot.lane.b32.xlu0 %v3146, 112
  %v3163 = vpop.permute.xlu0 %3162
  %3164 = vrot.lane.b32.xlu0 %v3147, 112
  %v3165 = vpop.permute.xlu0 %3164
  %3166 = vrot.lane.b32.xlu0 %v3148, 112
  %v3167 = vpop.permute.xlu0 %3166
  %3168 = vrot.lane.b32.xlu0 %v3149, 112
  %v3169 = vpop.permute.xlu0 %3168
  %3170 = vrot.lane.b32.xlu0 %v3150, 112
  %v3171 = vpop.permute.xlu0 %3170
  %3172 = vrot.lane.b32.xlu0 %v3151, 112
  %v3173 = vpop.permute.xlu0 %3172
  %3174 = vrot.lane.b32.xlu0 %v3152, 112
  %v3175 = vpop.permute.xlu0 %3174
  %3176 = vrot.lane.b32.xlu0 %v3153, 112
  %v3177 = vpop.permute.xlu0 %3176
  %v3186 = vmax.f32 %v3146, %v3163
  %v3187 = vmax.f32 %v3147, %v3165
  %v3188 = vmax.f32 %v3148, %v3167
  %v3189 = vmax.f32 %v3149, %v3169
  %v3190 = vmax.f32 %v3150, %v3171
  %v3191 = vmax.f32 %v3151, %v3173
  %v3192 = vmax.f32 %v3152, %v3175
  %v3193 = vmax.f32 %v3153, %v3177
  %3202 = vrot.lane.b32.xlu0 %v3186, 112
  %v3203 = vpop.permute.xlu0 %3202
  %3204 = vrot.lane.b32.xlu0 %v3187, 112
  %v3205 = vpop.permute.xlu0 %3204
  %3206 = vrot.lane.b32.xlu0 %v3188, 112
  %v3207 = vpop.permute.xlu0 %3206
  %3208 = vrot.lane.b32.xlu0 %v3189, 112
  %v3209 = vpop.permute.xlu0 %3208
  %3210 = vrot.lane.b32.xlu0 %v3190, 112
  %v3211 = vpop.permute.xlu0 %3210
  %3212 = vrot.lane.b32.xlu0 %v3191, 112
  %v3213 = vpop.permute.xlu0 %3212
  %3214 = vrot.lane.b32.xlu0 %v3192, 112
  %v3215 = vpop.permute.xlu0 %3214
  %3216 = vrot.lane.b32.xlu0 %v3193, 112
  %v3217 = vpop.permute.xlu0 %3216
  %v3226 = vsel %vm83, %v3186, %v3203
  %v3227 = vsel %vm83, %v3187, %v3205
  %v3228 = vsel %vm83, %v3188, %v3207
  %v3229 = vsel %vm83, %v3189, %v3209
  %v3230 = vsel %vm83, %v3190, %v3211
  %v3231 = vsel %vm83, %v3191, %v3213
  %v3232 = vsel %vm83, %v3192, %v3215
  %v3233 = vsel %vm83, %v3193, %v3217
  %v3234 = vsel %vm2606, %v3226, %v3203
  %v3235 = vsel %vm2606, %v3227, %v3205
  %v3236 = vsel %vm2606, %v3228, %v3207
  %v3237 = vsel %vm2606, %v3229, %v3209
  %v3238 = vsel %vm2606, %v3230, %v3211
  %v3239 = vsel %vm2606, %v3231, %v3213
  %v3240 = vsel %vm2606, %v3232, %v3215
  %v3241 = vsel %vm2606, %v3233, %v3217
  %v3242 = vcombine.low %v3234, %v3236
  %v3244 = vunpack.c.l.s4 1983009808
  %v3245 = vunpack.c.0.s8 %v3244
  %v3246 = vlaneseq
  %v3247 = vshrl.u32 %v3246, 7
  %v3248 = vsub.s32 %v3245, %v3247
  %v3249 = vrot.slane %v3242, %v3248
  %v3250 = vcombine.low %v3235, %v3237
  %v3252 = vunpack.c.l.s4 1983009808
  %v3253 = vunpack.c.0.s8 %v3252
  %v3254 = vlaneseq
  %v3255 = vshrl.u32 %v3254, 7
  %v3256 = vsub.s32 %v3253, %v3255
  %v3257 = vrot.slane %v3250, %v3256
  %v3258 = vcombine.low %v3238, %v3240
  %v3260 = vunpack.c.l.s4 1983009808
  %v3261 = vunpack.c.0.s8 %v3260
  %v3262 = vlaneseq
  %v3263 = vshrl.u32 %v3262, 7
  %v3264 = vsub.s32 %v3261, %v3263
  %v3265 = vrot.slane %v3258, %v3264
  %v3266 = vcombine.low %v3239, %v3241
  %v3268 = vunpack.c.l.s4 1983009808
  %v3269 = vunpack.c.0.s8 %v3268
  %v3270 = vlaneseq
  %v3271 = vshrl.u32 %v3270, 7
  %v3272 = vsub.s32 %v3269, %v3271
  %v3273 = vrot.slane %v3266, %v3272
  %v3274 = vcombine.low %v3249, %v3257
  %v3275 = vcombine.high %v3249, %v3257
  %v3277 = vunpack.c.l.s4 1934713408
  %v3278 = vunpack.c.0.s8 %v3277
  %v3279 = vlaneseq
  %v3280 = vshrl.u32 %v3279, 7
  %v3281 = vsub.s32 %v3278, %v3280
  %v3282 = vrot.slane %v3274, %v3281
  %v3284 = vunpack.c.l.s4 1934713408
  %v3285 = vunpack.c.0.s8 %v3284
  %v3286 = vlaneseq
  %v3287 = vshrl.u32 %v3286, 7
  %v3288 = vsub.s32 %v3285, %v3287
  %v3289 = vrot.slane %v3275, %v3288
  %v3290 = vcombine.low %v3265, %v3273
  %v3291 = vcombine.high %v3265, %v3273
  %v3293 = vunpack.c.l.s4 1934713408
  %v3294 = vunpack.c.0.s8 %v3293
  %v3295 = vlaneseq
  %v3296 = vshrl.u32 %v3295, 7
  %v3297 = vsub.s32 %v3294, %v3296
  %v3298 = vrot.slane %v3290, %v3297
  %v3300 = vunpack.c.l.s4 1934713408
  %v3301 = vunpack.c.0.s8 %v3300
  %v3302 = vlaneseq
  %v3303 = vshrl.u32 %v3302, 7
  %v3304 = vsub.s32 %v3301, %v3303
  %v3305 = vrot.slane %v3291, %v3304
  %v3306 = vcombine.low %v3282, %v3298
  %v3307 = vcombine.high %v3282, %v3298
  %v3308 = vcombine.low %v3289, %v3305
  %v3309 = vcombine.high %v3289, %v3305
  %3311 = vrot.lane.b32.xlu0 %v3307, 64
  %v3312 = vpop.permute.xlu0 %3311
  %3315 = vrot.lane.b32.xlu0 %v3309, 64
  %v3316 = vpop.permute.xlu0 %3315
  %v3318 = vsel %vm2648, %v3306, %v3312
  %v3319 = vsel %vm2648, %v3308, %v3316
  %v3320 = vld [vmem:[%s6] sm:$0xff]
  %v3321 = vld [vmem:[%s6 + $0x8] sm:$0xff]
  %v3322 = vld [vmem:[%s6 + $0x10] sm:$0xff]
  %v3323 = vld [vmem:[%s6 + $0x18] sm:$0xff]
  %v3324 = vld [vmem:[%s6 + $0x20] sm:$0xff]
  %v3325 = vld [vmem:[%s6 + $0x28] sm:$0xff]
  %v3326 = vld [vmem:[%s6 + $0x30] sm:$0xff]
  %v3327 = vld [vmem:[%s6 + $0x38] sm:$0xff]
  %v3328 = vld [vmem:[%s6 + $0x40] sm:$0xff]
  %v3329 = vld [vmem:[%s6 + $0x48] sm:$0xff]
  %v3330 = vld [vmem:[%s6 + $0x50] sm:$0xff]
  %v3331 = vld [vmem:[%s6 + $0x58] sm:$0xff]
  %v3332 = vld [vmem:[%s6 + $0x60] sm:$0xff]
  %v3333 = vld [vmem:[%s6 + $0x68] sm:$0xff]
  %v3334 = vld [vmem:[%s6 + $0x70] sm:$0xff]
  %v3335 = vld [vmem:[%s6 + $0x78] sm:$0xff]
  %v3336 = vld [vmem:[%s6 + $0x80] sm:$0xff]
  %v3337 = vld [vmem:[%s6 + $0x88] sm:$0xff]
  %v3338 = vld [vmem:[%s6 + $0x90] sm:$0xff]
  %v3339 = vld [vmem:[%s6 + $0x98] sm:$0xff]
  %v3340 = vld [vmem:[%s6 + $0xa0] sm:$0xff]
  %v3341 = vld [vmem:[%s6 + $0xa8] sm:$0xff]
  %v3342 = vld [vmem:[%s6 + $0xb0] sm:$0xff]
  %v3343 = vld [vmem:[%s6 + $0xb8] sm:$0xff]
  %v3344 = vld [vmem:[%s6 + $0xc0] sm:$0xff]
  %v3345 = vld [vmem:[%s6 + $0xc8] sm:$0xff]
  %v3346 = vld [vmem:[%s6 + $0xd0] sm:$0xff]
  %v3347 = vld [vmem:[%s6 + $0xd8] sm:$0xff]
  %v3348 = vld [vmem:[%s6 + $0xe0] sm:$0xff]
  %v3349 = vld [vmem:[%s6 + $0xe8] sm:$0xff]
  %v3350 = vld [vmem:[%s6 + $0xf0] sm:$0xff]
  %v3351 = vld [vmem:[%s6 + $0xf8] sm:$0xff]
  %v3352 = vld [vmem:[%s7] sm:$0x1]
  %v3354 = vlaneseq
  %v3355 = vshrl.u32 %v3354, 7
  %v3356 = vsub.s32 0, %v3355
  %v3357 = vrot.slane %v3352, %v3356
  %3359 = vmatprep.subr.mxu0 0.0
  %3360 = vmatpush1.msra.mxu0 %v3320
  %3361 = vmatprep.subr.mxu0 0.0
  %3362 = vmatpush1.msra.mxu0 %v3321
  %3363 = vmatprep.subr.mxu0 0.0
  %3364 = vmatpush1.msra.mxu0 %v3322
  %3365 = vmatprep.subr.mxu0 0.0
  %3366 = vmatpush1.msra.mxu0 %v3323
  %3367 = vmatprep.subr.mxu0 0.0
  %3368 = vmatpush1.msra.mxu0 %v3324
  %3369 = vmatprep.subr.mxu0 0.0
  %3370 = vmatpush1.msra.mxu0 %v3325
  %3371 = vmatprep.subr.mxu0 0.0
  %3372 = vmatpush1.msra.mxu0 %v3326
  %3373 = vmatprep.subr.mxu0 0.0
  %3374 = vmatpush1.msra.mxu0 %v3327
  %3375 = vmatprep.subr.mxu0 0.0
  %3376 = vmatpush1.msra.mxu0 %v3328
  %3377 = vmatprep.subr.mxu0 0.0
  %3378 = vmatpush1.msra.mxu0 %v3329
  %3379 = vmatprep.subr.mxu0 0.0
  %3380 = vmatpush1.msra.mxu0 %v3330
  %3381 = vmatprep.subr.mxu0 0.0
  %3382 = vmatpush1.msra.mxu0 %v3331
  %3383 = vmatprep.subr.mxu0 0.0
  %3384 = vmatpush1.msra.mxu0 %v3332
  %3385 = vmatprep.subr.mxu0 0.0
  %3386 = vmatpush1.msra.mxu0 %v3333
  %3387 = vmatprep.subr.mxu0 0.0
  %3388 = vmatpush1.msra.mxu0 %v3334
  %3389 = vmatprep.subr.mxu0 0.0
  %3390 = vmatpush1.msra.mxu0 %v3335
  %3391 = vmatprep.subr.mxu0 0.0
  %3392 = vmatpush1.msra.mxu0 %v3336
  %3393 = vmatprep.subr.mxu0 0.0
  %3394 = vmatpush1.msra.mxu0 %v3337
  %3395 = vmatprep.subr.mxu0 0.0
  %3396 = vmatpush1.msra.mxu0 %v3338
  %3397 = vmatprep.subr.mxu0 0.0
  %3398 = vmatpush1.msra.mxu0 %v3339
  %3399 = vmatprep.subr.mxu0 0.0
  %3400 = vmatpush1.msra.mxu0 %v3340
  %3401 = vmatprep.subr.mxu0 0.0
  %3402 = vmatpush1.msra.mxu0 %v3341
  %3403 = vmatprep.subr.mxu0 0.0
  %3404 = vmatpush1.msra.mxu0 %v3342
  %3405 = vmatprep.subr.mxu0 0.0
  %3406 = vmatpush1.msra.mxu0 %v3343
  %3407 = vmatprep.subr.mxu0 0.0
  %3408 = vmatpush1.msra.mxu0 %v3344
  %3409 = vmatprep.subr.mxu0 0.0
  %3410 = vmatpush1.msra.mxu0 %v3345
  %3411 = vmatprep.subr.mxu0 0.0
  %3412 = vmatpush1.msra.mxu0 %v3346
  %3413 = vmatprep.subr.mxu0 0.0
  %3414 = vmatpush1.msra.mxu0 %v3347
  %3415 = vmatprep.subr.mxu0 0.0
  %3416 = vmatpush1.msra.mxu0 %v3348
  %3417 = vmatprep.subr.mxu0 0.0
  %3418 = vmatpush1.msra.mxu0 %v3349
  %3419 = vmatprep.subr.mxu0 0.0
  %3420 = vmatpush1.msra.mxu0 %v3350
  %3421 = vmatprep.subr.mxu0 0.0
  %3422 = vmatpush1.msra.mxu0 %v3351
  %3423 = vmatprep.mubr.f32.mxu0 %v3319
  %3424 = vmatmul.mubr.f32.gmra.mrb[0].mxu0 %v3318
  %v3425 = vpop.f32.mrb[0].mxu0
  %v3426 = vadd.f32 %v3357, %v3425
  %v3427 = vpop.f32.mrb[0].mxu0
  %3428 = vdwg.mxu0
  %v3429 = vmax.f32 %v3426, 0.0
  %v3430 = vld [vmem:[%s8] sm:$0x3]
  %v3431 = vld [vmem:[%s9] sm:$0x3]
  %3433 = vset.pattern.permute.xlu0 0
  %3434 = vperm.xlu0 %3433, %v3431
  %v3435 = vpop.permute.xlu0 %3434
  %v3438 = vsel %vm83, %v3430, 0
  %v3441 = vsel %vm83, %v3429, 0
  %3443 = vmatprep.subr.mxu0 0.0
  %3444 = vmatpush1.xpose.msra.mxu0 %v3441
  %3445 = vmatprep.subr.mxu0 0.0
  %3446 = vmatpush1.xpose.msra.mxu0 0.0
  %3447 = vmatprep.subr.mxu0 0.0
  %3448 = vmatpush1.xpose.msra.mxu0 0.0
  %3449 = vmatprep.subr.mxu0 0.0
  %3450 = vmatpush1.xpose.msra.mxu0 0.0
  %3451 = vmatprep.subr.mxu0 0.0
  %3452 = vmatpush1.xpose.msra.mxu0 0.0
  %3453 = vmatprep.subr.mxu0 0.0
  %3454 = vmatpush1.xpose.msra.mxu0 0.0
  %3455 = vmatprep.subr.mxu0 0.0
  %3456 = vmatpush1.xpose.msra.mxu0 0.0
  %3457 = vmatprep.subr.mxu0 0.0
  %3458 = vmatpush1.xpose.msra.mxu0 0.0
  %3459 = vmatprep.subr.mxu0 0.0
  %3460 = vmatpush1.xpose.msra.mxu0 0.0
  %3461 = vmatprep.subr.mxu0 0.0
  %3462 = vmatpush1.xpose.msra.mxu0 0.0
  %3463 = vmatprep.subr.mxu0 0.0
  %3464 = vmatpush1.xpose.msra.mxu0 0.0
  %3465 = vmatprep.subr.mxu0 0.0
  %3466 = vmatpush1.xpose.msra.mxu0 0.0
  %3467 = vmatprep.subr.mxu0 0.0
  %3468 = vmatpush1.xpose.msra.mxu0 0.0
  %3469 = vmatprep.subr.mxu0 0.0
  %3470 = vmatpush1.xpose.msra.mxu0 0.0
  %3471 = vmatprep.subr.mxu0 0.0
  %3472 = vmatpush1.xpose.msra.mxu0 0.0
  %3473 = vmatprep.subr.mxu0 0.0
  %3474 = vmatpush1.xpose.msra.mxu0 0.0
  %3475 = vmatprep.subr.mxu0 0.0
  %3476 = vmatpush1.xpose.msra.mxu0 0.0
  %3477 = vmatprep.subr.mxu0 0.0
  %3478 = vmatpush1.xpose.msra.mxu0 0.0
  %3479 = vmatprep.subr.mxu0 0.0
  %3480 = vmatpush1.xpose.msra.mxu0 0.0
  %3481 = vmatprep.subr.mxu0 0.0
  %3482 = vmatpush1.xpose.msra.mxu0 0.0
  %3483 = vmatprep.subr.mxu0 0.0
  %3484 = vmatpush1.xpose.msra.mxu0 0.0
  %3485 = vmatprep.subr.mxu0 0.0
  %3486 = vmatpush1.xpose.msra.mxu0 0.0
  %3487 = vmatprep.subr.mxu0 0.0
  %3488 = vmatpush1.xpose.msra.mxu0 0.0
  %3489 = vmatprep.subr.mxu0 0.0
  %3490 = vmatpush1.xpose.msra.mxu0 0.0
  %3491 = vmatprep.subr.mxu0 0.0
  %3492 = vmatpush1.xpose.msra.mxu0 0.0
  %3493 = vmatprep.subr.mxu0 0.0
  %3494 = vmatpush1.xpose.msra.mxu0 0.0
  %3495 = vmatprep.subr.mxu0 0.0
  %3496 = vmatpush1.xpose.msra.mxu0 0.0
  %3497 = vmatprep.subr.mxu0 0.0
  %3498 = vmatpush1.xpose.msra.mxu0 0.0
  %3499 = vmatprep.subr.mxu0 0.0
  %3500 = vmatpush1.xpose.msra.mxu0 0.0
  %3501 = vmatprep.subr.mxu0 0.0
  %3502 = vmatpush1.xpose.msra.mxu0 0.0
  %3503 = vmatprep.subr.mxu0 0.0
  %3504 = vmatpush1.xpose.msra.mxu0 0.0
  %3505 = vmatprep.subr.mxu0 0.0
  %3506 = vmatpush1.xpose.msra.mxu0 0.0
  %3507 = vmatprep.mubr.f32.mxu0 0.0
  %3508 = vmatmul.mubr.f32.gmra.mrb[0].mxu0 %v3438
  %v3509 = vpop.f32.mrb[0].mxu0
  %v3510 = vadd.f32 %v3435, %v3509
  %v3511 = vpop.f32.mrb[0].mxu0
  %3512 = vdwg.mxu0
  %vm3513 = vcmask 58368
  %3514 = vst.msk [vmem:[%s10] sm:$0x3] %vm3513, %v3510
  // Predicated region
  $region42: #{matchpyramid_forward.1} parent=0 // pred_check
    _
  $region43: #{matchpyramid_forward.1} parent=0 // pred_check_branch
    %3516 = sbr.rel (0) target = $region45
  $region44: #{matchpyramid_forward.1} parent=0 // pred_region
    _
  $region45: #{matchpyramid_forward.1} parent=0 // pred_fallthru
    _
  // Predicated region
  $region46: #{matchpyramid_forward.1} parent=0 // pred_check
    _
  $region47: #{matchpyramid_forward.1} parent=0 // pred_check_branch
    %3518 = sbr.rel (0) target = $region49
  $region48: #{matchpyramid_forward.1} parent=0 // pred_region
    _
  $region49: #{matchpyramid_forward.1} parent=0 // pred_fallthru
    _

</llo_original>
